<compile_context>
chip_gen: v5e
topology: v5e:2x2
jax: 0.10.0
libtpu: 0.0.40
codegen_flags: <defaults>
</compile_context>

<pallas_src>
import numpy as np
import jax
import jax.numpy as jnp
from jax import lax
from jax.experimental import pallas as pl
from jax.experimental.pallas import tpu as pltpu

# ----------------------- static MFCC configuration (SpeechBrain defaults) ---
SAMPLE_RATE = 16000
N_FFT = 400
WIN_SAMPLES = int(round(SAMPLE_RATE * 25 / 1000))     # 400
HOP_SAMPLES = int(round(SAMPLE_RATE * 10 / 1000))     # 160
N_FREQ = N_FFT // 2 + 1                               # 201 (onesided)
N_MELS = 23
N_MFCC = 20
F_MIN = 0.0
F_MAX = SAMPLE_RATE / 2.0
LEFT_FRAMES = 5
RIGHT_FRAMES = 5
CTX = LEFT_FRAMES + RIGHT_FRAMES + 1                  # 11
DELTA_WIN = 5
TOP_DB = 80.0
AMIN = 1e-10
MULTIPLIER = 10.0                                     # power_spectrogram == 2
N_FEAT = 3 * N_MFCC                                   # 60 (mfcc + d1 + d2)
N_OUT = N_FEAT * CTX                                  # 660

# lane-aligned padded sizes (padded entries are exactly zero in the constants)
N_FREQ_PAD = 256                                      # 201 -> 256
N_MELS_PAD = 128                                      # 23  -> 128
FEAT_PAD = 128                                        # 60  -> 128
N_OUT_PAD = 768                                       # 660 -> 6*128 (lane-dense)


# ----------------------- base constant construction -------------------------
def _hamming_window(n):
    # torch.hamming_window(n, periodic=True)
    i = np.arange(n)
    return 0.54 - 0.46 * np.cos(2.0 * np.pi * i / n)


def _dft_matrices():
    # window folded into the real/imag DFT matrices (torch.stft, normalized=False)
    n = np.arange(N_FFT, dtype=np.float64)[:, None]
    f = np.arange(N_FREQ, dtype=np.float64)[None, :]
    ang = 2.0 * np.pi * n * f / N_FFT
    win = _hamming_window(WIN_SAMPLES)[:, None]
    cre = win * np.cos(ang)
    cim = -win * np.sin(ang)
    return cre.astype(np.float32), cim.astype(np.float32)


def _mel_fbank_matrix():
    # SpeechBrain Filterbank, triangular, freeze=True
    def to_mel(hz):
        return 2595.0 * np.log10(1.0 + hz / 700.0)

    def to_hz(mel):
        return 700.0 * (10.0 ** (mel / 2595.0) - 1.0)

    hz = to_hz(np.linspace(to_mel(F_MIN), to_mel(F_MAX), N_MELS + 2))
    band = (hz[1:] - hz[:-1])[:-1]
    f_central = hz[1:-1]
    all_freqs = np.linspace(0, SAMPLE_RATE // 2, N_FREQ)
    slope = (all_freqs[:, None] - f_central[None, :]) / band[None, :]
    fb = np.maximum(0.0, np.minimum(slope + 1.0, -slope + 1.0))
    return fb.astype(np.float32)              # (N_FREQ, N_MELS)


def _dct_matrix():
    # SpeechBrain DCT, ortho_norm=True
    n = np.arange(N_MELS, dtype=np.float64)
    k = np.arange(N_MFCC, dtype=np.float64)[:, None]
    dct = np.cos(np.pi / N_MELS * (n + 0.5) * k)
    dct[0] *= 1.0 / np.sqrt(2.0)
    dct *= np.sqrt(2.0 / N_MELS)
    return dct.T.astype(np.float32)           # (N_MELS, N_MFCC)


# ----------------------- padded constants used by the kernel ----------------
def _fused_dft_matrix():
    # (N_FFT, 512): re in cols [0,201), im in cols [256,457), zeros elsewhere.
    cre, cim = _dft_matrices()
    C = np.zeros((N_FFT, 2 * N_FREQ_PAD), dtype=np.float32)
    C[:, :N_FREQ] = cre
    C[:, N_FREQ_PAD:N_FREQ_PAD + N_FREQ] = cim
    return C


def _dft_split_matrix():
    # (3, 160, 512): the fused DFT matrix split along the frame axis into hop-
    # sized pieces so the STFT can consume non-overlapping wav chunks:
    #   frame_t @ C == chunk_t @ S0 + chunk_{t+1} @ S1 + chunk_{t+2} @ S2
    # S2 rows [80,160) are zero (frame length 400 = 2.5 hops).
    C = _fused_dft_matrix()
    S = np.zeros((3, HOP_SAMPLES, 2 * N_FREQ_PAD), dtype=np.float32)
    S[0] = C[0:HOP_SAMPLES]
    S[1] = C[HOP_SAMPLES:2 * HOP_SAMPLES]
    S[2, :N_FFT - 2 * HOP_SAMPLES] = C[2 * HOP_SAMPLES:N_FFT]
    return S


def _mel_fbank_padded():
    fb = _mel_fbank_matrix()
    FBp = np.zeros((N_FREQ_PAD, N_MELS_PAD), dtype=np.float32)
    FBp[:N_FREQ, :N_MELS] = fb
    return FBp


def _dct_tripled():
    # (128, 128): the 20 DCT coefficients replicated into column blocks
    # [0,20), [20,40), [40,60); zero elsewhere.  The replicas feed the delta
    # stencils so mfcc/d1/d2 end up packed in lanes 0..59 of one tensor.
    dct = _dct_matrix()                        # (23, 20)
    D = np.zeros((N_MELS_PAD, FEAT_PAD), dtype=np.float32)
    for blk in range(3):
        D[:N_MELS, blk * N_MFCC:(blk + 1) * N_MFCC] = dct
    return D


def _placement_matrix():
    # (CTX, 128, 768): tap j scatters packed feature f (0..59) into output
    # column f*11 + j (PyTorch grouped-conv channel ordering).  Rows >= 60 and
    # columns >= 660 are zero.
    P = np.zeros((CTX, FEAT_PAD, N_OUT_PAD), dtype=np.float32)
    for j in range(CTX):
        for f in range(N_FEAT):
            P[j, f, f * CTX + j] = 1.0
    return P


def _delta_matrix(T):
    # (reference-only) deltas as a (T,T) time-mixing matrix with replicate padding
    n = (DELTA_WIN - 1) // 2
    denom = n * (n + 1) * (2 * n + 1) / 3.0
    D = np.zeros((T, T), dtype=np.float64)
    for t in range(T):
        for k in range(-n, n + 1):
            D[t, int(np.clip(t + k, 0, T - 1))] += k / denom
    return D.astype(np.float32)


# ----------------------- the Pallas kernel ----------------------------------
def _mfcc_kernel(chunks_ref, dft_ref, fb_ref, dct_ref, place_ref, out_ref):
    f32 = jnp.float32
    chunks = chunks_ref[0]                                           # (T+2, 160)
    T = chunks.shape[0] - 2

    # Fused framing + windowed real DFT (three MXU streams accumulated in regs):
    # frame_t = [chunk_t | chunk_{t+1} | chunk_{t+2}[:80]]  (center zero-pad done
    # in the wrapper), so spec = c0 @ S0 + c1 @ S1 + c2 @ S2.
    spec = jnp.dot(chunks[0:T], dft_ref[0], preferred_element_type=f32)
    spec = spec + jnp.dot(chunks[1:T + 1], dft_ref[1], preferred_element_type=f32)
    spec = spec + jnp.dot(chunks[2:T + 2], dft_ref[2], preferred_element_type=f32)

    re = spec[:, :N_FREQ_PAD]
    im = spec[:, N_FREQ_PAD:]
    power = re * re + im * im                                        # (T, 256)

    # Mel filterbank + amplitude_to_DB (db_multiplier = log10(1.0) = 0)
    mel = jnp.dot(power, fb_ref[...], preferred_element_type=f32)    # (T, 128)
    mel_db = MULTIPLIER * jnp.log10(jnp.maximum(mel, AMIN))
    # per-sequence top_db clamp; padded lanes are exactly -100 dB (the global
    # floor after the amin clamp) so they can never change the max.
    mel_db = jnp.maximum(mel_db, jnp.max(mel_db) - TOP_DB)

    # DCT -> mfcc replicated into lane blocks [0,20)/[20,40)/[40,60)
    m_all = jnp.dot(mel_db, dct_ref[...], preferred_element_type=f32)  # (T, 128)

    # Deltas: 5-tap stencil with replicate time padding (pure VPU, no matmul)
    def delta(x):
        xp = jnp.concatenate([x[0:1], x[0:1], x, x[T - 1:T], x[T - 1:T]], axis=0)
        return (2.0 * (xp[4:T + 4] - xp[0:T])
                + (xp[3:T + 3] - xp[1:T + 1])) * (1.0 / 10.0)

    d1_all = delta(m_all)
    d2_all = delta(d1_all)

    # Pack [mfcc | d1 | d2] into lanes 0..59 with a lane select (lanes >= 60 stay 0)
    lane = lax.broadcasted_iota(jnp.int32, m_all.shape, 1)
    feats = jnp.where(lane < N_MFCC, m_all,
                      jnp.where(lane < 2 * N_MFCC, d1_all, d2_all))   # (T, 128)

    # Context window: 11 zero-padded time shifts, each scattered to output
    # columns f*11 + j via one small (128, 768) placement matmul, accumulated
    # directly into the VMEM output block (bounds live ranges, no vreg spills).
    zpad = jnp.zeros((LEFT_FRAMES, FEAT_PAD), f32)
    fpad = jnp.concatenate([zpad, feats, zpad], axis=0)               # (T+10, 128)

    out_ref[0] = jnp.dot(fpad[0:T], place_ref[0], preferred_element_type=f32)
    for j in range(1, CTX):
        out_ref[0] += jnp.dot(fpad[j:j + T], place_ref[j],
                              preferred_element_type=f32)


# ----------------------- wrapper --------------------------------------------
def mfcc_pallas(wav):
    B, L = wav.shape
    pad = N_FFT // 2                                   # 200 (center zero-pad)
    T = 1 + L // HOP_SAMPLES                           # torch.stft, center=True
    NC = T + 2                                         # hop-chunks needed by frame T-1
    total = NC * HOP_SAMPLES

    # Zero-pad + reshape into non-overlapping hop chunks: no gather, no (B,T,400)
    # frame tensor.  right pad = 280 - (L % 160) >= 121 always; extra zeros past
    # the conceptual center pad are only ever multiplied by zero DFT rows.
    rpad = total - L - pad
    assert rpad >= 0
    x = jnp.pad(wav.astype(jnp.float32), ((0, 0), (pad, rpad)))
    chunks = x.reshape(B, NC, HOP_SAMPLES)             # (B, T+2, 160)

    dftm = jnp.asarray(_dft_split_matrix())        # (3, 160, 512)
    fbm = jnp.asarray(_mel_fbank_padded())         # (256, 128)
    dctm = jnp.asarray(_dct_tripled())             # (128, 128)
    plm = jnp.asarray(_placement_matrix())         # (11, 128, 768)

    const2d = lambda b: (0, 0)
    const3d = lambda b: (0, 0, 0)
    # TODO(synk): for very small T, several batch elements could be packed per
    # grid step to better fill the MXU M dimension (needs per-sequence top_db max).
    grid_spec = pltpu.PrefetchScalarGridSpec(
        num_scalar_prefetch=0,
        grid=(B,),
        in_specs=[
            pl.BlockSpec((1, NC, HOP_SAMPLES), lambda b: (b, 0, 0)),
            pl.BlockSpec((3, HOP_SAMPLES, 2 * N_FREQ_PAD), const3d),
            pl.BlockSpec((N_FREQ_PAD, N_MELS_PAD), const2d),
            pl.BlockSpec((N_MELS_PAD, FEAT_PAD), const2d),
            pl.BlockSpec((CTX, FEAT_PAD, N_OUT_PAD), const3d),
        ],
        out_specs=pl.BlockSpec((1, T, N_OUT_PAD), lambda b: (b, 0, 0)),
    )

    out_pad = pl.pallas_call(
        _mfcc_kernel,
        out_shape=jax.ShapeDtypeStruct((B, T, N_OUT_PAD), jnp.float32),
        grid_spec=grid_spec,
        compiler_params=pltpu.CompilerParams(
            dimension_semantics=("parallel",),
            vmem_limit_bytes=32 * 1024 * 1024,
        ),
    )(chunks, dftm, fbm, dctm, plm)

    return out_pad[..., :N_OUT]                    # drop lane padding (660 cols)


# ----------------------- float64 numpy reference (sanity check) -------------
def mfcc_reference_np(wav):
    B, L = wav.shape
    pad = N_FFT // 2
    T = 1 + (L + 2 * pad - N_FFT) // HOP_SAMPLES
    x = np.pad(wav.astype(np.float64), ((0, 0), (pad, pad)))
    gather = np.arange(T)[:, None] * HOP_SAMPLES + np.arange(N_FFT)[None, :]
    frames = x[:, gather]
    cre, cim = _dft_matrices()
    fbm, dctm, dmat = _mel_fbank_matrix(), _dct_matrix(), _delta_matrix(T)
    re = frames @ cre.astype(np.float64)
    im = frames @ cim.astype(np.float64)
    power = re * re + im * im
    fb = power @ fbm.astype(np.float64)
    fb_db = MULTIPLIER * np.log10(np.maximum(fb, AMIN))
    fb_db = np.maximum(fb_db, fb_db.max(axis=(1, 2), keepdims=True) - TOP_DB)
    mfcc = fb_db @ dctm.astype(np.float64)
    d1 = np.einsum('ts,bsc->btc', dmat.astype(np.float64), mfcc)
    d2 = np.einsum('ts,bsc->btc', dmat.astype(np.float64), d1)
    feats = np.concatenate([mfcc, d1, d2], axis=2)                   # (B, T, 60)
    out = np.zeros((B, T, N_OUT))
    for j in range(CTX):
        off = j - LEFT_FRAMES
        for t in range(T):
            s = t + off
            if 0 <= s < T:
                out[:, t, j::CTX] = feats[:, s, :]
    return out


if __name__ == "__main__":
    key = jax.random.PRNGKey(0)
    B, L = 2, 1600                       # 0.1 s of audio -> T = 11 frames
    wav = jax.random.normal(key, (B, L), dtype=jnp.float32)

    out = jax.block_until_ready(mfcc_pallas(wav))
    ref = mfcc_reference_np(np.asarray(wav))

    assert out.shape == (B, 11, N_OUT), out.shape
    assert np.all(np.isfinite(np.asarray(out)))
    assert np.allclose(np.asarray(out), ref, rtol=5e-2, atol=5e-1), (
        float(np.max(np.abs(np.asarray(out) - ref))))
    print("KERNEL_OK")
</pallas_src>

<mosaic_0001>
module attributes {stable_mosaic.version = 11 : i64} {
  func.func @_mfcc_kernel(%arg0: i32, %arg1: memref<1x13x160xf32, #tpu.memory_space<vmem>>, %arg2: memref<3x160x512xf32, #tpu.memory_space<vmem>>, %arg3: memref<256x128xf32, #tpu.memory_space<vmem>>, %arg4: memref<128x128xf32, #tpu.memory_space<vmem>>, %arg5: memref<11x128x768xf32, #tpu.memory_space<vmem>>, %arg6: memref<1x11x768xf32, #tpu.memory_space<vmem>>) attributes {dimension_semantics = [#tpu.dimension_semantics<parallel>], iteration_bounds = array<i64: 2>, scalar_prefetch = 0 : i64, scratch_operands = 0 : i64, tpu.core_type = #tpu.core_type<tc>, window_params = [{transform_indices = @transform_0, window_bounds = array<i64: 1, 13, 160>}, {pipeline_mode = #tpu.pipeline_mode<synchronous>, transform_indices = @transform_1, window_bounds = array<i64: 3, 160, 512>}, {pipeline_mode = #tpu.pipeline_mode<synchronous>, transform_indices = @transform_2, window_bounds = array<i64: 256, 128>}, {pipeline_mode = #tpu.pipeline_mode<synchronous>, transform_indices = @transform_3, window_bounds = array<i64: 128, 128>}, {pipeline_mode = #tpu.pipeline_mode<synchronous>, transform_indices = @transform_4, window_bounds = array<i64: 11, 128, 768>}, {transform_indices = @transform_5, window_bounds = array<i64: 1, 11, 768>}]} {
    %c0 = arith.constant 0 : index
    %c0_0 = arith.constant 0 : index
    %c0_1 = arith.constant 0 : index
    %0 = vector.load %arg1[%c0, %c0_0, %c0_1] : memref<1x13x160xf32, #tpu.memory_space<vmem>>, vector<1x13x160xf32>
    %1 = vector.shape_cast %0 : vector<1x13x160xf32> to vector<13x160xf32>
    %2 = vector.extract_strided_slice %1 {offsets = [0, 0], sizes = [11, 160], strides = [1, 1]} : vector<13x160xf32> to vector<11x160xf32>
    %c0_2 = arith.constant 0 : index
    %c0_3 = arith.constant 0 : index
    %c0_4 = arith.constant 0 : index
    %3 = vector.load %arg2[%c0_2, %c0_3, %c0_4] : memref<3x160x512xf32, #tpu.memory_space<vmem>>, vector<1x160x512xf32>
    %4 = vector.shape_cast %3 : vector<1x160x512xf32> to vector<160x512xf32>
    %cst = arith.constant dense<0.000000e+00> : vector<11x512xf32>
    %5 = tpu.matmul %2, %4, %cst {dimension_numbers = #tpu.dot_dimension_numbers<[1], [0], [0], [1], [0, 0, 1, 1], [], []>} : vector<11x160xf32>, vector<160x512xf32>, vector<11x512xf32> -> vector<11x512xf32>
    %6 = vector.extract_strided_slice %1 {offsets = [1, 0], sizes = [11, 160], strides = [1, 1]} : vector<13x160xf32> to vector<11x160xf32>
    %c1 = arith.constant 1 : index
    %c0_5 = arith.constant 0 : index
    %c0_6 = arith.constant 0 : index
    %7 = vector.load %arg2[%c1, %c0_5, %c0_6] : memref<3x160x512xf32, #tpu.memory_space<vmem>>, vector<1x160x512xf32>
    %8 = vector.shape_cast %7 : vector<1x160x512xf32> to vector<160x512xf32>
    %cst_7 = arith.constant dense<0.000000e+00> : vector<11x512xf32>
    %9 = tpu.matmul %6, %8, %cst_7 {dimension_numbers = #tpu.dot_dimension_numbers<[1], [0], [0], [1], [0, 0, 1, 1], [], []>} : vector<11x160xf32>, vector<160x512xf32>, vector<11x512xf32> -> vector<11x512xf32>
    %10 = arith.addf %5, %9 : vector<11x512xf32>
    %11 = vector.extract_strided_slice %1 {offsets = [2, 0], sizes = [11, 160], strides = [1, 1]} : vector<13x160xf32> to vector<11x160xf32>
    %c2 = arith.constant 2 : index
    %c0_8 = arith.constant 0 : index
    %c0_9 = arith.constant 0 : index
    %12 = vector.load %arg2[%c2, %c0_8, %c0_9] : memref<3x160x512xf32, #tpu.memory_space<vmem>>, vector<1x160x512xf32>
    %13 = vector.shape_cast %12 : vector<1x160x512xf32> to vector<160x512xf32>
    %cst_10 = arith.constant dense<0.000000e+00> : vector<11x512xf32>
    %14 = tpu.matmul %11, %13, %cst_10 {dimension_numbers = #tpu.dot_dimension_numbers<[1], [0], [0], [1], [0, 0, 1, 1], [], []>} : vector<11x160xf32>, vector<160x512xf32>, vector<11x512xf32> -> vector<11x512xf32>
    %15 = arith.addf %10, %14 : vector<11x512xf32>
    %16 = vector.extract_strided_slice %15 {offsets = [0, 0], sizes = [11, 256], strides = [1, 1]} : vector<11x512xf32> to vector<11x256xf32>
    %17 = vector.extract_strided_slice %15 {offsets = [0, 256], sizes = [11, 256], strides = [1, 1]} : vector<11x512xf32> to vector<11x256xf32>
    %18 = arith.mulf %16, %16 : vector<11x256xf32>
    %19 = arith.mulf %17, %17 : vector<11x256xf32>
    %20 = arith.addf %18, %19 : vector<11x256xf32>
    %c0_11 = arith.constant 0 : index
    %c0_12 = arith.constant 0 : index
    %21 = vector.load %arg3[%c0_11, %c0_12] : memref<256x128xf32, #tpu.memory_space<vmem>>, vector<256x128xf32>
    %cst_13 = arith.constant dense<0.000000e+00> : vector<11x128xf32>
    %22 = tpu.matmul %20, %21, %cst_13 {dimension_numbers = #tpu.dot_dimension_numbers<[1], [0], [0], [1], [0, 0, 1, 1], [], []>} : vector<11x256xf32>, vector<256x128xf32>, vector<11x128xf32> -> vector<11x128xf32>
    %cst_14 = arith.constant 1.000000e-10 : f32
    %23 = vector.broadcast %cst_14 : f32 to vector<11x128xf32>
    %24 = arith.maximumf %22, %23 : vector<11x128xf32>
    %25 = math.log %24 : vector<11x128xf32>
    %cst_15 = arith.constant 0.434294492 : f32
    %26 = vector.broadcast %cst_15 : f32 to vector<11x128xf32>
    %27 = arith.mulf %25, %26 : vector<11x128xf32>
    %cst_16 = arith.constant 1.000000e+01 : f32
    %28 = vector.broadcast %cst_16 : f32 to vector<11x128xf32>
    %29 = arith.mulf %28, %27 : vector<11x128xf32>
    %30 = vector.shape_cast %29 : vector<11x128xf32> to vector<1x11x128xf32>
    %cst_17 = arith.constant dense<0xFF800000> : vector<1xf32>
    %31 = vector.multi_reduction <maximumf>, %30, %cst_17 [1, 2] : vector<1x11x128xf32> to vector<1xf32>
    %32 = vector.shape_cast %31 : vector<1xf32> to vector<1x1x1xf32>
    %33 = vector.extract %32[0, 0, 0] : f32 from vector<1x1x1xf32>
    %cst_18 = arith.constant 8.000000e+01 : f32
    %34 = arith.subf %33, %cst_18 : f32
    %35 = vector.broadcast %34 : f32 to vector<11x128xf32>
    %36 = arith.maximumf %29, %35 : vector<11x128xf32>
    %c0_19 = arith.constant 0 : index
    %c0_20 = arith.constant 0 : index
    %37 = vector.load %arg4[%c0_19, %c0_20] : memref<128x128xf32, #tpu.memory_space<vmem>>, vector<128x128xf32>
    %cst_21 = arith.constant dense<0.000000e+00> : vector<11x128xf32>
    %38 = tpu.matmul %36, %37, %cst_21 {dimension_numbers = #tpu.dot_dimension_numbers<[1], [0], [0], [1], [0, 0, 1, 1], [], []>} : vector<11x128xf32>, vector<128x128xf32>, vector<11x128xf32> -> vector<11x128xf32>
    %39 = vector.extract_strided_slice %38 {offsets = [0, 0], sizes = [1, 128], strides = [1, 1]} : vector<11x128xf32> to vector<1x128xf32>
    %40 = vector.extract_strided_slice %38 {offsets = [0, 0], sizes = [1, 128], strides = [1, 1]} : vector<11x128xf32> to vector<1x128xf32>
    %41 = vector.extract_strided_slice %38 {offsets = [10, 0], sizes = [1, 128], strides = [1, 1]} : vector<11x128xf32> to vector<1x128xf32>
    %42 = vector.extract_strided_slice %38 {offsets = [10, 0], sizes = [1, 128], strides = [1, 1]} : vector<11x128xf32> to vector<1x128xf32>
    %43 = tpu.concatenate %39, %40, %38, %41, %42 in 0 : vector<1x128xf32>, vector<1x128xf32>, vector<11x128xf32>, vector<1x128xf32>, vector<1x128xf32> -> vector<15x128xf32>
    %44 = vector.extract_strided_slice %43 {offsets = [4, 0], sizes = [11, 128], strides = [1, 1]} : vector<15x128xf32> to vector<11x128xf32>
    %45 = vector.extract_strided_slice %43 {offsets = [0, 0], sizes = [11, 128], strides = [1, 1]} : vector<15x128xf32> to vector<11x128xf32>
    %46 = arith.subf %44, %45 : vector<11x128xf32>
    %cst_22 = arith.constant 2.000000e+00 : f32
    %47 = vector.broadcast %cst_22 : f32 to vector<11x128xf32>
    %48 = arith.mulf %47, %46 : vector<11x128xf32>
    %49 = vector.extract_strided_slice %43 {offsets = [3, 0], sizes = [11, 128], strides = [1, 1]} : vector<15x128xf32> to vector<11x128xf32>
    %50 = vector.extract_strided_slice %43 {offsets = [1, 0], sizes = [11, 128], strides = [1, 1]} : vector<15x128xf32> to vector<11x128xf32>
    %51 = arith.subf %49, %50 : vector<11x128xf32>
    %52 = arith.addf %48, %51 : vector<11x128xf32>
    %cst_23 = arith.constant 1.000000e-01 : f32
    %53 = vector.broadcast %cst_23 : f32 to vector<11x128xf32>
    %54 = arith.mulf %52, %53 : vector<11x128xf32>
    %55 = vector.extract_strided_slice %54 {offsets = [0, 0], sizes = [1, 128], strides = [1, 1]} : vector<11x128xf32> to vector<1x128xf32>
    %56 = vector.extract_strided_slice %54 {offsets = [0, 0], sizes = [1, 128], strides = [1, 1]} : vector<11x128xf32> to vector<1x128xf32>
    %57 = vector.extract_strided_slice %54 {offsets = [10, 0], sizes = [1, 128], strides = [1, 1]} : vector<11x128xf32> to vector<1x128xf32>
    %58 = vector.extract_strided_slice %54 {offsets = [10, 0], sizes = [1, 128], strides = [1, 1]} : vector<11x128xf32> to vector<1x128xf32>
    %59 = tpu.concatenate %55, %56, %54, %57, %58 in 0 : vector<1x128xf32>, vector<1x128xf32>, vector<11x128xf32>, vector<1x128xf32>, vector<1x128xf32> -> vector<15x128xf32>
    %60 = vector.extract_strided_slice %59 {offsets = [4, 0], sizes = [11, 128], strides = [1, 1]} : vector<15x128xf32> to vector<11x128xf32>
    %61 = vector.extract_strided_slice %59 {offsets = [0, 0], sizes = [11, 128], strides = [1, 1]} : vector<15x128xf32> to vector<11x128xf32>
    %62 = arith.subf %60, %61 : vector<11x128xf32>
    %cst_24 = arith.constant 2.000000e+00 : f32
    %63 = vector.broadcast %cst_24 : f32 to vector<11x128xf32>
    %64 = arith.mulf %63, %62 : vector<11x128xf32>
    %65 = vector.extract_strided_slice %59 {offsets = [3, 0], sizes = [11, 128], strides = [1, 1]} : vector<15x128xf32> to vector<11x128xf32>
    %66 = vector.extract_strided_slice %59 {offsets = [1, 0], sizes = [11, 128], strides = [1, 1]} : vector<15x128xf32> to vector<11x128xf32>
    %67 = arith.subf %65, %66 : vector<11x128xf32>
    %68 = arith.addf %64, %67 : vector<11x128xf32>
    %cst_25 = arith.constant 1.000000e-01 : f32
    %69 = vector.broadcast %cst_25 : f32 to vector<11x128xf32>
    %70 = arith.mulf %68, %69 : vector<11x128xf32>
    %71 = tpu.iota {dimensions = array<i32: 1>} : vector<11x128xi32>
    %c20_i32 = arith.constant 20 : i32
    %72 = vector.broadcast %c20_i32 : i32 to vector<11x128xi32>
    %73 = arith.cmpi slt, %71, %72 : vector<11x128xi32>
    %c40_i32 = arith.constant 40 : i32
    %74 = vector.broadcast %c40_i32 : i32 to vector<11x128xi32>
    %75 = arith.cmpi slt, %71, %74 : vector<11x128xi32>
    %76 = arith.select %75, %54, %70 : vector<11x128xi1>, vector<11x128xf32>
    %77 = arith.select %73, %38, %76 : vector<11x128xi1>, vector<11x128xf32>
    %cst_26 = arith.constant 0.000000e+00 : f32
    %78 = vector.broadcast %cst_26 : f32 to vector<5x128xf32>
    %79 = tpu.concatenate %78, %77, %78 in 0 : vector<5x128xf32>, vector<11x128xf32>, vector<5x128xf32> -> vector<21x128xf32>
    %80 = vector.extract_strided_slice %79 {offsets = [0, 0], sizes = [11, 128], strides = [1, 1]} : vector<21x128xf32> to vector<11x128xf32>
    %c0_27 = arith.constant 0 : index
    %c0_28 = arith.constant 0 : index
    %c0_29 = arith.constant 0 : index
    %81 = vector.load %arg5[%c0_27, %c0_28, %c0_29] : memref<11x128x768xf32, #tpu.memory_space<vmem>>, vector<1x128x768xf32>
    %82 = vector.shape_cast %81 : vector<1x128x768xf32> to vector<128x768xf32>
    %cst_30 = arith.constant dense<0.000000e+00> : vector<11x768xf32>
    %83 = tpu.matmul %80, %82, %cst_30 {dimension_numbers = #tpu.dot_dimension_numbers<[1], [0], [0], [1], [0, 0, 1, 1], [], []>} : vector<11x128xf32>, vector<128x768xf32>, vector<11x768xf32> -> vector<11x768xf32>
    %c0_31 = arith.constant 0 : index
    %c0_32 = arith.constant 0 : index
    %c0_33 = arith.constant 0 : index
    %84 = vector.load %arg6[%c0_31, %c0_32, %c0_33] : memref<1x11x768xf32, #tpu.memory_space<vmem>>, vector<1x11x768xf32>
    %85 = vector.shape_cast %84 : vector<1x11x768xf32> to vector<11x768xf32>
    %86 = vector.shape_cast %83 : vector<11x768xf32> to vector<1x11x768xf32>
    tpu.vector_store %arg6[%c0_31, %c0_32, %c0_33], %86 {strides = array<i32>} : memref<1x11x768xf32, #tpu.memory_space<vmem>>, vector<1x11x768xf32>,
    %c0_34 = arith.constant 0 : index
    %c0_35 = arith.constant 0 : index
    %c0_36 = arith.constant 0 : index
    %87 = vector.load %arg6[%c0_34, %c0_35, %c0_36] : memref<1x11x768xf32, #tpu.memory_space<vmem>>, vector<1x11x768xf32>
    %88 = vector.shape_cast %87 : vector<1x11x768xf32> to vector<11x768xf32>
    %89 = vector.extract_strided_slice %79 {offsets = [1, 0], sizes = [11, 128], strides = [1, 1]} : vector<21x128xf32> to vector<11x128xf32>
    %c1_37 = arith.constant 1 : index
    %c0_38 = arith.constant 0 : index
    %c0_39 = arith.constant 0 : index
    %90 = vector.load %arg5[%c1_37, %c0_38, %c0_39] : memref<11x128x768xf32, #tpu.memory_space<vmem>>, vector<1x128x768xf32>
    %91 = vector.shape_cast %90 : vector<1x128x768xf32> to vector<128x768xf32>
    %cst_40 = arith.constant dense<0.000000e+00> : vector<11x768xf32>
    %92 = tpu.matmul %89, %91, %cst_40 {dimension_numbers = #tpu.dot_dimension_numbers<[1], [0], [0], [1], [0, 0, 1, 1], [], []>} : vector<11x128xf32>, vector<128x768xf32>, vector<11x768xf32> -> vector<11x768xf32>
    %93 = arith.addf %88, %92 : vector<11x768xf32>
    %c0_41 = arith.constant 0 : index
    %c0_42 = arith.constant 0 : index
    %c0_43 = arith.constant 0 : index
    %94 = vector.load %arg6[%c0_41, %c0_42, %c0_43] : memref<1x11x768xf32, #tpu.memory_space<vmem>>, vector<1x11x768xf32>
    %95 = vector.shape_cast %94 : vector<1x11x768xf32> to vector<11x768xf32>
    %96 = vector.shape_cast %93 : vector<11x768xf32> to vector<1x11x768xf32>
    tpu.vector_store %arg6[%c0_41, %c0_42, %c0_43], %96 {strides = array<i32>} : memref<1x11x768xf32, #tpu.memory_space<vmem>>, vector<1x11x768xf32>,
    %c0_44 = arith.constant 0 : index
    %c0_45 = arith.constant 0 : index
    %c0_46 = arith.constant 0 : index
    %97 = vector.load %arg6[%c0_44, %c0_45, %c0_46] : memref<1x11x768xf32, #tpu.memory_space<vmem>>, vector<1x11x768xf32>
    %98 = vector.shape_cast %97 : vector<1x11x768xf32> to vector<11x768xf32>
    %99 = vector.extract_strided_slice %79 {offsets = [2, 0], sizes = [11, 128], strides = [1, 1]} : vector<21x128xf32> to vector<11x128xf32>
    %c2_47 = arith.constant 2 : index
    %c0_48 = arith.constant 0 : index
    %c0_49 = arith.constant 0 : index
    %100 = vector.load %arg5[%c2_47, %c0_48, %c0_49] : memref<11x128x768xf32, #tpu.memory_space<vmem>>, vector<1x128x768xf32>
    %101 = vector.shape_cast %100 : vector<1x128x768xf32> to vector<128x768xf32>
    %cst_50 = arith.constant dense<0.000000e+00> : vector<11x768xf32>
    %102 = tpu.matmul %99, %101, %cst_50 {dimension_numbers = #tpu.dot_dimension_numbers<[1], [0], [0], [1], [0, 0, 1, 1], [], []>} : vector<11x128xf32>, vector<128x768xf32>, vector<11x768xf32> -> vector<11x768xf32>
    %103 = arith.addf %98, %102 : vector<11x768xf32>
    %c0_51 = arith.constant 0 : index
    %c0_52 = arith.constant 0 : index
    %c0_53 = arith.constant 0 : index
    %104 = vector.load %arg6[%c0_51, %c0_52, %c0_53] : memref<1x11x768xf32, #tpu.memory_space<vmem>>, vector<1x11x768xf32>
    %105 = vector.shape_cast %104 : vector<1x11x768xf32> to vector<11x768xf32>
    %106 = vector.shape_cast %103 : vector<11x768xf32> to vector<1x11x768xf32>
    tpu.vector_store %arg6[%c0_51, %c0_52, %c0_53], %106 {strides = array<i32>} : memref<1x11x768xf32, #tpu.memory_space<vmem>>, vector<1x11x768xf32>,
    %c0_54 = arith.constant 0 : index
    %c0_55 = arith.constant 0 : index
    %c0_56 = arith.constant 0 : index
    %107 = vector.load %arg6[%c0_54, %c0_55, %c0_56] : memref<1x11x768xf32, #tpu.memory_space<vmem>>, vector<1x11x768xf32>
    %108 = vector.shape_cast %107 : vector<1x11x768xf32> to vector<11x768xf32>
    %109 = vector.extract_strided_slice %79 {offsets = [3, 0], sizes = [11, 128], strides = [1, 1]} : vector<21x128xf32> to vector<11x128xf32>
    %c3 = arith.constant 3 : index
    %c0_57 = arith.constant 0 : index
    %c0_58 = arith.constant 0 : index
    %110 = vector.load %arg5[%c3, %c0_57, %c0_58] : memref<11x128x768xf32, #tpu.memory_space<vmem>>, vector<1x128x768xf32>
    %111 = vector.shape_cast %110 : vector<1x128x768xf32> to vector<128x768xf32>
    %cst_59 = arith.constant dense<0.000000e+00> : vector<11x768xf32>
    %112 = tpu.matmul %109, %111, %cst_59 {dimension_numbers = #tpu.dot_dimension_numbers<[1], [0], [0], [1], [0, 0, 1, 1], [], []>} : vector<11x128xf32>, vector<128x768xf32>, vector<11x768xf32> -> vector<11x768xf32>
    %113 = arith.addf %108, %112 : vector<11x768xf32>
    %c0_60 = arith.constant 0 : index
    %c0_61 = arith.constant 0 : index
    %c0_62 = arith.constant 0 : index
    %114 = vector.load %arg6[%c0_60, %c0_61, %c0_62] : memref<1x11x768xf32, #tpu.memory_space<vmem>>, vector<1x11x768xf32>
    %115 = vector.shape_cast %114 : vector<1x11x768xf32> to vector<11x768xf32>
    %116 = vector.shape_cast %113 : vector<11x768xf32> to vector<1x11x768xf32>
    tpu.vector_store %arg6[%c0_60, %c0_61, %c0_62], %116 {strides = array<i32>} : memref<1x11x768xf32, #tpu.memory_space<vmem>>, vector<1x11x768xf32>,
    %c0_63 = arith.constant 0 : index
    %c0_64 = arith.constant 0 : index
    %c0_65 = arith.constant 0 : index
    %117 = vector.load %arg6[%c0_63, %c0_64, %c0_65] : memref<1x11x768xf32, #tpu.memory_space<vmem>>, vector<1x11x768xf32>
    %118 = vector.shape_cast %117 : vector<1x11x768xf32> to vector<11x768xf32>
    %119 = vector.extract_strided_slice %79 {offsets = [4, 0], sizes = [11, 128], strides = [1, 1]} : vector<21x128xf32> to vector<11x128xf32>
    %c4 = arith.constant 4 : index
    %c0_66 = arith.constant 0 : index
    %c0_67 = arith.constant 0 : index
    %120 = vector.load %arg5[%c4, %c0_66, %c0_67] : memref<11x128x768xf32, #tpu.memory_space<vmem>>, vector<1x128x768xf32>
    %121 = vector.shape_cast %120 : vector<1x128x768xf32> to vector<128x768xf32>
    %cst_68 = arith.constant dense<0.000000e+00> : vector<11x768xf32>
    %122 = tpu.matmul %119, %121, %cst_68 {dimension_numbers = #tpu.dot_dimension_numbers<[1], [0], [0], [1], [0, 0, 1, 1], [], []>} : vector<11x128xf32>, vector<128x768xf32>, vector<11x768xf32> -> vector<11x768xf32>
    %123 = arith.addf %118, %122 : vector<11x768xf32>
    %c0_69 = arith.constant 0 : index
    %c0_70 = arith.constant 0 : index
    %c0_71 = arith.constant 0 : index
    %124 = vector.load %arg6[%c0_69, %c0_70, %c0_71] : memref<1x11x768xf32, #tpu.memory_space<vmem>>, vector<1x11x768xf32>
    %125 = vector.shape_cast %124 : vector<1x11x768xf32> to vector<11x768xf32>
    %126 = vector.shape_cast %123 : vector<11x768xf32> to vector<1x11x768xf32>
    tpu.vector_store %arg6[%c0_69, %c0_70, %c0_71], %126 {strides = array<i32>} : memref<1x11x768xf32, #tpu.memory_space<vmem>>, vector<1x11x768xf32>,
    %c0_72 = arith.constant 0 : index
    %c0_73 = arith.constant 0 : index
    %c0_74 = arith.constant 0 : index
    %127 = vector.load %arg6[%c0_72, %c0_73, %c0_74] : memref<1x11x768xf32, #tpu.memory_space<vmem>>, vector<1x11x768xf32>
    %128 = vector.shape_cast %127 : vector<1x11x768xf32> to vector<11x768xf32>
    %129 = vector.extract_strided_slice %79 {offsets = [5, 0], sizes = [11, 128], strides = [1, 1]} : vector<21x128xf32> to vector<11x128xf32>
    %c5 = arith.constant 5 : index
    %c0_75 = arith.constant 0 : index
    %c0_76 = arith.constant 0 : index
    %130 = vector.load %arg5[%c5, %c0_75, %c0_76] : memref<11x128x768xf32, #tpu.memory_space<vmem>>, vector<1x128x768xf32>
    %131 = vector.shape_cast %130 : vector<1x128x768xf32> to vector<128x768xf32>
    %cst_77 = arith.constant dense<0.000000e+00> : vector<11x768xf32>
    %132 = tpu.matmul %129, %131, %cst_77 {dimension_numbers = #tpu.dot_dimension_numbers<[1], [0], [0], [1], [0, 0, 1, 1], [], []>} : vector<11x128xf32>, vector<128x768xf32>, vector<11x768xf32> -> vector<11x768xf32>
    %133 = arith.addf %128, %132 : vector<11x768xf32>
    %c0_78 = arith.constant 0 : index
    %c0_79 = arith.constant 0 : index
    %c0_80 = arith.constant 0 : index
    %134 = vector.load %arg6[%c0_78, %c0_79, %c0_80] : memref<1x11x768xf32, #tpu.memory_space<vmem>>, vector<1x11x768xf32>
    %135 = vector.shape_cast %134 : vector<1x11x768xf32> to vector<11x768xf32>
    %136 = vector.shape_cast %133 : vector<11x768xf32> to vector<1x11x768xf32>
    tpu.vector_store %arg6[%c0_78, %c0_79, %c0_80], %136 {strides = array<i32>} : memref<1x11x768xf32, #tpu.memory_space<vmem>>, vector<1x11x768xf32>,
    %c0_81 = arith.constant 0 : index
    %c0_82 = arith.constant 0 : index
    %c0_83 = arith.constant 0 : index
    %137 = vector.load %arg6[%c0_81, %c0_82, %c0_83] : memref<1x11x768xf32, #tpu.memory_space<vmem>>, vector<1x11x768xf32>
    %138 = vector.shape_cast %137 : vector<1x11x768xf32> to vector<11x768xf32>
    %139 = vector.extract_strided_slice %79 {offsets = [6, 0], sizes = [11, 128], strides = [1, 1]} : vector<21x128xf32> to vector<11x128xf32>
    %c6 = arith.constant 6 : index
    %c0_84 = arith.constant 0 : index
    %c0_85 = arith.constant 0 : index
    %140 = vector.load %arg5[%c6, %c0_84, %c0_85] : memref<11x128x768xf32, #tpu.memory_space<vmem>>, vector<1x128x768xf32>
    %141 = vector.shape_cast %140 : vector<1x128x768xf32> to vector<128x768xf32>
    %cst_86 = arith.constant dense<0.000000e+00> : vector<11x768xf32>
    %142 = tpu.matmul %139, %141, %cst_86 {dimension_numbers = #tpu.dot_dimension_numbers<[1], [0], [0], [1], [0, 0, 1, 1], [], []>} : vector<11x128xf32>, vector<128x768xf32>, vector<11x768xf32> -> vector<11x768xf32>
    %143 = arith.addf %138, %142 : vector<11x768xf32>
    %c0_87 = arith.constant 0 : index
    %c0_88 = arith.constant 0 : index
    %c0_89 = arith.constant 0 : index
    %144 = vector.load %arg6[%c0_87, %c0_88, %c0_89] : memref<1x11x768xf32, #tpu.memory_space<vmem>>, vector<1x11x768xf32>
    %145 = vector.shape_cast %144 : vector<1x11x768xf32> to vector<11x768xf32>
    %146 = vector.shape_cast %143 : vector<11x768xf32> to vector<1x11x768xf32>
    tpu.vector_store %arg6[%c0_87, %c0_88, %c0_89], %146 {strides = array<i32>} : memref<1x11x768xf32, #tpu.memory_space<vmem>>, vector<1x11x768xf32>,
    %c0_90 = arith.constant 0 : index
    %c0_91 = arith.constant 0 : index
    %c0_92 = arith.constant 0 : index
    %147 = vector.load %arg6[%c0_90, %c0_91, %c0_92] : memref<1x11x768xf32, #tpu.memory_space<vmem>>, vector<1x11x768xf32>
    %148 = vector.shape_cast %147 : vector<1x11x768xf32> to vector<11x768xf32>
    %149 = vector.extract_strided_slice %79 {offsets = [7, 0], sizes = [11, 128], strides = [1, 1]} : vector<21x128xf32> to vector<11x128xf32>
    %c7 = arith.constant 7 : index
    %c0_93 = arith.constant 0 : index
    %c0_94 = arith.constant 0 : index
    %150 = vector.load %arg5[%c7, %c0_93, %c0_94] : memref<11x128x768xf32, #tpu.memory_space<vmem>>, vector<1x128x768xf32>
    %151 = vector.shape_cast %150 : vector<1x128x768xf32> to vector<128x768xf32>
    %cst_95 = arith.constant dense<0.000000e+00> : vector<11x768xf32>
    %152 = tpu.matmul %149, %151, %cst_95 {dimension_numbers = #tpu.dot_dimension_numbers<[1], [0], [0], [1], [0, 0, 1, 1], [], []>} : vector<11x128xf32>, vector<128x768xf32>, vector<11x768xf32> -> vector<11x768xf32>
    %153 = arith.addf %148, %152 : vector<11x768xf32>
    %c0_96 = arith.constant 0 : index
    %c0_97 = arith.constant 0 : index
    %c0_98 = arith.constant 0 : index
    %154 = vector.load %arg6[%c0_96, %c0_97, %c0_98] : memref<1x11x768xf32, #tpu.memory_space<vmem>>, vector<1x11x768xf32>
    %155 = vector.shape_cast %154 : vector<1x11x768xf32> to vector<11x768xf32>
    %156 = vector.shape_cast %153 : vector<11x768xf32> to vector<1x11x768xf32>
    tpu.vector_store %arg6[%c0_96, %c0_97, %c0_98], %156 {strides = array<i32>} : memref<1x11x768xf32, #tpu.memory_space<vmem>>, vector<1x11x768xf32>,
    %c0_99 = arith.constant 0 : index
    %c0_100 = arith.constant 0 : index
    %c0_101 = arith.constant 0 : index
    %157 = vector.load %arg6[%c0_99, %c0_100, %c0_101] : memref<1x11x768xf32, #tpu.memory_space<vmem>>, vector<1x11x768xf32>
    %158 = vector.shape_cast %157 : vector<1x11x768xf32> to vector<11x768xf32>
    %159 = vector.extract_strided_slice %79 {offsets = [8, 0], sizes = [11, 128], strides = [1, 1]} : vector<21x128xf32> to vector<11x128xf32>
    %c8 = arith.constant 8 : index
    %c0_102 = arith.constant 0 : index
    %c0_103 = arith.constant 0 : index
    %160 = vector.load %arg5[%c8, %c0_102, %c0_103] : memref<11x128x768xf32, #tpu.memory_space<vmem>>, vector<1x128x768xf32>
    %161 = vector.shape_cast %160 : vector<1x128x768xf32> to vector<128x768xf32>
    %cst_104 = arith.constant dense<0.000000e+00> : vector<11x768xf32>
    %162 = tpu.matmul %159, %161, %cst_104 {dimension_numbers = #tpu.dot_dimension_numbers<[1], [0], [0], [1], [0, 0, 1, 1], [], []>} : vector<11x128xf32>, vector<128x768xf32>, vector<11x768xf32> -> vector<11x768xf32>
    %163 = arith.addf %158, %162 : vector<11x768xf32>
    %c0_105 = arith.constant 0 : index
    %c0_106 = arith.constant 0 : index
    %c0_107 = arith.constant 0 : index
    %164 = vector.load %arg6[%c0_105, %c0_106, %c0_107] : memref<1x11x768xf32, #tpu.memory_space<vmem>>, vector<1x11x768xf32>
    %165 = vector.shape_cast %164 : vector<1x11x768xf32> to vector<11x768xf32>
    %166 = vector.shape_cast %163 : vector<11x768xf32> to vector<1x11x768xf32>
    tpu.vector_store %arg6[%c0_105, %c0_106, %c0_107], %166 {strides = array<i32>} : memref<1x11x768xf32, #tpu.memory_space<vmem>>, vector<1x11x768xf32>,
    %c0_108 = arith.constant 0 : index
    %c0_109 = arith.constant 0 : index
    %c0_110 = arith.constant 0 : index
    %167 = vector.load %arg6[%c0_108, %c0_109, %c0_110] : memref<1x11x768xf32, #tpu.memory_space<vmem>>, vector<1x11x768xf32>
    %168 = vector.shape_cast %167 : vector<1x11x768xf32> to vector<11x768xf32>
    %169 = vector.extract_strided_slice %79 {offsets = [9, 0], sizes = [11, 128], strides = [1, 1]} : vector<21x128xf32> to vector<11x128xf32>
    %c9 = arith.constant 9 : index
    %c0_111 = arith.constant 0 : index
    %c0_112 = arith.constant 0 : index
    %170 = vector.load %arg5[%c9, %c0_111, %c0_112] : memref<11x128x768xf32, #tpu.memory_space<vmem>>, vector<1x128x768xf32>
    %171 = vector.shape_cast %170 : vector<1x128x768xf32> to vector<128x768xf32>
    %cst_113 = arith.constant dense<0.000000e+00> : vector<11x768xf32>
    %172 = tpu.matmul %169, %171, %cst_113 {dimension_numbers = #tpu.dot_dimension_numbers<[1], [0], [0], [1], [0, 0, 1, 1], [], []>} : vector<11x128xf32>, vector<128x768xf32>, vector<11x768xf32> -> vector<11x768xf32>
    %173 = arith.addf %168, %172 : vector<11x768xf32>
    %c0_114 = arith.constant 0 : index
    %c0_115 = arith.constant 0 : index
    %c0_116 = arith.constant 0 : index
    %174 = vector.load %arg6[%c0_114, %c0_115, %c0_116] : memref<1x11x768xf32, #tpu.memory_space<vmem>>, vector<1x11x768xf32>
    %175 = vector.shape_cast %174 : vector<1x11x768xf32> to vector<11x768xf32>
    %176 = vector.shape_cast %173 : vector<11x768xf32> to vector<1x11x768xf32>
    tpu.vector_store %arg6[%c0_114, %c0_115, %c0_116], %176 {strides = array<i32>} : memref<1x11x768xf32, #tpu.memory_space<vmem>>, vector<1x11x768xf32>,
    %c0_117 = arith.constant 0 : index
    %c0_118 = arith.constant 0 : index
    %c0_119 = arith.constant 0 : index
    %177 = vector.load %arg6[%c0_117, %c0_118, %c0_119] : memref<1x11x768xf32, #tpu.memory_space<vmem>>, vector<1x11x768xf32>
    %178 = vector.shape_cast %177 : vector<1x11x768xf32> to vector<11x768xf32>
    %179 = vector.extract_strided_slice %79 {offsets = [10, 0], sizes = [11, 128], strides = [1, 1]} : vector<21x128xf32> to vector<11x128xf32>
    %c10 = arith.constant 10 : index
    %c0_120 = arith.constant 0 : index
    %c0_121 = arith.constant 0 : index
    %180 = vector.load %arg5[%c10, %c0_120, %c0_121] : memref<11x128x768xf32, #tpu.memory_space<vmem>>, vector<1x128x768xf32>
    %181 = vector.shape_cast %180 : vector<1x128x768xf32> to vector<128x768xf32>
    %cst_122 = arith.constant dense<0.000000e+00> : vector<11x768xf32>
    %182 = tpu.matmul %179, %181, %cst_122 {dimension_numbers = #tpu.dot_dimension_numbers<[1], [0], [0], [1], [0, 0, 1, 1], [], []>} : vector<11x128xf32>, vector<128x768xf32>, vector<11x768xf32> -> vector<11x768xf32>
    %183 = arith.addf %178, %182 : vector<11x768xf32>
    %c0_123 = arith.constant 0 : index
    %c0_124 = arith.constant 0 : index
    %c0_125 = arith.constant 0 : index
    %184 = vector.load %arg6[%c0_123, %c0_124, %c0_125] : memref<1x11x768xf32, #tpu.memory_space<vmem>>, vector<1x11x768xf32>
    %185 = vector.shape_cast %184 : vector<1x11x768xf32> to vector<11x768xf32>
    %186 = vector.shape_cast %183 : vector<11x768xf32> to vector<1x11x768xf32>
    tpu.vector_store %arg6[%c0_123, %c0_124, %c0_125], %186 {strides = array<i32>} : memref<1x11x768xf32, #tpu.memory_space<vmem>>, vector<1x11x768xf32>,
    return
  }
  func.func @transform_0(%arg0: i32) -> (i32, i32, i32) {
    %c0_i32 = arith.constant 0 : i32
    %c0_i32_0 = arith.constant 0 : i32
    %c0_i32_1 = arith.constant 0 : i32
    return %arg0, %c0_i32, %c0_i32_0 : i32, i32, i32
  }
  func.func @transform_1(%arg0: i32) -> (i32, i32, i32) {
    %c0_i32 = arith.constant 0 : i32
    %c0_i32_0 = arith.constant 0 : i32
    %c0_i32_1 = arith.constant 0 : i32
    %c0_i32_2 = arith.constant 0 : i32
    return %c0_i32, %c0_i32_0, %c0_i32_1 : i32, i32, i32
  }
  func.func @transform_2(%arg0: i32) -> (i32, i32) {
    %c0_i32 = arith.constant 0 : i32
    %c0_i32_0 = arith.constant 0 : i32
    %c0_i32_1 = arith.constant 0 : i32
    return %c0_i32, %c0_i32_0 : i32, i32
  }
  func.func @transform_3(%arg0: i32) -> (i32, i32) {
    %c0_i32 = arith.constant 0 : i32
    %c0_i32_0 = arith.constant 0 : i32
    %c0_i32_1 = arith.constant 0 : i32
    return %c0_i32, %c0_i32_0 : i32, i32
  }
  func.func @transform_4(%arg0: i32) -> (i32, i32, i32) {
    %c0_i32 = arith.constant 0 : i32
    %c0_i32_0 = arith.constant 0 : i32
    %c0_i32_1 = arith.constant 0 : i32
    %c0_i32_2 = arith.constant 0 : i32
    return %c0_i32, %c0_i32_0, %c0_i32_1 : i32, i32, i32
  }
  func.func @transform_5(%arg0: i32) -> (i32, i32, i32) {
    %c0_i32 = arith.constant 0 : i32
    %c0_i32_0 = arith.constant 0 : i32
    %c0_i32_1 = arith.constant 0 : i32
    return %arg0, %c0_i32, %c0_i32_0 : i32, i32, i32
  }
}

</mosaic_0001>

<llo_original>
// kernel: tpu_custom_call.1
$region0: #{tpu_custom_call.1}
  #allocation0 [shape = 'u32[]', space=smem, size = 0x4, offset = 0x4, fixed_abs, tag = 'smem constant byte address 0x4 - core index']
  #allocation1 [shape = 'u32[72,128]{1,0:T(1,128)}', space=vmem, size = 0x9000, scoped, tag = 'internal scratch']
  %s0 = inlined_call_operand.vmem [shape: f32[2,13,160], index: 0, kind: input, shape index: {}]
  %s1 = inlined_call_operand.hbm [shape: f32[3,160,512], index: 1, kind: input, shape index: {}]
  %s2 = inlined_call_operand.hbm [shape: f32[256,128], index: 2, kind: input, shape index: {}]
  %s3 = inlined_call_operand.hbm [shape: f32[128,128], index: 3, kind: input, shape index: {}]
  %s4 = inlined_call_operand.hbm [shape: f32[11,128,768], index: 4, kind: input, shape index: {}]
  %s5 = inlined_call_operand.vmem [shape: f32[2,11,768], index: 5, kind: output, shape index: {}]
  %s6 = sld [smem:[#allocation0]]
  $region69: #{tpu_custom_call.1} parent=0
    _
  %s8 = ssub.s32 1, %s6
  %s9 = scalar_select 0, %s8, %s6
  $region1: #{tpu_custom_call.1} parent=0
    #allocation2 [shape = 'u8[983040]{0}', space=vmem, size = 0xf0000, scoped, tag = 'input window, operand 1, single buffered']
    #allocation3 [shape = 's32[2]{0}', space=sflag, size = 0x8, scoped, tag = 'scoped memory for tpu_custom_call.1']
    #allocation4 [shape = 'u8[131072]{0}', space=vmem, size = 0x20000, scoped, tag = 'input window, operand 2, single buffered']
    #allocation5 [shape = 's32[1]{0}', space=sflag, size = 0x4, scoped, tag = 'scoped memory for tpu_custom_call.1']
    #allocation6 [shape = 'u8[65536]{0}', space=vmem, size = 0x10000, scoped, tag = 'input window, operand 3, single buffered']
    #allocation7 [shape = 'u8[4325376]{0}', space=vmem, size = 0x420000, scoped, tag = 'input window, operand 4, single buffered']
    #allocation8 [shape = 's32[1]{0}', space=sflag, size = 0x4, scoped, tag = 'scoped memory for tpu_custom_call.1']
    %10 = vsyncpa [#allocation3], 0
    %11 = vsyncpa [#allocation5], 0
    %12 = vsyncpa [#allocation8], 0
    loop: start=0, step=1, limit=4
    $region2: #{tpu_custom_call.1} parent=1 // loop_pre_header
      _
    $region3: #{tpu_custom_call.1} parent=1 // loop_header
      %s14 = sphi 0, %s18
      %p15 = scmp.ge.s32.totalorder %s14, 4
      %s24 = sphi 0, %s26
      %s27 = sphi 0, %s24
      %s28 = sphi 0, %s27
      %s44 = sphi 0, %s28
      %s48 = sphi 0, %s48
      %s50 = sphi 0, %s48
      %s51 = sphi 0, %s50
      %s65 = sphi 0, %s51
      %s69 = sphi 0, %s69
      %s71 = sphi 0, %s69
      %s72 = sphi 0, %s71
      %s86 = sphi 0, %s72
      %s90 = sphi 0, %s90
      %s92 = sphi 0, %s90
      %s93 = sphi 0, %s92
      %s107 = sphi 0, %s93
      %s111 = sphi 0, %s111
      %s113 = sphi 0, %s111
      %s114 = sphi 0, %s113
      %s128 = sphi 0, %s114
      %s134 = sphi 0, %s136
      %s137 = sphi 0, %s134
      %s138 = sphi 0, %s137
      %s154 = sphi 0, %s138
    $region4: #{tpu_custom_call.1} parent=1 // loop_header_branch
      %17 = sbr.rel (%p15) target = $region8
    $region5: #{tpu_custom_call.1} parent=1 // loop_body
      %s19 = ssub.s32 %s14, 1
      %s20 = ssub.s32 %s14, 2
      %s21 = sadd.s32 %s14, 1
      %s22 = ssub.s32 %s14, %s21
      %p23 = scmp.eq.s32.totalorder %s22, 0
      %s25 = sadd.s32 %s24, 1
      %s26 = scalar_select %p23, %s24, %s25
      %p29 = pneg %p23
      %p30 = scmp.eq.s32.totalorder %s14, 1
      %p31 = por %p29, %p30
      %p32 = scmp.ne.s32.totalorder %s24, %s27
      %p33 = scmp.eq.s32.totalorder %s14, 0
      %p34 = por %p32, %p33
      %p35 = scmp.ne.s32.totalorder %s24, %s27
      %p36 = scmp.eq.s32.totalorder %s19, 1
      %p37 = por %p35, %p36
      %p38 = scmp.ne.s32.totalorder %s27, %s28
      %p39 = scmp.eq.s32.totalorder %s19, 0
      %p40 = por %p38, %p39
      %p41 = scmp.ne.s32.totalorder %s27, %s28
      %p42 = scmp.eq.s32.totalorder %s20, 1
      %p43 = por %p41, %p42
      %p45 = scmp.ne.s32.totalorder %s28, %s44
      %p46 = scmp.eq.s32.totalorder %s20, 0
      %p47 = por %p45, %p46
      %s49 = sadd.s32 %s48, 1
      %p52 = scmp.eq.s32.totalorder %s14, 1
      %p53 = scmp.ne.s32.totalorder %s48, %s50
      %p54 = scmp.eq.s32.totalorder %s14, 0
      %p55 = por %p53, %p54
      %p56 = scmp.ne.s32.totalorder %s48, %s50
      %p57 = scmp.eq.s32.totalorder %s19, 1
      %p58 = por %p56, %p57
      %p59 = scmp.ne.s32.totalorder %s50, %s51
      %p60 = scmp.eq.s32.totalorder %s19, 0
      %p61 = por %p59, %p60
      %p62 = scmp.ne.s32.totalorder %s50, %s51
      %p63 = scmp.eq.s32.totalorder %s20, 1
      %p64 = por %p62, %p63
      %p66 = scmp.ne.s32.totalorder %s51, %s65
      %p67 = scmp.eq.s32.totalorder %s20, 0
      %p68 = por %p66, %p67
      %s70 = sadd.s32 %s69, 1
      %p73 = scmp.eq.s32.totalorder %s14, 1
      %p74 = scmp.ne.s32.totalorder %s69, %s71
      %p75 = scmp.eq.s32.totalorder %s14, 0
      %p76 = por %p74, %p75
      %p77 = scmp.ne.s32.totalorder %s69, %s71
      %p78 = scmp.eq.s32.totalorder %s19, 1
      %p79 = por %p77, %p78
      %p80 = scmp.ne.s32.totalorder %s71, %s72
      %p81 = scmp.eq.s32.totalorder %s19, 0
      %p82 = por %p80, %p81
      %p83 = scmp.ne.s32.totalorder %s71, %s72
      %p84 = scmp.eq.s32.totalorder %s20, 1
      %p85 = por %p83, %p84
      %p87 = scmp.ne.s32.totalorder %s72, %s86
      %p88 = scmp.eq.s32.totalorder %s20, 0
      %p89 = por %p87, %p88
      %s91 = sadd.s32 %s90, 1
      %p94 = scmp.eq.s32.totalorder %s14, 1
      %p95 = scmp.ne.s32.totalorder %s90, %s92
      %p96 = scmp.eq.s32.totalorder %s14, 0
      %p97 = por %p95, %p96
      %p98 = scmp.ne.s32.totalorder %s90, %s92
      %p99 = scmp.eq.s32.totalorder %s19, 1
      %p100 = por %p98, %p99
      %p101 = scmp.ne.s32.totalorder %s92, %s93
      %p102 = scmp.eq.s32.totalorder %s19, 0
      %p103 = por %p101, %p102
      %p104 = scmp.ne.s32.totalorder %s92, %s93
      %p105 = scmp.eq.s32.totalorder %s20, 1
      %p106 = por %p104, %p105
      %p108 = scmp.ne.s32.totalorder %s93, %s107
      %p109 = scmp.eq.s32.totalorder %s20, 0
      %p110 = por %p108, %p109
      %s112 = sadd.s32 %s111, 1
      %p115 = scmp.eq.s32.totalorder %s14, 1
      %p116 = scmp.ne.s32.totalorder %s111, %s113
      %p117 = scmp.eq.s32.totalorder %s14, 0
      %p118 = por %p116, %p117
      %p119 = scmp.ne.s32.totalorder %s111, %s113
      %p120 = scmp.eq.s32.totalorder %s19, 1
      %p121 = por %p119, %p120
      %p122 = scmp.ne.s32.totalorder %s113, %s114
      %p123 = scmp.eq.s32.totalorder %s19, 0
      %p124 = por %p122, %p123
      %p125 = scmp.ne.s32.totalorder %s113, %s114
      %p126 = scmp.eq.s32.totalorder %s20, 1
      %p127 = por %p125, %p126
      %p129 = scmp.ne.s32.totalorder %s114, %s128
      %p130 = scmp.eq.s32.totalorder %s20, 0
      %p131 = por %p129, %p130
      %s132 = ssub.s32 %s14, %s21
      %p133 = scmp.eq.s32.totalorder %s132, 0
      %s135 = sadd.s32 %s134, 1
      %s136 = scalar_select %p133, %s134, %s135
      %p139 = pneg %p133
      %p140 = scmp.eq.s32.totalorder %s14, 1
      %p141 = por %p139, %p140
      %p142 = scmp.ne.s32.totalorder %s134, %s137
      %p143 = scmp.eq.s32.totalorder %s14, 0
      %p144 = por %p142, %p143
      %p145 = scmp.ne.s32.totalorder %s134, %s137
      %p146 = scmp.eq.s32.totalorder %s19, 1
      %p147 = por %p145, %p146
      %p148 = scmp.ne.s32.totalorder %s137, %s138
      %p149 = scmp.eq.s32.totalorder %s19, 0
      %p150 = por %p148, %p149
      %p151 = scmp.ne.s32.totalorder %s137, %s138
      %p152 = scmp.eq.s32.totalorder %s20, 1
      %p153 = por %p151, %p152
      %p155 = scmp.ne.s32.totalorder %s138, %s154
      %p156 = scmp.eq.s32.totalorder %s20, 0
      %p157 = por %p155, %p156
      %p158 = scmp.le.s32.totalorder 1, %s14
      %p159 = scmp.lt.s32.totalorder %s14, 3
      %p160 = pnand %p158, %p159
      %p161 = pneg %p160
      // Predicated region
      $region9: #{tpu_custom_call.1} parent=5 // pred_check
        _
      $region10: #{tpu_custom_call.1} parent=5 // pred_check_branch
        %163 = sbr.rel (%p160) target = $region12
      $region11: #{tpu_custom_call.1} parent=5 // pred_region
        %s164 = ssub.s32 %s14, 1
        // Predicated region
        $region13: #{tpu_custom_call.1} parent=11 // pred_check
          %p165 = pneg %p61
        $region14: #{tpu_custom_call.1} parent=11 // pred_check_branch
          %167 = sbr.rel (%p165) target = $region16
        $region15: #{tpu_custom_call.1} parent=11 // pred_region
          %169 = vsyncadd [#allocation3], 0
          %s170 = sshll.u32 %s1, 4
          %s171 = int_to_ptr.hbm [resolvable:$true] %s170
          %s172 = sshll.u32 [#allocation2], 4
          %s173 = int_to_ptr.vmem [resolvable:$true] %s172
          %178 = dma.hbm_to_vmem [thread:$0]  %s171, 30720, %s173, [#allocation3], 512, 512, 32
        $region16: #{tpu_custom_call.1} parent=11 // pred_fallthru
          _
        // Predicated region
        $region17: #{tpu_custom_call.1} parent=11 // pred_check
          %p179 = pneg %p82
        $region18: #{tpu_custom_call.1} parent=11 // pred_check_branch
          %181 = sbr.rel (%p179) target = $region20
        $region19: #{tpu_custom_call.1} parent=11 // pred_region
          %183 = vsyncadd [#allocation5], 0
          %s184 = sshll.u32 %s2, 4
          %s185 = int_to_ptr.hbm [resolvable:$true] %s184
          %s186 = sshll.u32 [#allocation4], 4
          %s187 = int_to_ptr.vmem [resolvable:$true] %s186
          %192 = dma.hbm_to_vmem [thread:$0]  %s185, 4096, %s187, [#allocation5], 128, 128, 8
        $region20: #{tpu_custom_call.1} parent=11 // pred_fallthru
          _
        // Predicated region
        $region21: #{tpu_custom_call.1} parent=11 // pred_check
          %p193 = pneg %p103
        $region22: #{tpu_custom_call.1} parent=11 // pred_check_branch
          %195 = sbr.rel (%p193) target = $region24
        $region23: #{tpu_custom_call.1} parent=11 // pred_region
          %197 = vsyncadd [#allocation5], 0
          %s198 = sshll.u32 %s3, 4
          %s199 = int_to_ptr.hbm [resolvable:$true] %s198
          %s200 = sshll.u32 [#allocation6], 4
          %s201 = int_to_ptr.vmem [resolvable:$true] %s200
          %206 = dma.hbm_to_vmem [thread:$0]  %s199, 2048, %s201, [#allocation5], 128, 128, 8
        $region24: #{tpu_custom_call.1} parent=11 // pred_fallthru
          _
        // Predicated region
        $region25: #{tpu_custom_call.1} parent=11 // pred_check
          %p207 = pneg %p124
        $region26: #{tpu_custom_call.1} parent=11 // pred_check_branch
          %209 = sbr.rel (%p207) target = $region28
        $region27: #{tpu_custom_call.1} parent=11 // pred_region
          %211 = vsyncadd [#allocation8], 0
          %s212 = sshll.u32 %s4, 4
          %s213 = int_to_ptr.hbm [resolvable:$true] %s212
          %s214 = sshll.u32 [#allocation7], 4
          %s215 = int_to_ptr.vmem [resolvable:$true] %s214
          %220 = dma.hbm_to_vmem [thread:$0]  %s213, 135168, %s215, [#allocation8], 768, 768, 48
        $region28: #{tpu_custom_call.1} parent=11 // pred_fallthru
          _
      $region12: #{tpu_custom_call.1} parent=5 // pred_fallthru
        _
      %p221 = scmp.lt.s32.totalorder %s14, 2
      // Predicated region
      $region29: #{tpu_custom_call.1} parent=5 // pred_check
        %p222 = pneg %p221
      $region30: #{tpu_custom_call.1} parent=5 // pred_check_branch
        %224 = sbr.rel (%p222) target = $region32
      $region31: #{tpu_custom_call.1} parent=5 // pred_region
        // Predicated region
        $region33: #{tpu_custom_call.1} parent=31 // pred_check
          %p225 = pneg %p34
        $region34: #{tpu_custom_call.1} parent=31 // pred_check_branch
          %227 = sbr.rel (%p225) target = $region36
        $region35: #{tpu_custom_call.1} parent=31 // pred_region
          %p228 = scmp.lt.s32.totalorder %s14, 1
          %s229 = scalar_select %p228, %s14, 1
          %s230 = smul.addr %s229, 4
          %s231 = smul.addr %s230, 8
          %s232 = scalar_lea.vmem %s0, %s231
        $region36: #{tpu_custom_call.1} parent=31 // pred_fallthru
          _
      $region32: #{tpu_custom_call.1} parent=5 // pred_fallthru
        _
      %p233 = scmp.le.s32.totalorder 1, %s14
      %p234 = scmp.lt.s32.totalorder %s14, 3
      %p235 = pnand %p233, %p234
      %p236 = pneg %p235
      // Predicated region
      $region37: #{tpu_custom_call.1} parent=5 // pred_check
        _
      $region38: #{tpu_custom_call.1} parent=5 // pred_check_branch
        %238 = sbr.rel (%p235) target = $region40
      $region39: #{tpu_custom_call.1} parent=5 // pred_region
        %s239 = ssub.s32 %s14, 1
        // Predicated region
        $region41: #{tpu_custom_call.1} parent=39 // pred_check
          %p240 = pneg %p61
        $region42: #{tpu_custom_call.1} parent=39 // pred_check_branch
          %242 = sbr.rel (%p240) target = $region44
        $region43: #{tpu_custom_call.1} parent=39 // pred_region
          %244 = dma.done [#allocation3], 30720
        $region44: #{tpu_custom_call.1} parent=39 // pred_fallthru
          _
        // Predicated region
        $region45: #{tpu_custom_call.1} parent=39 // pred_check
          %p245 = pneg %p82
        $region46: #{tpu_custom_call.1} parent=39 // pred_check_branch
          %247 = sbr.rel (%p245) target = $region48
        $region47: #{tpu_custom_call.1} parent=39 // pred_region
          %249 = dma.done [#allocation5], 4096
        $region48: #{tpu_custom_call.1} parent=39 // pred_fallthru
          _
        // Predicated region
        $region49: #{tpu_custom_call.1} parent=39 // pred_check
          %p250 = pneg %p103
        $region50: #{tpu_custom_call.1} parent=39 // pred_check_branch
          %252 = sbr.rel (%p250) target = $region52
        $region51: #{tpu_custom_call.1} parent=39 // pred_region
          %254 = dma.done [#allocation5], 2048
        $region52: #{tpu_custom_call.1} parent=39 // pred_fallthru
          _
        // Predicated region
        $region53: #{tpu_custom_call.1} parent=39 // pred_check
          %p255 = pneg %p124
        $region54: #{tpu_custom_call.1} parent=39 // pred_check_branch
          %257 = sbr.rel (%p255) target = $region56
        $region55: #{tpu_custom_call.1} parent=39 // pred_region
          %259 = dma.done [#allocation8], 135168
        $region56: #{tpu_custom_call.1} parent=39 // pred_fallthru
          _
        %p260 = scmp.lt.s32.totalorder %s19, 1
        %s261 = scalar_select %p260, %s19, 1
        %s262 = smul.addr %s261, 4
        %s263 = smul.addr %s262, 8
        %s264 = scalar_lea.vmem %s0, %s263
        %p265 = pneg %p40
        %p266 = pneg %p37
        %p267 = pneg %p61
        %p268 = pneg %p58
        %p269 = pneg %p82
        %p270 = pneg %p79
        %p271 = pneg %p103
        %p272 = pneg %p100
        %p273 = pneg %p124
        %p274 = pneg %p121
        %p275 = pneg %p150
        %p276 = pneg %p147
        %p277 = scmp.lt.s32.totalorder %s19, 1
        %s278 = scalar_select %p277, %s19, 1
        %s279 = smul.addr %s278, 12
        %s280 = smul.addr %s279, 8
        %s281 = scalar_lea.vmem %s5, %s280
        %p282 = scmp.lt.s32.totalorder %s19, 1
        %s283 = scalar_select %p282, %s19, 1
        %s284 = smul.addr %s283, 4
        %s285 = smul.addr %s284, 8
        %s286 = scalar_lea.vmem %s0, %s285
        %p287 = scmp.lt.s32.totalorder %s19, 1
        %s288 = scalar_select %p287, %s19, 1
        %s289 = smul.addr %s288, 12
        %s290 = smul.addr %s289, 8
        %s291 = scalar_lea.vmem %s5, %s290
        %v292 = vld [vmem:[%s286] sm:$0xff]
        %v293 = vld [vmem:[%s286 + $0x8] sm:$0xff]
        %v294 = vld [vmem:[%s286 + $0x10] sm:$0x1f]
        %v295 = vld [vmem:[%s286 + $0x18] sm:$0x1f]
        %v296 = vld [vmem:[#allocation2] sm:$0xff]
        %v297 = vld [vmem:[#allocation2 + $0x8] sm:$0xff]
        %v298 = vld [vmem:[#allocation2 + $0x10] sm:$0xff]
        %v299 = vld [vmem:[#allocation2 + $0x18] sm:$0xff]
        %v300 = vld [vmem:[#allocation2 + $0x20] sm:$0xff]
        %v301 = vld [vmem:[#allocation2 + $0x28] sm:$0xff]
        %v302 = vld [vmem:[#allocation2 + $0x30] sm:$0xff]
        %v303 = vld [vmem:[#allocation2 + $0x38] sm:$0xff]
        %v304 = vld [vmem:[#allocation2 + $0x40] sm:$0xff]
        %v305 = vld [vmem:[#allocation2 + $0x48] sm:$0xff]
        %v306 = vld [vmem:[#allocation2 + $0x50] sm:$0xff]
        %v307 = vld [vmem:[#allocation2 + $0x58] sm:$0xff]
        %v308 = vld [vmem:[#allocation2 + $0x60] sm:$0xff]
        %v309 = vld [vmem:[#allocation2 + $0x68] sm:$0xff]
        %v310 = vld [vmem:[#allocation2 + $0x70] sm:$0xff]
        %v311 = vld [vmem:[#allocation2 + $0x78] sm:$0xff]
        %v312 = vld [vmem:[#allocation2 + $0x80] sm:$0xff]
        %v313 = vld [vmem:[#allocation2 + $0x88] sm:$0xff]
        %v314 = vld [vmem:[#allocation2 + $0x90] sm:$0xff]
        %v315 = vld [vmem:[#allocation2 + $0x98] sm:$0xff]
        %v316 = vld [vmem:[#allocation2 + $0xa0] sm:$0xff]
        %v317 = vld [vmem:[#allocation2 + $0xa8] sm:$0xff]
        %v318 = vld [vmem:[#allocation2 + $0xb0] sm:$0xff]
        %v319 = vld [vmem:[#allocation2 + $0xb8] sm:$0xff]
        %v320 = vld [vmem:[#allocation2 + $0xc0] sm:$0xff]
        %v321 = vld [vmem:[#allocation2 + $0xc8] sm:$0xff]
        %v322 = vld [vmem:[#allocation2 + $0xd0] sm:$0xff]
        %v323 = vld [vmem:[#allocation2 + $0xd8] sm:$0xff]
        %v324 = vld [vmem:[#allocation2 + $0xe0] sm:$0xff]
        %v325 = vld [vmem:[#allocation2 + $0xe8] sm:$0xff]
        %v326 = vld [vmem:[#allocation2 + $0xf0] sm:$0xff]
        %v327 = vld [vmem:[#allocation2 + $0xf8] sm:$0xff]
        %v328 = vld [vmem:[#allocation2 + $0x100] sm:$0xff]
        %v329 = vld [vmem:[#allocation2 + $0x108] sm:$0xff]
        %v330 = vld [vmem:[#allocation2 + $0x110] sm:$0xff]
        %v331 = vld [vmem:[#allocation2 + $0x118] sm:$0xff]
        %v332 = vld [vmem:[#allocation2 + $0x120] sm:$0xff]
        %v333 = vld [vmem:[#allocation2 + $0x128] sm:$0xff]
        %v334 = vld [vmem:[#allocation2 + $0x130] sm:$0xff]
        %v335 = vld [vmem:[#allocation2 + $0x138] sm:$0xff]
        %v336 = vld [vmem:[#allocation2 + $0x140] sm:$0xff]
        %v337 = vld [vmem:[#allocation2 + $0x148] sm:$0xff]
        %v338 = vld [vmem:[#allocation2 + $0x150] sm:$0xff]
        %v339 = vld [vmem:[#allocation2 + $0x158] sm:$0xff]
        %v340 = vld [vmem:[#allocation2 + $0x160] sm:$0xff]
        %v341 = vld [vmem:[#allocation2 + $0x168] sm:$0xff]
        %v342 = vld [vmem:[#allocation2 + $0x170] sm:$0xff]
        %v343 = vld [vmem:[#allocation2 + $0x178] sm:$0xff]
        %v344 = vld [vmem:[#allocation2 + $0x180] sm:$0xff]
        %v345 = vld [vmem:[#allocation2 + $0x188] sm:$0xff]
        %v346 = vld [vmem:[#allocation2 + $0x190] sm:$0xff]
        %v347 = vld [vmem:[#allocation2 + $0x198] sm:$0xff]
        %v348 = vld [vmem:[#allocation2 + $0x1a0] sm:$0xff]
        %v349 = vld [vmem:[#allocation2 + $0x1a8] sm:$0xff]
        %v350 = vld [vmem:[#allocation2 + $0x1b0] sm:$0xff]
        %v351 = vld [vmem:[#allocation2 + $0x1b8] sm:$0xff]
        %v352 = vld [vmem:[#allocation2 + $0x1c0] sm:$0xff]
        %v353 = vld [vmem:[#allocation2 + $0x1c8] sm:$0xff]
        %v354 = vld [vmem:[#allocation2 + $0x1d0] sm:$0xff]
        %v355 = vld [vmem:[#allocation2 + $0x1d8] sm:$0xff]
        %v356 = vld [vmem:[#allocation2 + $0x1e0] sm:$0xff]
        %v357 = vld [vmem:[#allocation2 + $0x1e8] sm:$0xff]
        %v358 = vld [vmem:[#allocation2 + $0x1f0] sm:$0xff]
        %v359 = vld [vmem:[#allocation2 + $0x1f8] sm:$0xff]
        %v360 = vld [vmem:[#allocation2 + $0x200] sm:$0xff]
        %v361 = vld [vmem:[#allocation2 + $0x208] sm:$0xff]
        %v362 = vld [vmem:[#allocation2 + $0x210] sm:$0xff]
        %v363 = vld [vmem:[#allocation2 + $0x218] sm:$0xff]
        %v364 = vld [vmem:[#allocation2 + $0x220] sm:$0xff]
        %v365 = vld [vmem:[#allocation2 + $0x228] sm:$0xff]
        %v366 = vld [vmem:[#allocation2 + $0x230] sm:$0xff]
        %v367 = vld [vmem:[#allocation2 + $0x238] sm:$0xff]
        %v368 = vld [vmem:[#allocation2 + $0x240] sm:$0xff]
        %v369 = vld [vmem:[#allocation2 + $0x248] sm:$0xff]
        %v370 = vld [vmem:[#allocation2 + $0x250] sm:$0xff]
        %v371 = vld [vmem:[#allocation2 + $0x258] sm:$0xff]
        %v372 = vld [vmem:[#allocation2 + $0x260] sm:$0xff]
        %v373 = vld [vmem:[#allocation2 + $0x268] sm:$0xff]
        %v374 = vld [vmem:[#allocation2 + $0x270] sm:$0xff]
        %v375 = vld [vmem:[#allocation2 + $0x278] sm:$0xff]
        %s376 = scalar_lea.vmem [#allocation2], 640
        %v377 = vld [vmem:[%s376] sm:$0xff]
        %v378 = vld [vmem:[%s376 + $0x8] sm:$0xff]
        %v379 = vld [vmem:[%s376 + $0x10] sm:$0xff]
        %v380 = vld [vmem:[%s376 + $0x18] sm:$0xff]
        %v381 = vld [vmem:[%s376 + $0x20] sm:$0xff]
        %v382 = vld [vmem:[%s376 + $0x28] sm:$0xff]
        %v383 = vld [vmem:[%s376 + $0x30] sm:$0xff]
        %v384 = vld [vmem:[%s376 + $0x38] sm:$0xff]
        %v385 = vld [vmem:[%s376 + $0x40] sm:$0xff]
        %v386 = vld [vmem:[%s376 + $0x48] sm:$0xff]
        %v387 = vld [vmem:[%s376 + $0x50] sm:$0xff]
        %v388 = vld [vmem:[%s376 + $0x58] sm:$0xff]
        %v389 = vld [vmem:[%s376 + $0x60] sm:$0xff]
        %v390 = vld [vmem:[%s376 + $0x68] sm:$0xff]
        %v391 = vld [vmem:[%s376 + $0x70] sm:$0xff]
        %v392 = vld [vmem:[%s376 + $0x78] sm:$0xff]
        %v393 = vld [vmem:[%s376 + $0x80] sm:$0xff]
        %v394 = vld [vmem:[%s376 + $0x88] sm:$0xff]
        %v395 = vld [vmem:[%s376 + $0x90] sm:$0xff]
        %v396 = vld [vmem:[%s376 + $0x98] sm:$0xff]
        %v397 = vld [vmem:[%s376 + $0xa0] sm:$0xff]
        %v398 = vld [vmem:[%s376 + $0xa8] sm:$0xff]
        %v399 = vld [vmem:[%s376 + $0xb0] sm:$0xff]
        %v400 = vld [vmem:[%s376 + $0xb8] sm:$0xff]
        %v401 = vld [vmem:[%s376 + $0xc0] sm:$0xff]
        %v402 = vld [vmem:[%s376 + $0xc8] sm:$0xff]
        %v403 = vld [vmem:[%s376 + $0xd0] sm:$0xff]
        %v404 = vld [vmem:[%s376 + $0xd8] sm:$0xff]
        %v405 = vld [vmem:[%s376 + $0xe0] sm:$0xff]
        %v406 = vld [vmem:[%s376 + $0xe8] sm:$0xff]
        %v407 = vld [vmem:[%s376 + $0xf0] sm:$0xff]
        %v408 = vld [vmem:[%s376 + $0xf8] sm:$0xff]
        %v409 = vld [vmem:[%s376 + $0x100] sm:$0xff]
        %v410 = vld [vmem:[%s376 + $0x108] sm:$0xff]
        %v411 = vld [vmem:[%s376 + $0x110] sm:$0xff]
        %v412 = vld [vmem:[%s376 + $0x118] sm:$0xff]
        %v413 = vld [vmem:[%s376 + $0x120] sm:$0xff]
        %v414 = vld [vmem:[%s376 + $0x128] sm:$0xff]
        %v415 = vld [vmem:[%s376 + $0x130] sm:$0xff]
        %v416 = vld [vmem:[%s376 + $0x138] sm:$0xff]
        %v417 = vld [vmem:[%s376 + $0x140] sm:$0xff]
        %v418 = vld [vmem:[%s376 + $0x148] sm:$0xff]
        %v419 = vld [vmem:[%s376 + $0x150] sm:$0xff]
        %v420 = vld [vmem:[%s376 + $0x158] sm:$0xff]
        %v421 = vld [vmem:[%s376 + $0x160] sm:$0xff]
        %v422 = vld [vmem:[%s376 + $0x168] sm:$0xff]
        %v423 = vld [vmem:[%s376 + $0x170] sm:$0xff]
        %v424 = vld [vmem:[%s376 + $0x178] sm:$0xff]
        %v425 = vld [vmem:[%s376 + $0x180] sm:$0xff]
        %v426 = vld [vmem:[%s376 + $0x188] sm:$0xff]
        %v427 = vld [vmem:[%s376 + $0x190] sm:$0xff]
        %v428 = vld [vmem:[%s376 + $0x198] sm:$0xff]
        %v429 = vld [vmem:[%s376 + $0x1a0] sm:$0xff]
        %v430 = vld [vmem:[%s376 + $0x1a8] sm:$0xff]
        %v431 = vld [vmem:[%s376 + $0x1b0] sm:$0xff]
        %v432 = vld [vmem:[%s376 + $0x1b8] sm:$0xff]
        %v433 = vld [vmem:[%s376 + $0x1c0] sm:$0xff]
        %v434 = vld [vmem:[%s376 + $0x1c8] sm:$0xff]
        %v435 = vld [vmem:[%s376 + $0x1d0] sm:$0xff]
        %v436 = vld [vmem:[%s376 + $0x1d8] sm:$0xff]
        %v437 = vld [vmem:[%s376 + $0x1e0] sm:$0xff]
        %v438 = vld [vmem:[%s376 + $0x1e8] sm:$0xff]
        %v439 = vld [vmem:[%s376 + $0x1f0] sm:$0xff]
        %v440 = vld [vmem:[%s376 + $0x1f8] sm:$0xff]
        %v441 = vld [vmem:[%s376 + $0x200] sm:$0xff]
        %v442 = vld [vmem:[%s376 + $0x208] sm:$0xff]
        %v443 = vld [vmem:[%s376 + $0x210] sm:$0xff]
        %v444 = vld [vmem:[%s376 + $0x218] sm:$0xff]
        %v445 = vld [vmem:[%s376 + $0x220] sm:$0xff]
        %v446 = vld [vmem:[%s376 + $0x228] sm:$0xff]
        %v447 = vld [vmem:[%s376 + $0x230] sm:$0xff]
        %v448 = vld [vmem:[%s376 + $0x238] sm:$0xff]
        %v449 = vld [vmem:[%s376 + $0x240] sm:$0xff]
        %v450 = vld [vmem:[%s376 + $0x248] sm:$0xff]
        %v451 = vld [vmem:[%s376 + $0x250] sm:$0xff]
        %v452 = vld [vmem:[%s376 + $0x258] sm:$0xff]
        %v453 = vld [vmem:[%s376 + $0x260] sm:$0xff]
        %v454 = vld [vmem:[%s376 + $0x268] sm:$0xff]
        %v455 = vld [vmem:[%s376 + $0x270] sm:$0xff]
        %v456 = vld [vmem:[%s376 + $0x278] sm:$0xff]
        %vm461 = vcmask 1046528
        %v462 = vrot.slane %v292, 1
        %v463 = vrot.slane %v294, 1
        %v464 = vsel %vm461, %v462, %v463
        %v465 = vrot.slane %v293, 1
        %v466 = vrot.slane %v295, 1
        %v467 = vsel %vm461, %v465, %v466
        %vm470 = vcmask 261120
        %v471 = vsel %vm470, %v467, 0
        %v473 = vsel %vm470, %v466, 0
        %475 = vmatpush.msra.mxu0 %v437
        %476 = vmatpush.msra.mxu0 %v433
        %477 = vmatpush.msra.mxu0 %v429
        %478 = vmatpush.msra.mxu0 %v425
        %479 = vmatpush.msra.mxu0 %v421
        %480 = vmatpush.msra.mxu0 %v417
        %481 = vmatpush.msra.mxu0 %v413
        %482 = vmatpush.msra.mxu0 %v409
        %483 = vmatpush.msra.mxu0 %v405
        %484 = vmatpush.msra.mxu0 %v401
        %485 = vmatpush.msra.mxu0 %v397
        %486 = vmatpush.msra.mxu0 %v393
        %487 = vmatpush.msra.mxu0 %v389
        %488 = vmatpush.msra.mxu0 %v385
        %489 = vmatpush.msra.mxu0 %v381
        %490 = vmatpush.msra.mxu0 %v377
        %491 = vmatmul.f32.gmra.mxu0 %v464
        %v492 = vpop.f32.mrf.mxu0
        %v493 = vadd.f32 0.0, %v492
        %494 = vmatmul.f32.gmra.mxu0 %v463
        %v495 = vpop.f32.mrf.mxu0
        %v496 = vadd.f32 0.0, %v495
        %497 = vdwg.mxu0
        %498 = vmatpush.msra.mxu0 0.0
        %499 = vmatpush.msra.mxu0 0.0
        %500 = vmatpush.msra.mxu0 0.0
        %501 = vmatpush.msra.mxu0 0.0
        %502 = vmatpush.msra.mxu0 0.0
        %503 = vmatpush.msra.mxu0 0.0
        %504 = vmatpush.msra.mxu0 0.0
        %505 = vmatpush.msra.mxu0 0.0
        %506 = vmatpush.msra.mxu0 0.0
        %507 = vmatpush.msra.mxu0 0.0
        %508 = vmatpush.msra.mxu0 0.0
        %509 = vmatpush.msra.mxu0 0.0
        %510 = vmatpush.msra.mxu0 %v453
        %511 = vmatpush.msra.mxu0 %v449
        %512 = vmatpush.msra.mxu0 %v445
        %513 = vmatpush.msra.mxu0 %v441
        %514 = vmatmul.f32.gmra.mxu0 %v471
        %v515 = vpop.f32.mrf.mxu0
        %v516 = vadd.f32 %v493, %v515
        %517 = vmatmul.f32.gmra.mxu0 %v473
        %v518 = vpop.f32.mrf.mxu0
        %v519 = vadd.f32 %v496, %v518
        %520 = vdwg.mxu0
        %521 = vmatpush.msra.mxu0 %v438
        %522 = vmatpush.msra.mxu0 %v434
        %523 = vmatpush.msra.mxu0 %v430
        %524 = vmatpush.msra.mxu0 %v426
        %525 = vmatpush.msra.mxu0 %v422
        %526 = vmatpush.msra.mxu0 %v418
        %527 = vmatpush.msra.mxu0 %v414
        %528 = vmatpush.msra.mxu0 %v410
        %529 = vmatpush.msra.mxu0 %v406
        %530 = vmatpush.msra.mxu0 %v402
        %531 = vmatpush.msra.mxu0 %v398
        %532 = vmatpush.msra.mxu0 %v394
        %533 = vmatpush.msra.mxu0 %v390
        %534 = vmatpush.msra.mxu0 %v386
        %535 = vmatpush.msra.mxu0 %v382
        %536 = vmatpush.msra.mxu0 %v378
        %537 = vmatmul.f32.gmra.mxu0 %v464
        %v538 = vpop.f32.mrf.mxu0
        %v539 = vadd.f32 0.0, %v538
        %540 = vmatmul.f32.gmra.mxu0 %v463
        %v541 = vpop.f32.mrf.mxu0
        %v542 = vadd.f32 0.0, %v541
        %543 = vdwg.mxu0
        %544 = vmatpush.msra.mxu0 0.0
        %545 = vmatpush.msra.mxu0 0.0
        %546 = vmatpush.msra.mxu0 0.0
        %547 = vmatpush.msra.mxu0 0.0
        %548 = vmatpush.msra.mxu0 0.0
        %549 = vmatpush.msra.mxu0 0.0
        %550 = vmatpush.msra.mxu0 0.0
        %551 = vmatpush.msra.mxu0 0.0
        %552 = vmatpush.msra.mxu0 0.0
        %553 = vmatpush.msra.mxu0 0.0
        %554 = vmatpush.msra.mxu0 0.0
        %555 = vmatpush.msra.mxu0 0.0
        %556 = vmatpush.msra.mxu0 %v454
        %557 = vmatpush.msra.mxu0 %v450
        %558 = vmatpush.msra.mxu0 %v446
        %559 = vmatpush.msra.mxu0 %v442
        %560 = vmatmul.f32.gmra.mxu0 %v471
        %v561 = vpop.f32.mrf.mxu0
        %v562 = vadd.f32 %v539, %v561
        %563 = vmatmul.f32.gmra.mxu0 %v473
        %v564 = vpop.f32.mrf.mxu0
        %v565 = vadd.f32 %v542, %v564
        %566 = vdwg.mxu0
        %567 = vmatpush.msra.mxu0 %v439
        %568 = vmatpush.msra.mxu0 %v435
        %569 = vmatpush.msra.mxu0 %v431
        %570 = vmatpush.msra.mxu0 %v427
        %571 = vmatpush.msra.mxu0 %v423
        %572 = vmatpush.msra.mxu0 %v419
        %573 = vmatpush.msra.mxu0 %v415
        %574 = vmatpush.msra.mxu0 %v411
        %575 = vmatpush.msra.mxu0 %v407
        %576 = vmatpush.msra.mxu0 %v403
        %577 = vmatpush.msra.mxu0 %v399
        %578 = vmatpush.msra.mxu0 %v395
        %579 = vmatpush.msra.mxu0 %v391
        %580 = vmatpush.msra.mxu0 %v387
        %581 = vmatpush.msra.mxu0 %v383
        %582 = vmatpush.msra.mxu0 %v379
        %583 = vmatmul.f32.gmra.mxu0 %v464
        %v584 = vpop.f32.mrf.mxu0
        %v585 = vadd.f32 0.0, %v584
        %586 = vmatmul.f32.gmra.mxu0 %v463
        %v587 = vpop.f32.mrf.mxu0
        %v588 = vadd.f32 0.0, %v587
        %589 = vdwg.mxu0
        %590 = vmatpush.msra.mxu0 0.0
        %591 = vmatpush.msra.mxu0 0.0
        %592 = vmatpush.msra.mxu0 0.0
        %593 = vmatpush.msra.mxu0 0.0
        %594 = vmatpush.msra.mxu0 0.0
        %595 = vmatpush.msra.mxu0 0.0
        %596 = vmatpush.msra.mxu0 0.0
        %597 = vmatpush.msra.mxu0 0.0
        %598 = vmatpush.msra.mxu0 0.0
        %599 = vmatpush.msra.mxu0 0.0
        %600 = vmatpush.msra.mxu0 0.0
        %601 = vmatpush.msra.mxu0 0.0
        %602 = vmatpush.msra.mxu0 %v455
        %603 = vmatpush.msra.mxu0 %v451
        %604 = vmatpush.msra.mxu0 %v447
        %605 = vmatpush.msra.mxu0 %v443
        %606 = vmatmul.f32.gmra.mxu0 %v471
        %v607 = vpop.f32.mrf.mxu0
        %v608 = vadd.f32 %v585, %v607
        %609 = vmatmul.f32.gmra.mxu0 %v473
        %v610 = vpop.f32.mrf.mxu0
        %v611 = vadd.f32 %v588, %v610
        %612 = vdwg.mxu0
        %613 = vmatpush.msra.mxu0 %v440
        %614 = vmatpush.msra.mxu0 %v436
        %615 = vmatpush.msra.mxu0 %v432
        %616 = vmatpush.msra.mxu0 %v428
        %617 = vmatpush.msra.mxu0 %v424
        %618 = vmatpush.msra.mxu0 %v420
        %619 = vmatpush.msra.mxu0 %v416
        %620 = vmatpush.msra.mxu0 %v412
        %621 = vmatpush.msra.mxu0 %v408
        %622 = vmatpush.msra.mxu0 %v404
        %623 = vmatpush.msra.mxu0 %v400
        %624 = vmatpush.msra.mxu0 %v396
        %625 = vmatpush.msra.mxu0 %v392
        %626 = vmatpush.msra.mxu0 %v388
        %627 = vmatpush.msra.mxu0 %v384
        %628 = vmatpush.msra.mxu0 %v380
        %629 = vmatmul.f32.gmra.mxu0 %v464
        %v630 = vpop.f32.mrf.mxu0
        %v631 = vadd.f32 0.0, %v630
        %632 = vmatmul.f32.gmra.mxu0 %v463
        %v633 = vpop.f32.mrf.mxu0
        %v634 = vadd.f32 0.0, %v633
        %635 = vdwg.mxu0
        %636 = vmatpush.msra.mxu0 0.0
        %637 = vmatpush.msra.mxu0 0.0
        %638 = vmatpush.msra.mxu0 0.0
        %639 = vmatpush.msra.mxu0 0.0
        %640 = vmatpush.msra.mxu0 0.0
        %641 = vmatpush.msra.mxu0 0.0
        %642 = vmatpush.msra.mxu0 0.0
        %643 = vmatpush.msra.mxu0 0.0
        %644 = vmatpush.msra.mxu0 0.0
        %645 = vmatpush.msra.mxu0 0.0
        %646 = vmatpush.msra.mxu0 0.0
        %647 = vmatpush.msra.mxu0 0.0
        %648 = vmatpush.msra.mxu0 %v456
        %649 = vmatpush.msra.mxu0 %v452
        %650 = vmatpush.msra.mxu0 %v448
        %651 = vmatpush.msra.mxu0 %v444
        %652 = vmatmul.f32.gmra.mxu0 %v471
        %v653 = vpop.f32.mrf.mxu0
        %v654 = vadd.f32 %v631, %v653
        %655 = vmatmul.f32.gmra.mxu0 %v473
        %v656 = vpop.f32.mrf.mxu0
        %v657 = vadd.f32 %v634, %v656
        %658 = vdwg.mxu0
        %v659 = vsel %vm470, %v293, 0
        %v661 = vsel %vm470, %v295, 0
        %663 = vmatpush.msra.mxu0 %v356
        %664 = vmatpush.msra.mxu0 %v352
        %665 = vmatpush.msra.mxu0 %v348
        %666 = vmatpush.msra.mxu0 %v344
        %667 = vmatpush.msra.mxu0 %v340
        %668 = vmatpush.msra.mxu0 %v336
        %669 = vmatpush.msra.mxu0 %v332
        %670 = vmatpush.msra.mxu0 %v328
        %671 = vmatpush.msra.mxu0 %v324
        %672 = vmatpush.msra.mxu0 %v320
        %673 = vmatpush.msra.mxu0 %v316
        %674 = vmatpush.msra.mxu0 %v312
        %675 = vmatpush.msra.mxu0 %v308
        %676 = vmatpush.msra.mxu0 %v304
        %677 = vmatpush.msra.mxu0 %v300
        %678 = vmatpush.msra.mxu0 %v296
        %679 = vmatmul.f32.gmra.mxu0 %v292
        %v680 = vpop.f32.mrf.mxu0
        %v681 = vadd.f32 %v516, %v680
        %682 = vmatmul.f32.gmra.mxu0 %v294
        %v683 = vpop.f32.mrf.mxu0
        %v684 = vadd.f32 %v519, %v683
        %685 = vdwg.mxu0
        %686 = vmatpush.msra.mxu0 0.0
        %687 = vmatpush.msra.mxu0 0.0
        %688 = vmatpush.msra.mxu0 0.0
        %689 = vmatpush.msra.mxu0 0.0
        %690 = vmatpush.msra.mxu0 0.0
        %691 = vmatpush.msra.mxu0 0.0
        %692 = vmatpush.msra.mxu0 0.0
        %693 = vmatpush.msra.mxu0 0.0
        %694 = vmatpush.msra.mxu0 0.0
        %695 = vmatpush.msra.mxu0 0.0
        %696 = vmatpush.msra.mxu0 0.0
        %697 = vmatpush.msra.mxu0 0.0
        %698 = vmatpush.msra.mxu0 %v372
        %699 = vmatpush.msra.mxu0 %v368
        %700 = vmatpush.msra.mxu0 %v364
        %701 = vmatpush.msra.mxu0 %v360
        %702 = vmatmul.f32.gmra.mxu0 %v659
        %v703 = vpop.f32.mrf.mxu0
        %v704 = vadd.f32 %v681, %v703
        %705 = vmatmul.f32.gmra.mxu0 %v661
        %v706 = vpop.f32.mrf.mxu0
        %v707 = vadd.f32 %v684, %v706
        %708 = vdwg.mxu0
        %709 = vmatpush.msra.mxu0 %v357
        %710 = vmatpush.msra.mxu0 %v353
        %711 = vmatpush.msra.mxu0 %v349
        %712 = vmatpush.msra.mxu0 %v345
        %713 = vmatpush.msra.mxu0 %v341
        %714 = vmatpush.msra.mxu0 %v337
        %715 = vmatpush.msra.mxu0 %v333
        %716 = vmatpush.msra.mxu0 %v329
        %717 = vmatpush.msra.mxu0 %v325
        %718 = vmatpush.msra.mxu0 %v321
        %719 = vmatpush.msra.mxu0 %v317
        %720 = vmatpush.msra.mxu0 %v313
        %721 = vmatpush.msra.mxu0 %v309
        %722 = vmatpush.msra.mxu0 %v305
        %723 = vmatpush.msra.mxu0 %v301
        %724 = vmatpush.msra.mxu0 %v297
        %725 = vmatmul.f32.gmra.mxu0 %v292
        %v726 = vpop.f32.mrf.mxu0
        %v727 = vadd.f32 %v562, %v726
        %728 = vmatmul.f32.gmra.mxu0 %v294
        %v729 = vpop.f32.mrf.mxu0
        %v730 = vadd.f32 %v565, %v729
        %731 = vdwg.mxu0
        %732 = vmatpush.msra.mxu0 0.0
        %733 = vmatpush.msra.mxu0 0.0
        %734 = vmatpush.msra.mxu0 0.0
        %735 = vmatpush.msra.mxu0 0.0
        %736 = vmatpush.msra.mxu0 0.0
        %737 = vmatpush.msra.mxu0 0.0
        %738 = vmatpush.msra.mxu0 0.0
        %739 = vmatpush.msra.mxu0 0.0
        %740 = vmatpush.msra.mxu0 0.0
        %741 = vmatpush.msra.mxu0 0.0
        %742 = vmatpush.msra.mxu0 0.0
        %743 = vmatpush.msra.mxu0 0.0
        %744 = vmatpush.msra.mxu0 %v373
        %745 = vmatpush.msra.mxu0 %v369
        %746 = vmatpush.msra.mxu0 %v365
        %747 = vmatpush.msra.mxu0 %v361
        %748 = vmatmul.f32.gmra.mxu0 %v659
        %v749 = vpop.f32.mrf.mxu0
        %v750 = vadd.f32 %v727, %v749
        %751 = vmatmul.f32.gmra.mxu0 %v661
        %v752 = vpop.f32.mrf.mxu0
        %v753 = vadd.f32 %v730, %v752
        %754 = vdwg.mxu0
        %755 = vmatpush.msra.mxu0 %v358
        %756 = vmatpush.msra.mxu0 %v354
        %757 = vmatpush.msra.mxu0 %v350
        %758 = vmatpush.msra.mxu0 %v346
        %759 = vmatpush.msra.mxu0 %v342
        %760 = vmatpush.msra.mxu0 %v338
        %761 = vmatpush.msra.mxu0 %v334
        %762 = vmatpush.msra.mxu0 %v330
        %763 = vmatpush.msra.mxu0 %v326
        %764 = vmatpush.msra.mxu0 %v322
        %765 = vmatpush.msra.mxu0 %v318
        %766 = vmatpush.msra.mxu0 %v314
        %767 = vmatpush.msra.mxu0 %v310
        %768 = vmatpush.msra.mxu0 %v306
        %769 = vmatpush.msra.mxu0 %v302
        %770 = vmatpush.msra.mxu0 %v298
        %771 = vmatmul.f32.gmra.mxu0 %v292
        %v772 = vpop.f32.mrf.mxu0
        %v773 = vadd.f32 %v608, %v772
        %774 = vmatmul.f32.gmra.mxu0 %v294
        %v775 = vpop.f32.mrf.mxu0
        %v776 = vadd.f32 %v611, %v775
        %777 = vdwg.mxu0
        %778 = vmatpush.msra.mxu0 0.0
        %779 = vmatpush.msra.mxu0 0.0
        %780 = vmatpush.msra.mxu0 0.0
        %781 = vmatpush.msra.mxu0 0.0
        %782 = vmatpush.msra.mxu0 0.0
        %783 = vmatpush.msra.mxu0 0.0
        %784 = vmatpush.msra.mxu0 0.0
        %785 = vmatpush.msra.mxu0 0.0
        %786 = vmatpush.msra.mxu0 0.0
        %787 = vmatpush.msra.mxu0 0.0
        %788 = vmatpush.msra.mxu0 0.0
        %789 = vmatpush.msra.mxu0 0.0
        %790 = vmatpush.msra.mxu0 %v374
        %791 = vmatpush.msra.mxu0 %v370
        %792 = vmatpush.msra.mxu0 %v366
        %793 = vmatpush.msra.mxu0 %v362
        %794 = vmatmul.f32.gmra.mxu0 %v659
        %v795 = vpop.f32.mrf.mxu0
        %v796 = vadd.f32 %v773, %v795
        %797 = vmatmul.f32.gmra.mxu0 %v661
        %v798 = vpop.f32.mrf.mxu0
        %v799 = vadd.f32 %v776, %v798
        %800 = vdwg.mxu0
        %801 = vmatpush.msra.mxu0 %v359
        %802 = vmatpush.msra.mxu0 %v355
        %803 = vmatpush.msra.mxu0 %v351
        %804 = vmatpush.msra.mxu0 %v347
        %805 = vmatpush.msra.mxu0 %v343
        %806 = vmatpush.msra.mxu0 %v339
        %807 = vmatpush.msra.mxu0 %v335
        %808 = vmatpush.msra.mxu0 %v331
        %809 = vmatpush.msra.mxu0 %v327
        %810 = vmatpush.msra.mxu0 %v323
        %811 = vmatpush.msra.mxu0 %v319
        %812 = vmatpush.msra.mxu0 %v315
        %813 = vmatpush.msra.mxu0 %v311
        %814 = vmatpush.msra.mxu0 %v307
        %815 = vmatpush.msra.mxu0 %v303
        %816 = vmatpush.msra.mxu0 %v299
        %817 = vmatmul.f32.gmra.mxu0 %v292
        %v818 = vpop.f32.mrf.mxu0
        %v819 = vadd.f32 %v654, %v818
        %820 = vmatmul.f32.gmra.mxu0 %v294
        %v821 = vpop.f32.mrf.mxu0
        %v822 = vadd.f32 %v657, %v821
        %823 = vdwg.mxu0
        %824 = vmatpush.msra.mxu0 0.0
        %825 = vmatpush.msra.mxu0 0.0
        %826 = vmatpush.msra.mxu0 0.0
        %827 = vmatpush.msra.mxu0 0.0
        %828 = vmatpush.msra.mxu0 0.0
        %829 = vmatpush.msra.mxu0 0.0
        %830 = vmatpush.msra.mxu0 0.0
        %831 = vmatpush.msra.mxu0 0.0
        %832 = vmatpush.msra.mxu0 0.0
        %833 = vmatpush.msra.mxu0 0.0
        %834 = vmatpush.msra.mxu0 0.0
        %835 = vmatpush.msra.mxu0 0.0
        %836 = vmatpush.msra.mxu0 %v375
        %837 = vmatpush.msra.mxu0 %v371
        %838 = vmatpush.msra.mxu0 %v367
        %839 = vmatpush.msra.mxu0 %v363
        %840 = vmatmul.f32.gmra.mxu0 %v659
        %v841 = vpop.f32.mrf.mxu0
        %v842 = vadd.f32 %v819, %v841
        %843 = vmatmul.f32.gmra.mxu0 %v661
        %v844 = vpop.f32.mrf.mxu0
        %v845 = vadd.f32 %v822, %v844
        %846 = vdwg.mxu0
        %s847 = scalar_lea.vmem [#allocation2], 1280
        %v848 = vld [vmem:[%s847] sm:$0xff]
        %v849 = vld [vmem:[%s847 + $0x8] sm:$0xff]
        %v850 = vld [vmem:[%s847 + $0x10] sm:$0xff]
        %v851 = vld [vmem:[%s847 + $0x18] sm:$0xff]
        %v852 = vld [vmem:[%s847 + $0x20] sm:$0xff]
        %v853 = vld [vmem:[%s847 + $0x28] sm:$0xff]
        %v854 = vld [vmem:[%s847 + $0x30] sm:$0xff]
        %v855 = vld [vmem:[%s847 + $0x38] sm:$0xff]
        %v856 = vld [vmem:[%s847 + $0x40] sm:$0xff]
        %v857 = vld [vmem:[%s847 + $0x48] sm:$0xff]
        %v858 = vld [vmem:[%s847 + $0x50] sm:$0xff]
        %v859 = vld [vmem:[%s847 + $0x58] sm:$0xff]
        %v860 = vld [vmem:[%s847 + $0x60] sm:$0xff]
        %v861 = vld [vmem:[%s847 + $0x68] sm:$0xff]
        %v862 = vld [vmem:[%s847 + $0x70] sm:$0xff]
        %v863 = vld [vmem:[%s847 + $0x78] sm:$0xff]
        %v864 = vld [vmem:[%s847 + $0x80] sm:$0xff]
        %v865 = vld [vmem:[%s847 + $0x88] sm:$0xff]
        %v866 = vld [vmem:[%s847 + $0x90] sm:$0xff]
        %v867 = vld [vmem:[%s847 + $0x98] sm:$0xff]
        %v868 = vld [vmem:[%s847 + $0xa0] sm:$0xff]
        %v869 = vld [vmem:[%s847 + $0xa8] sm:$0xff]
        %v870 = vld [vmem:[%s847 + $0xb0] sm:$0xff]
        %v871 = vld [vmem:[%s847 + $0xb8] sm:$0xff]
        %v872 = vld [vmem:[%s847 + $0xc0] sm:$0xff]
        %v873 = vld [vmem:[%s847 + $0xc8] sm:$0xff]
        %v874 = vld [vmem:[%s847 + $0xd0] sm:$0xff]
        %v875 = vld [vmem:[%s847 + $0xd8] sm:$0xff]
        %v876 = vld [vmem:[%s847 + $0xe0] sm:$0xff]
        %v877 = vld [vmem:[%s847 + $0xe8] sm:$0xff]
        %v878 = vld [vmem:[%s847 + $0xf0] sm:$0xff]
        %v879 = vld [vmem:[%s847 + $0xf8] sm:$0xff]
        %v880 = vld [vmem:[%s847 + $0x100] sm:$0xff]
        %v881 = vld [vmem:[%s847 + $0x108] sm:$0xff]
        %v882 = vld [vmem:[%s847 + $0x110] sm:$0xff]
        %v883 = vld [vmem:[%s847 + $0x118] sm:$0xff]
        %v884 = vld [vmem:[%s847 + $0x120] sm:$0xff]
        %v885 = vld [vmem:[%s847 + $0x128] sm:$0xff]
        %v886 = vld [vmem:[%s847 + $0x130] sm:$0xff]
        %v887 = vld [vmem:[%s847 + $0x138] sm:$0xff]
        %v888 = vld [vmem:[%s847 + $0x140] sm:$0xff]
        %v889 = vld [vmem:[%s847 + $0x148] sm:$0xff]
        %v890 = vld [vmem:[%s847 + $0x150] sm:$0xff]
        %v891 = vld [vmem:[%s847 + $0x158] sm:$0xff]
        %v892 = vld [vmem:[%s847 + $0x160] sm:$0xff]
        %v893 = vld [vmem:[%s847 + $0x168] sm:$0xff]
        %v894 = vld [vmem:[%s847 + $0x170] sm:$0xff]
        %v895 = vld [vmem:[%s847 + $0x178] sm:$0xff]
        %v896 = vld [vmem:[%s847 + $0x180] sm:$0xff]
        %v897 = vld [vmem:[%s847 + $0x188] sm:$0xff]
        %v898 = vld [vmem:[%s847 + $0x190] sm:$0xff]
        %v899 = vld [vmem:[%s847 + $0x198] sm:$0xff]
        %v900 = vld [vmem:[%s847 + $0x1a0] sm:$0xff]
        %v901 = vld [vmem:[%s847 + $0x1a8] sm:$0xff]
        %v902 = vld [vmem:[%s847 + $0x1b0] sm:$0xff]
        %v903 = vld [vmem:[%s847 + $0x1b8] sm:$0xff]
        %v904 = vld [vmem:[%s847 + $0x1c0] sm:$0xff]
        %v905 = vld [vmem:[%s847 + $0x1c8] sm:$0xff]
        %v906 = vld [vmem:[%s847 + $0x1d0] sm:$0xff]
        %v907 = vld [vmem:[%s847 + $0x1d8] sm:$0xff]
        %v908 = vld [vmem:[%s847 + $0x1e0] sm:$0xff]
        %v909 = vld [vmem:[%s847 + $0x1e8] sm:$0xff]
        %v910 = vld [vmem:[%s847 + $0x1f0] sm:$0xff]
        %v911 = vld [vmem:[%s847 + $0x1f8] sm:$0xff]
        %v912 = vld [vmem:[%s847 + $0x200] sm:$0xff]
        %v913 = vld [vmem:[%s847 + $0x208] sm:$0xff]
        %v914 = vld [vmem:[%s847 + $0x210] sm:$0xff]
        %v915 = vld [vmem:[%s847 + $0x218] sm:$0xff]
        %v916 = vld [vmem:[%s847 + $0x220] sm:$0xff]
        %v917 = vld [vmem:[%s847 + $0x228] sm:$0xff]
        %v918 = vld [vmem:[%s847 + $0x230] sm:$0xff]
        %v919 = vld [vmem:[%s847 + $0x238] sm:$0xff]
        %v920 = vld [vmem:[%s847 + $0x240] sm:$0xff]
        %v921 = vld [vmem:[%s847 + $0x248] sm:$0xff]
        %v922 = vld [vmem:[%s847 + $0x250] sm:$0xff]
        %v923 = vld [vmem:[%s847 + $0x258] sm:$0xff]
        %v924 = vld [vmem:[%s847 + $0x260] sm:$0xff]
        %v925 = vld [vmem:[%s847 + $0x268] sm:$0xff]
        %v926 = vld [vmem:[%s847 + $0x270] sm:$0xff]
        %v927 = vld [vmem:[%s847 + $0x278] sm:$0xff]
        %vm928 = vcmask 1045504
        %v929 = vrot.slane %v292, 2
        %v930 = vrot.slane %v294, 2
        %v931 = vsel %vm928, %v929, %v930
        %v932 = vrot.slane %v293, 2
        %v933 = vrot.slane %v295, 2
        %v934 = vsel %vm928, %v932, %v933
        %v937 = vsel %vm470, %v934, 0
        %v939 = vsel %vm470, %v933, 0
        %941 = vmatpush.msra.mxu0 %v908
        %942 = vmatpush.msra.mxu0 %v904
        %943 = vmatpush.msra.mxu0 %v900
        %944 = vmatpush.msra.mxu0 %v896
        %945 = vmatpush.msra.mxu0 %v892
        %946 = vmatpush.msra.mxu0 %v888
        %947 = vmatpush.msra.mxu0 %v884
        %948 = vmatpush.msra.mxu0 %v880
        %949 = vmatpush.msra.mxu0 %v876
        %950 = vmatpush.msra.mxu0 %v872
        %951 = vmatpush.msra.mxu0 %v868
        %952 = vmatpush.msra.mxu0 %v864
        %953 = vmatpush.msra.mxu0 %v860
        %954 = vmatpush.msra.mxu0 %v856
        %955 = vmatpush.msra.mxu0 %v852
        %956 = vmatpush.msra.mxu0 %v848
        %957 = vmatmul.f32.gmra.mxu0 %v931
        %v958 = vpop.f32.mrf.mxu0
        %v959 = vadd.f32 0.0, %v958
        %960 = vmatmul.f32.gmra.mxu0 %v930
        %v961 = vpop.f32.mrf.mxu0
        %v962 = vadd.f32 0.0, %v961
        %963 = vdwg.mxu0
        %964 = vmatpush.msra.mxu0 0.0
        %965 = vmatpush.msra.mxu0 0.0
        %966 = vmatpush.msra.mxu0 0.0
        %967 = vmatpush.msra.mxu0 0.0
        %968 = vmatpush.msra.mxu0 0.0
        %969 = vmatpush.msra.mxu0 0.0
        %970 = vmatpush.msra.mxu0 0.0
        %971 = vmatpush.msra.mxu0 0.0
        %972 = vmatpush.msra.mxu0 0.0
        %973 = vmatpush.msra.mxu0 0.0
        %974 = vmatpush.msra.mxu0 0.0
        %975 = vmatpush.msra.mxu0 0.0
        %976 = vmatpush.msra.mxu0 %v924
        %977 = vmatpush.msra.mxu0 %v920
        %978 = vmatpush.msra.mxu0 %v916
        %979 = vmatpush.msra.mxu0 %v912
        %980 = vmatmul.f32.gmra.mxu0 %v937
        %v981 = vpop.f32.mrf.mxu0
        %v982 = vadd.f32 %v959, %v981
        %983 = vmatmul.f32.gmra.mxu0 %v939
        %v984 = vpop.f32.mrf.mxu0
        %v985 = vadd.f32 %v962, %v984
        %986 = vdwg.mxu0
        %987 = vmatpush.msra.mxu0 %v909
        %988 = vmatpush.msra.mxu0 %v905
        %989 = vmatpush.msra.mxu0 %v901
        %990 = vmatpush.msra.mxu0 %v897
        %991 = vmatpush.msra.mxu0 %v893
        %992 = vmatpush.msra.mxu0 %v889
        %993 = vmatpush.msra.mxu0 %v885
        %994 = vmatpush.msra.mxu0 %v881
        %995 = vmatpush.msra.mxu0 %v877
        %996 = vmatpush.msra.mxu0 %v873
        %997 = vmatpush.msra.mxu0 %v869
        %998 = vmatpush.msra.mxu0 %v865
        %999 = vmatpush.msra.mxu0 %v861
        %1000 = vmatpush.msra.mxu0 %v857
        %1001 = vmatpush.msra.mxu0 %v853
        %1002 = vmatpush.msra.mxu0 %v849
        %1003 = vmatmul.f32.gmra.mxu0 %v931
        %v1004 = vpop.f32.mrf.mxu0
        %v1005 = vadd.f32 0.0, %v1004
        %1006 = vmatmul.f32.gmra.mxu0 %v930
        %v1007 = vpop.f32.mrf.mxu0
        %v1008 = vadd.f32 0.0, %v1007
        %1009 = vdwg.mxu0
        %1010 = vmatpush.msra.mxu0 0.0
        %1011 = vmatpush.msra.mxu0 0.0
        %1012 = vmatpush.msra.mxu0 0.0
        %1013 = vmatpush.msra.mxu0 0.0
        %1014 = vmatpush.msra.mxu0 0.0
        %1015 = vmatpush.msra.mxu0 0.0
        %1016 = vmatpush.msra.mxu0 0.0
        %1017 = vmatpush.msra.mxu0 0.0
        %1018 = vmatpush.msra.mxu0 0.0
        %1019 = vmatpush.msra.mxu0 0.0
        %1020 = vmatpush.msra.mxu0 0.0
        %1021 = vmatpush.msra.mxu0 0.0
        %1022 = vmatpush.msra.mxu0 %v925
        %1023 = vmatpush.msra.mxu0 %v921
        %1024 = vmatpush.msra.mxu0 %v917
        %1025 = vmatpush.msra.mxu0 %v913
        %1026 = vmatmul.f32.gmra.mxu0 %v937
        %v1027 = vpop.f32.mrf.mxu0
        %v1028 = vadd.f32 %v1005, %v1027
        %1029 = vmatmul.f32.gmra.mxu0 %v939
        %v1030 = vpop.f32.mrf.mxu0
        %v1031 = vadd.f32 %v1008, %v1030
        %1032 = vdwg.mxu0
        %1033 = vmatpush.msra.mxu0 %v910
        %1034 = vmatpush.msra.mxu0 %v906
        %1035 = vmatpush.msra.mxu0 %v902
        %1036 = vmatpush.msra.mxu0 %v898
        %1037 = vmatpush.msra.mxu0 %v894
        %1038 = vmatpush.msra.mxu0 %v890
        %1039 = vmatpush.msra.mxu0 %v886
        %1040 = vmatpush.msra.mxu0 %v882
        %1041 = vmatpush.msra.mxu0 %v878
        %1042 = vmatpush.msra.mxu0 %v874
        %1043 = vmatpush.msra.mxu0 %v870
        %1044 = vmatpush.msra.mxu0 %v866
        %1045 = vmatpush.msra.mxu0 %v862
        %1046 = vmatpush.msra.mxu0 %v858
        %1047 = vmatpush.msra.mxu0 %v854
        %1048 = vmatpush.msra.mxu0 %v850
        %1049 = vmatmul.f32.gmra.mxu0 %v931
        %v1050 = vpop.f32.mrf.mxu0
        %v1051 = vadd.f32 0.0, %v1050
        %1052 = vmatmul.f32.gmra.mxu0 %v930
        %v1053 = vpop.f32.mrf.mxu0
        %v1054 = vadd.f32 0.0, %v1053
        %1055 = vdwg.mxu0
        %1056 = vmatpush.msra.mxu0 0.0
        %1057 = vmatpush.msra.mxu0 0.0
        %1058 = vmatpush.msra.mxu0 0.0
        %1059 = vmatpush.msra.mxu0 0.0
        %1060 = vmatpush.msra.mxu0 0.0
        %1061 = vmatpush.msra.mxu0 0.0
        %1062 = vmatpush.msra.mxu0 0.0
        %1063 = vmatpush.msra.mxu0 0.0
        %1064 = vmatpush.msra.mxu0 0.0
        %1065 = vmatpush.msra.mxu0 0.0
        %1066 = vmatpush.msra.mxu0 0.0
        %1067 = vmatpush.msra.mxu0 0.0
        %1068 = vmatpush.msra.mxu0 %v926
        %1069 = vmatpush.msra.mxu0 %v922
        %1070 = vmatpush.msra.mxu0 %v918
        %1071 = vmatpush.msra.mxu0 %v914
        %1072 = vmatmul.f32.gmra.mxu0 %v937
        %v1073 = vpop.f32.mrf.mxu0
        %v1074 = vadd.f32 %v1051, %v1073
        %1075 = vmatmul.f32.gmra.mxu0 %v939
        %v1076 = vpop.f32.mrf.mxu0
        %v1077 = vadd.f32 %v1054, %v1076
        %1078 = vdwg.mxu0
        %1079 = vmatpush.msra.mxu0 %v911
        %1080 = vmatpush.msra.mxu0 %v907
        %1081 = vmatpush.msra.mxu0 %v903
        %1082 = vmatpush.msra.mxu0 %v899
        %1083 = vmatpush.msra.mxu0 %v895
        %1084 = vmatpush.msra.mxu0 %v891
        %1085 = vmatpush.msra.mxu0 %v887
        %1086 = vmatpush.msra.mxu0 %v883
        %1087 = vmatpush.msra.mxu0 %v879
        %1088 = vmatpush.msra.mxu0 %v875
        %1089 = vmatpush.msra.mxu0 %v871
        %1090 = vmatpush.msra.mxu0 %v867
        %1091 = vmatpush.msra.mxu0 %v863
        %1092 = vmatpush.msra.mxu0 %v859
        %1093 = vmatpush.msra.mxu0 %v855
        %1094 = vmatpush.msra.mxu0 %v851
        %1095 = vmatmul.f32.gmra.mxu0 %v931
        %v1096 = vpop.f32.mrf.mxu0
        %v1097 = vadd.f32 0.0, %v1096
        %1098 = vmatmul.f32.gmra.mxu0 %v930
        %v1099 = vpop.f32.mrf.mxu0
        %v1100 = vadd.f32 0.0, %v1099
        %1101 = vdwg.mxu0
        %1102 = vmatpush.msra.mxu0 0.0
        %1103 = vmatpush.msra.mxu0 0.0
        %1104 = vmatpush.msra.mxu0 0.0
        %1105 = vmatpush.msra.mxu0 0.0
        %1106 = vmatpush.msra.mxu0 0.0
        %1107 = vmatpush.msra.mxu0 0.0
        %1108 = vmatpush.msra.mxu0 0.0
        %1109 = vmatpush.msra.mxu0 0.0
        %1110 = vmatpush.msra.mxu0 0.0
        %1111 = vmatpush.msra.mxu0 0.0
        %1112 = vmatpush.msra.mxu0 0.0
        %1113 = vmatpush.msra.mxu0 0.0
        %1114 = vmatpush.msra.mxu0 %v927
        %1115 = vmatpush.msra.mxu0 %v923
        %1116 = vmatpush.msra.mxu0 %v919
        %1117 = vmatpush.msra.mxu0 %v915
        %1118 = vmatmul.f32.gmra.mxu0 %v937
        %v1119 = vpop.f32.mrf.mxu0
        %v1120 = vadd.f32 %v1097, %v1119
        %1121 = vmatmul.f32.gmra.mxu0 %v939
        %v1122 = vpop.f32.mrf.mxu0
        %v1123 = vadd.f32 %v1100, %v1122
        %1124 = vdwg.mxu0
        %v1125 = vadd.f32 %v704, %v982
        %v1126 = vadd.f32 %v750, %v1028
        %v1127 = vadd.f32 %v796, %v1074
        %v1128 = vadd.f32 %v842, %v1120
        %v1129 = vadd.f32 %v707, %v985
        %v1130 = vadd.f32 %v753, %v1031
        %v1131 = vadd.f32 %v799, %v1077
        %v1132 = vadd.f32 %v845, %v1123
        %v1133 = vmul.f32 %v1125, %v1125
        %v1134 = vmul.f32 %v1126, %v1126
        %v1135 = vmul.f32 %v1129, %v1129
        %v1136 = vmul.f32 %v1130, %v1130
        %v1137 = vmul.f32 %v1127, %v1127
        %v1138 = vmul.f32 %v1128, %v1128
        %v1139 = vmul.f32 %v1131, %v1131
        %v1140 = vmul.f32 %v1132, %v1132
        %v1141 = vadd.f32 %v1133, %v1137
        %v1142 = vadd.f32 %v1134, %v1138
        %v1143 = vadd.f32 %v1135, %v1139
        %v1144 = vadd.f32 %v1136, %v1140
        %v1145 = vld [vmem:[#allocation4] sm:$0xff]
        %v1146 = vld [vmem:[#allocation4 + $0x8] sm:$0xff]
        %v1147 = vld [vmem:[#allocation4 + $0x10] sm:$0xff]
        %v1148 = vld [vmem:[#allocation4 + $0x18] sm:$0xff]
        %v1149 = vld [vmem:[#allocation4 + $0x20] sm:$0xff]
        %v1150 = vld [vmem:[#allocation4 + $0x28] sm:$0xff]
        %v1151 = vld [vmem:[#allocation4 + $0x30] sm:$0xff]
        %v1152 = vld [vmem:[#allocation4 + $0x38] sm:$0xff]
        %v1153 = vld [vmem:[#allocation4 + $0x40] sm:$0xff]
        %v1154 = vld [vmem:[#allocation4 + $0x48] sm:$0xff]
        %v1155 = vld [vmem:[#allocation4 + $0x50] sm:$0xff]
        %v1156 = vld [vmem:[#allocation4 + $0x58] sm:$0xff]
        %v1157 = vld [vmem:[#allocation4 + $0x60] sm:$0xff]
        %v1158 = vld [vmem:[#allocation4 + $0x68] sm:$0xff]
        %v1159 = vld [vmem:[#allocation4 + $0x70] sm:$0xff]
        %v1160 = vld [vmem:[#allocation4 + $0x78] sm:$0xff]
        %v1161 = vld [vmem:[#allocation4 + $0x80] sm:$0xff]
        %v1162 = vld [vmem:[#allocation4 + $0x88] sm:$0xff]
        %v1163 = vld [vmem:[#allocation4 + $0x90] sm:$0xff]
        %v1164 = vld [vmem:[#allocation4 + $0x98] sm:$0xff]
        %v1165 = vld [vmem:[#allocation4 + $0xa0] sm:$0xff]
        %v1166 = vld [vmem:[#allocation4 + $0xa8] sm:$0xff]
        %v1167 = vld [vmem:[#allocation4 + $0xb0] sm:$0xff]
        %v1168 = vld [vmem:[#allocation4 + $0xb8] sm:$0xff]
        %v1169 = vld [vmem:[#allocation4 + $0xc0] sm:$0xff]
        %v1170 = vld [vmem:[#allocation4 + $0xc8] sm:$0xff]
        %v1171 = vld [vmem:[#allocation4 + $0xd0] sm:$0xff]
        %v1172 = vld [vmem:[#allocation4 + $0xd8] sm:$0xff]
        %v1173 = vld [vmem:[#allocation4 + $0xe0] sm:$0xff]
        %v1174 = vld [vmem:[#allocation4 + $0xe8] sm:$0xff]
        %v1175 = vld [vmem:[#allocation4 + $0xf0] sm:$0xff]
        %v1176 = vld [vmem:[#allocation4 + $0xf8] sm:$0xff]
        %1177 = vmatpush.msra.mxu0 %v1160
        %1178 = vmatpush.msra.mxu0 %v1159
        %1179 = vmatpush.msra.mxu0 %v1158
        %1180 = vmatpush.msra.mxu0 %v1157
        %1181 = vmatpush.msra.mxu0 %v1156
        %1182 = vmatpush.msra.mxu0 %v1155
        %1183 = vmatpush.msra.mxu0 %v1154
        %1184 = vmatpush.msra.mxu0 %v1153
        %1185 = vmatpush.msra.mxu0 %v1152
        %1186 = vmatpush.msra.mxu0 %v1151
        %1187 = vmatpush.msra.mxu0 %v1150
        %1188 = vmatpush.msra.mxu0 %v1149
        %1189 = vmatpush.msra.mxu0 %v1148
        %1190 = vmatpush.msra.mxu0 %v1147
        %1191 = vmatpush.msra.mxu0 %v1146
        %1192 = vmatpush.msra.mxu0 %v1145
        %1193 = vmatmul.f32.gmra.mxu0 %v1141
        %v1194 = vpop.f32.mrf.mxu0
        %v1195 = vadd.f32 0.0, %v1194
        %1196 = vmatmul.f32.gmra.mxu0 %v1143
        %v1197 = vpop.f32.mrf.mxu0
        %v1198 = vadd.f32 0.0, %v1197
        %1199 = vdwg.mxu0
        %1200 = vmatpush.msra.mxu0 %v1176
        %1201 = vmatpush.msra.mxu0 %v1175
        %1202 = vmatpush.msra.mxu0 %v1174
        %1203 = vmatpush.msra.mxu0 %v1173
        %1204 = vmatpush.msra.mxu0 %v1172
        %1205 = vmatpush.msra.mxu0 %v1171
        %1206 = vmatpush.msra.mxu0 %v1170
        %1207 = vmatpush.msra.mxu0 %v1169
        %1208 = vmatpush.msra.mxu0 %v1168
        %1209 = vmatpush.msra.mxu0 %v1167
        %1210 = vmatpush.msra.mxu0 %v1166
        %1211 = vmatpush.msra.mxu0 %v1165
        %1212 = vmatpush.msra.mxu0 %v1164
        %1213 = vmatpush.msra.mxu0 %v1163
        %1214 = vmatpush.msra.mxu0 %v1162
        %1215 = vmatpush.msra.mxu0 %v1161
        %1216 = vmatmul.f32.gmra.mxu0 %v1142
        %v1217 = vpop.f32.mrf.mxu0
        %v1218 = vadd.f32 %v1195, %v1217
        %1219 = vmatmul.f32.gmra.mxu0 %v1144
        %v1220 = vpop.f32.mrf.mxu0
        %v1221 = vadd.f32 %v1198, %v1220
        %1222 = vdwg.mxu0
        %v1223 = vmax.f32 %v1218, 1e-10
        %v1224 = vmax.f32 %v1221, 1e-10
        %v1225 = vlog2.pop %v1223
        %v1226 = vmul.f32 %v1225, 0.6931472
        %v1227 = vlog2.pop %v1224
        %v1228 = vmul.f32 %v1227, 0.6931472
        %v1229 = vmul.f32 %v1226, 0.4342945
        %v1230 = vmul.f32 %v1228, 0.4342945
        %v1231 = vmul.f32 %v1229, 10.0
        %v1232 = vmul.f32 %v1230, 10.0
        %vm1233 = vcmask 1042432
        %v1234 = vsel %vm1233, %v1232, -inf
        %v1235 = vmax.f32 %v1231, %v1234
        %1236 = vmax.xlane.f32.xlu0 %v1235
        %v1237 = vpop.xlane.xlu0 %1236
        %v1238 = vrot.slane %v1237, 4
        %v1239 = vmax.f32 %v1237, %v1238
        %v1240 = vrot.slane %v1239, 2
        %v1241 = vmax.f32 %v1239, %v1240
        %v1242 = vrot.slane %v1241, 1
        %v1243 = vmax.f32 %v1241, %v1242
        %s1244 = vtos %v1243
        %s1245 = ssub.f32 %s1244, 80.0
        %v1246 = vstv %s1245
        %v1247 = vmax.f32 %v1231, %v1246
        %v1248 = vmax.f32 %v1232, %v1246
        %v1249 = vld [vmem:[#allocation6] sm:$0xff]
        %v1250 = vld [vmem:[#allocation6 + $0x8] sm:$0xff]
        %v1251 = vld [vmem:[#allocation6 + $0x10] sm:$0xff]
        %v1252 = vld [vmem:[#allocation6 + $0x18] sm:$0xff]
        %v1253 = vld [vmem:[#allocation6 + $0x20] sm:$0xff]
        %v1254 = vld [vmem:[#allocation6 + $0x28] sm:$0xff]
        %v1255 = vld [vmem:[#allocation6 + $0x30] sm:$0xff]
        %v1256 = vld [vmem:[#allocation6 + $0x38] sm:$0xff]
        %v1257 = vld [vmem:[#allocation6 + $0x40] sm:$0xff]
        %v1258 = vld [vmem:[#allocation6 + $0x48] sm:$0xff]
        %v1259 = vld [vmem:[#allocation6 + $0x50] sm:$0xff]
        %v1260 = vld [vmem:[#allocation6 + $0x58] sm:$0xff]
        %v1261 = vld [vmem:[#allocation6 + $0x60] sm:$0xff]
        %v1262 = vld [vmem:[#allocation6 + $0x68] sm:$0xff]
        %v1263 = vld [vmem:[#allocation6 + $0x70] sm:$0xff]
        %v1264 = vld [vmem:[#allocation6 + $0x78] sm:$0xff]
        %1265 = vmatpush.msra.mxu0 %v1264
        %1266 = vmatpush.msra.mxu0 %v1263
        %1267 = vmatpush.msra.mxu0 %v1262
        %1268 = vmatpush.msra.mxu0 %v1261
        %1269 = vmatpush.msra.mxu0 %v1260
        %1270 = vmatpush.msra.mxu0 %v1259
        %1271 = vmatpush.msra.mxu0 %v1258
        %1272 = vmatpush.msra.mxu0 %v1257
        %1273 = vmatpush.msra.mxu0 %v1256
        %1274 = vmatpush.msra.mxu0 %v1255
        %1275 = vmatpush.msra.mxu0 %v1254
        %1276 = vmatpush.msra.mxu0 %v1253
        %1277 = vmatpush.msra.mxu0 %v1252
        %1278 = vmatpush.msra.mxu0 %v1251
        %1279 = vmatpush.msra.mxu0 %v1250
        %1280 = vmatpush.msra.mxu0 %v1249
        %1281 = vmatmul.f32.gmra.mxu0 %v1247
        %v1282 = vpop.f32.mrf.mxu0
        %v1283 = vadd.f32 0.0, %v1282
        %1284 = vmatmul.f32.gmra.mxu0 %v1248
        %v1285 = vpop.f32.mrf.mxu0
        %v1286 = vadd.f32 0.0, %v1285
        %1287 = vdwg.mxu0
        %v1289 = vrot.slane %v1283, 7
        %vm1292 = vcmask 1041408
        %v1293 = vrot.slane %v1283, 6
        %v1294 = vrot.slane %v1286, 6
        %v1295 = vsel %vm1292, %v1293, %v1294
        %v1298 = vrot.slane %v1286, 5
        %v1300 = vrot.slane %v1286, 4
        %vm1302 = vcmask 1040384
        %v1303 = vsel %vm1302, %v1283, %v1289
        %v1304 = vsel %vm1292, %v1303, %v1293
        %vm1305 = vcmask 1044480
        %v1306 = vsel %vm1305, %v1295, %v1298
        %v1307 = vsel %vm928, %v1306, %v1300
        %vm1310 = vcmask 1043456
        %v1311 = vrot.slane %v1304, 4
        %v1312 = vrot.slane %v1307, 4
        %v1313 = vsel %vm1310, %v1311, %v1312
        %v1316 = vsub.f32 %v1304, %v1311
        %v1317 = vsub.f32 %v1307, %v1313
        %v1318 = vmul.f32 %v1316, 2.0
        %v1319 = vmul.f32 %v1317, 2.0
        %v1320 = vrot.slane %v1304, 6
        %v1321 = vrot.slane %v1307, 6
        %v1322 = vsel %vm1292, %v1320, %v1321
        %v1325 = vsub.f32 %v1304, %v1320
        %v1326 = vsub.f32 %v1307, %v1322
        %v1329 = vrot.slane %v1325, 7
        %v1330 = vrot.slane %v1326, 7
        %v1331 = vsel %vm1302, %v1329, %v1330
        %v1334 = vadd.f32 %v1318, %v1329
        %v1335 = vadd.f32 %v1319, %v1331
        %v1336 = vmul.f32 %v1334, 0.1
        %v1337 = vmul.f32 %v1335, 0.1
        %v1339 = vrot.slane %v1336, 4
        %v1341 = vrot.slane %v1336, 3
        %v1344 = vrot.slane %v1336, 2
        %v1345 = vrot.slane %v1337, 2
        %v1346 = vsel %vm928, %v1344, %v1345
        %v1349 = vrot.slane %v1337, 1
        %v1351 = vsel %vm1302, %v1339, %v1341
        %v1352 = vsel %vm1292, %v1351, %v1346
        %v1353 = vsel %vm1305, %v1345, %v1349
        %v1354 = vsel %vm928, %v1353, %v1337
        %v1357 = vrot.slane %v1352, 4
        %v1358 = vrot.slane %v1354, 4
        %v1359 = vsel %vm1310, %v1357, %v1358
        %v1362 = vsub.f32 %v1352, %v1357
        %v1363 = vsub.f32 %v1354, %v1359
        %v1364 = vmul.f32 %v1362, 2.0
        %v1365 = vmul.f32 %v1363, 2.0
        %v1366 = vrot.slane %v1352, 6
        %v1367 = vrot.slane %v1354, 6
        %v1368 = vsel %vm1292, %v1366, %v1367
        %v1371 = vsub.f32 %v1352, %v1366
        %v1372 = vsub.f32 %v1354, %v1368
        %v1375 = vrot.slane %v1371, 7
        %v1376 = vrot.slane %v1372, 7
        %v1377 = vsel %vm1302, %v1375, %v1376
        %v1380 = vadd.f32 %v1364, %v1375
        %v1381 = vadd.f32 %v1365, %v1377
        %v1382 = vmul.f32 %v1380, 0.1
        %v1383 = vmul.f32 %v1381, 0.1
        %v1384 = vlaneseq
        %v1385 = vand.u32 %v1384, 127
        %vm1386 = vcmp.lt.s32.totalorder %v1385, 20
        %vm1387 = vcmp.lt.s32.totalorder %v1385, 40
        %v1388 = vsel %vm1387, %v1336, %v1382
        %v1389 = vsel %vm1387, %v1337, %v1383
        %v1392 = vrot.slane %v1388, 4
        %v1393 = vrot.slane %v1389, 4
        %v1394 = vsel %vm1310, %v1392, %v1393
        %v1397 = vsel %vm1386, %v1283, %v1394
        %v1398 = vsel %vm1386, %v1286, %v1393
        %v1401 = vrot.slane %v1397, 3
        %v1402 = vrot.slane %v1398, 3
        %v1403 = vsel %vm1305, %v1401, %v1402
        %v1406 = vsel %vm1305, 0.0, %v1401
        %v1407 = vld [vmem:[#allocation7] sm:$0xff]
        %v1408 = vld [vmem:[#allocation7 + $0x8] sm:$0xff]
        %v1409 = vld [vmem:[#allocation7 + $0x10] sm:$0xff]
        %v1410 = vld [vmem:[#allocation7 + $0x18] sm:$0xff]
        %v1411 = vld [vmem:[#allocation7 + $0x20] sm:$0xff]
        %v1412 = vld [vmem:[#allocation7 + $0x28] sm:$0xff]
        %v1413 = vld [vmem:[#allocation7 + $0x30] sm:$0xff]
        %v1414 = vld [vmem:[#allocation7 + $0x38] sm:$0xff]
        %v1415 = vld [vmem:[#allocation7 + $0x40] sm:$0xff]
        %v1416 = vld [vmem:[#allocation7 + $0x48] sm:$0xff]
        %v1417 = vld [vmem:[#allocation7 + $0x50] sm:$0xff]
        %v1418 = vld [vmem:[#allocation7 + $0x58] sm:$0xff]
        %v1419 = vld [vmem:[#allocation7 + $0x60] sm:$0xff]
        %v1420 = vld [vmem:[#allocation7 + $0x68] sm:$0xff]
        %v1421 = vld [vmem:[#allocation7 + $0x70] sm:$0xff]
        %v1422 = vld [vmem:[#allocation7 + $0x78] sm:$0xff]
        %v1423 = vld [vmem:[#allocation7 + $0x80] sm:$0xff]
        %v1424 = vld [vmem:[#allocation7 + $0x88] sm:$0xff]
        %v1425 = vld [vmem:[#allocation7 + $0x90] sm:$0xff]
        %v1426 = vld [vmem:[#allocation7 + $0x98] sm:$0xff]
        %v1427 = vld [vmem:[#allocation7 + $0xa0] sm:$0xff]
        %v1428 = vld [vmem:[#allocation7 + $0xa8] sm:$0xff]
        %v1429 = vld [vmem:[#allocation7 + $0xb0] sm:$0xff]
        %v1430 = vld [vmem:[#allocation7 + $0xb8] sm:$0xff]
        %v1431 = vld [vmem:[#allocation7 + $0xc0] sm:$0xff]
        %v1432 = vld [vmem:[#allocation7 + $0xc8] sm:$0xff]
        %v1433 = vld [vmem:[#allocation7 + $0xd0] sm:$0xff]
        %v1434 = vld [vmem:[#allocation7 + $0xd8] sm:$0xff]
        %v1435 = vld [vmem:[#allocation7 + $0xe0] sm:$0xff]
        %v1436 = vld [vmem:[#allocation7 + $0xe8] sm:$0xff]
        %v1437 = vld [vmem:[#allocation7 + $0xf0] sm:$0xff]
        %v1438 = vld [vmem:[#allocation7 + $0xf8] sm:$0xff]
        %v1439 = vld [vmem:[#allocation7 + $0x100] sm:$0xff]
        %v1440 = vld [vmem:[#allocation7 + $0x108] sm:$0xff]
        %v1441 = vld [vmem:[#allocation7 + $0x110] sm:$0xff]
        %v1442 = vld [vmem:[#allocation7 + $0x118] sm:$0xff]
        %v1443 = vld [vmem:[#allocation7 + $0x120] sm:$0xff]
        %v1444 = vld [vmem:[#allocation7 + $0x128] sm:$0xff]
        %v1445 = vld [vmem:[#allocation7 + $0x130] sm:$0xff]
        %v1446 = vld [vmem:[#allocation7 + $0x138] sm:$0xff]
        %v1447 = vld [vmem:[#allocation7 + $0x140] sm:$0xff]
        %v1448 = vld [vmem:[#allocation7 + $0x148] sm:$0xff]
        %v1449 = vld [vmem:[#allocation7 + $0x150] sm:$0xff]
        %v1450 = vld [vmem:[#allocation7 + $0x158] sm:$0xff]
        %v1451 = vld [vmem:[#allocation7 + $0x160] sm:$0xff]
        %v1452 = vld [vmem:[#allocation7 + $0x168] sm:$0xff]
        %v1453 = vld [vmem:[#allocation7 + $0x170] sm:$0xff]
        %v1454 = vld [vmem:[#allocation7 + $0x178] sm:$0xff]
        %v1455 = vld [vmem:[#allocation7 + $0x180] sm:$0xff]
        %v1456 = vld [vmem:[#allocation7 + $0x188] sm:$0xff]
        %v1457 = vld [vmem:[#allocation7 + $0x190] sm:$0xff]
        %v1458 = vld [vmem:[#allocation7 + $0x198] sm:$0xff]
        %v1459 = vld [vmem:[#allocation7 + $0x1a0] sm:$0xff]
        %v1460 = vld [vmem:[#allocation7 + $0x1a8] sm:$0xff]
        %v1461 = vld [vmem:[#allocation7 + $0x1b0] sm:$0xff]
        %v1462 = vld [vmem:[#allocation7 + $0x1b8] sm:$0xff]
        %v1463 = vld [vmem:[#allocation7 + $0x1c0] sm:$0xff]
        %v1464 = vld [vmem:[#allocation7 + $0x1c8] sm:$0xff]
        %v1465 = vld [vmem:[#allocation7 + $0x1d0] sm:$0xff]
        %v1466 = vld [vmem:[#allocation7 + $0x1d8] sm:$0xff]
        %v1467 = vld [vmem:[#allocation7 + $0x1e0] sm:$0xff]
        %v1468 = vld [vmem:[#allocation7 + $0x1e8] sm:$0xff]
        %v1469 = vld [vmem:[#allocation7 + $0x1f0] sm:$0xff]
        %v1470 = vld [vmem:[#allocation7 + $0x1f8] sm:$0xff]
        %v1471 = vld [vmem:[#allocation7 + $0x200] sm:$0xff]
        %v1472 = vld [vmem:[#allocation7 + $0x208] sm:$0xff]
        %v1473 = vld [vmem:[#allocation7 + $0x210] sm:$0xff]
        %v1474 = vld [vmem:[#allocation7 + $0x218] sm:$0xff]
        %v1475 = vld [vmem:[#allocation7 + $0x220] sm:$0xff]
        %v1476 = vld [vmem:[#allocation7 + $0x228] sm:$0xff]
        %v1477 = vld [vmem:[#allocation7 + $0x230] sm:$0xff]
        %v1478 = vld [vmem:[#allocation7 + $0x238] sm:$0xff]
        %v1479 = vld [vmem:[#allocation7 + $0x240] sm:$0xff]
        %v1480 = vld [vmem:[#allocation7 + $0x248] sm:$0xff]
        %v1481 = vld [vmem:[#allocation7 + $0x250] sm:$0xff]
        %v1482 = vld [vmem:[#allocation7 + $0x258] sm:$0xff]
        %v1483 = vld [vmem:[#allocation7 + $0x260] sm:$0xff]
        %v1484 = vld [vmem:[#allocation7 + $0x268] sm:$0xff]
        %v1485 = vld [vmem:[#allocation7 + $0x270] sm:$0xff]
        %v1486 = vld [vmem:[#allocation7 + $0x278] sm:$0xff]
        %v1487 = vld [vmem:[#allocation7 + $0x280] sm:$0xff]
        %v1488 = vld [vmem:[#allocation7 + $0x288] sm:$0xff]
        %v1489 = vld [vmem:[#allocation7 + $0x290] sm:$0xff]
        %v1490 = vld [vmem:[#allocation7 + $0x298] sm:$0xff]
        %v1491 = vld [vmem:[#allocation7 + $0x2a0] sm:$0xff]
        %v1492 = vld [vmem:[#allocation7 + $0x2a8] sm:$0xff]
        %v1493 = vld [vmem:[#allocation7 + $0x2b0] sm:$0xff]
        %v1494 = vld [vmem:[#allocation7 + $0x2b8] sm:$0xff]
        %v1495 = vld [vmem:[#allocation7 + $0x2c0] sm:$0xff]
        %v1496 = vld [vmem:[#allocation7 + $0x2c8] sm:$0xff]
        %v1497 = vld [vmem:[#allocation7 + $0x2d0] sm:$0xff]
        %v1498 = vld [vmem:[#allocation7 + $0x2d8] sm:$0xff]
        %v1499 = vld [vmem:[#allocation7 + $0x2e0] sm:$0xff]
        %v1500 = vld [vmem:[#allocation7 + $0x2e8] sm:$0xff]
        %v1501 = vld [vmem:[#allocation7 + $0x2f0] sm:$0xff]
        %v1502 = vld [vmem:[#allocation7 + $0x2f8] sm:$0xff]
        %1503 = vmatpush.msra.mxu0 %v1497
        %1504 = vmatpush.msra.mxu0 %v1491
        %1505 = vmatpush.msra.mxu0 %v1485
        %1506 = vmatpush.msra.mxu0 %v1479
        %1507 = vmatpush.msra.mxu0 %v1473
        %1508 = vmatpush.msra.mxu0 %v1467
        %1509 = vmatpush.msra.mxu0 %v1461
        %1510 = vmatpush.msra.mxu0 %v1455
        %1511 = vmatpush.msra.mxu0 %v1449
        %1512 = vmatpush.msra.mxu0 %v1443
        %1513 = vmatpush.msra.mxu0 %v1437
        %1514 = vmatpush.msra.mxu0 %v1431
        %1515 = vmatpush.msra.mxu0 %v1425
        %1516 = vmatpush.msra.mxu0 %v1419
        %1517 = vmatpush.msra.mxu0 %v1413
        %1518 = vmatpush.msra.mxu0 %v1407
        %1519 = vmatmul.f32.gmra.mxu0 %v1406
        %v1520 = vpop.f32.mrf.mxu0
        %v1521 = vadd.f32 0.0, %v1520
        %1522 = vmatmul.f32.gmra.mxu0 %v1403
        %v1523 = vpop.f32.mrf.mxu0
        %v1524 = vadd.f32 0.0, %v1523
        %1525 = vdwg.mxu0
        %1526 = vmatpush.msra.mxu0 %v1498
        %1527 = vmatpush.msra.mxu0 %v1492
        %1528 = vmatpush.msra.mxu0 %v1486
        %1529 = vmatpush.msra.mxu0 %v1480
        %1530 = vmatpush.msra.mxu0 %v1474
        %1531 = vmatpush.msra.mxu0 %v1468
        %1532 = vmatpush.msra.mxu0 %v1462
        %1533 = vmatpush.msra.mxu0 %v1456
        %1534 = vmatpush.msra.mxu0 %v1450
        %1535 = vmatpush.msra.mxu0 %v1444
        %1536 = vmatpush.msra.mxu0 %v1438
        %1537 = vmatpush.msra.mxu0 %v1432
        %1538 = vmatpush.msra.mxu0 %v1426
        %1539 = vmatpush.msra.mxu0 %v1420
        %1540 = vmatpush.msra.mxu0 %v1414
        %1541 = vmatpush.msra.mxu0 %v1408
        %1542 = vmatmul.f32.gmra.mxu0 %v1406
        %v1543 = vpop.f32.mrf.mxu0
        %v1544 = vadd.f32 0.0, %v1543
        %1545 = vmatmul.f32.gmra.mxu0 %v1403
        %v1546 = vpop.f32.mrf.mxu0
        %v1547 = vadd.f32 0.0, %v1546
        %1548 = vdwg.mxu0
        %1549 = vmatpush.msra.mxu0 %v1499
        %1550 = vmatpush.msra.mxu0 %v1493
        %1551 = vmatpush.msra.mxu0 %v1487
        %1552 = vmatpush.msra.mxu0 %v1481
        %1553 = vmatpush.msra.mxu0 %v1475
        %1554 = vmatpush.msra.mxu0 %v1469
        %1555 = vmatpush.msra.mxu0 %v1463
        %1556 = vmatpush.msra.mxu0 %v1457
        %1557 = vmatpush.msra.mxu0 %v1451
        %1558 = vmatpush.msra.mxu0 %v1445
        %1559 = vmatpush.msra.mxu0 %v1439
        %1560 = vmatpush.msra.mxu0 %v1433
        %1561 = vmatpush.msra.mxu0 %v1427
        %1562 = vmatpush.msra.mxu0 %v1421
        %1563 = vmatpush.msra.mxu0 %v1415
        %1564 = vmatpush.msra.mxu0 %v1409
        %1565 = vmatmul.f32.gmra.mxu0 %v1406
        %v1566 = vpop.f32.mrf.mxu0
        %v1567 = vadd.f32 0.0, %v1566
        %1568 = vmatmul.f32.gmra.mxu0 %v1403
        %v1569 = vpop.f32.mrf.mxu0
        %v1570 = vadd.f32 0.0, %v1569
        %1571 = vdwg.mxu0
        %1572 = vmatpush.msra.mxu0 %v1500
        %1573 = vmatpush.msra.mxu0 %v1494
        %1574 = vmatpush.msra.mxu0 %v1488
        %1575 = vmatpush.msra.mxu0 %v1482
        %1576 = vmatpush.msra.mxu0 %v1476
        %1577 = vmatpush.msra.mxu0 %v1470
        %1578 = vmatpush.msra.mxu0 %v1464
        %1579 = vmatpush.msra.mxu0 %v1458
        %1580 = vmatpush.msra.mxu0 %v1452
        %1581 = vmatpush.msra.mxu0 %v1446
        %1582 = vmatpush.msra.mxu0 %v1440
        %1583 = vmatpush.msra.mxu0 %v1434
        %1584 = vmatpush.msra.mxu0 %v1428
        %1585 = vmatpush.msra.mxu0 %v1422
        %1586 = vmatpush.msra.mxu0 %v1416
        %1587 = vmatpush.msra.mxu0 %v1410
        %1588 = vmatmul.f32.gmra.mxu0 %v1406
        %v1589 = vpop.f32.mrf.mxu0
        %v1590 = vadd.f32 0.0, %v1589
        %1591 = vmatmul.f32.gmra.mxu0 %v1403
        %v1592 = vpop.f32.mrf.mxu0
        %v1593 = vadd.f32 0.0, %v1592
        %1594 = vdwg.mxu0
        %1595 = vmatpush.msra.mxu0 %v1501
        %1596 = vmatpush.msra.mxu0 %v1495
        %1597 = vmatpush.msra.mxu0 %v1489
        %1598 = vmatpush.msra.mxu0 %v1483
        %1599 = vmatpush.msra.mxu0 %v1477
        %1600 = vmatpush.msra.mxu0 %v1471
        %1601 = vmatpush.msra.mxu0 %v1465
        %1602 = vmatpush.msra.mxu0 %v1459
        %1603 = vmatpush.msra.mxu0 %v1453
        %1604 = vmatpush.msra.mxu0 %v1447
        %1605 = vmatpush.msra.mxu0 %v1441
        %1606 = vmatpush.msra.mxu0 %v1435
        %1607 = vmatpush.msra.mxu0 %v1429
        %1608 = vmatpush.msra.mxu0 %v1423
        %1609 = vmatpush.msra.mxu0 %v1417
        %1610 = vmatpush.msra.mxu0 %v1411
        %1611 = vmatmul.f32.gmra.mxu0 %v1406
        %v1612 = vpop.f32.mrf.mxu0
        %v1613 = vadd.f32 0.0, %v1612
        %1614 = vmatmul.f32.gmra.mxu0 %v1403
        %v1615 = vpop.f32.mrf.mxu0
        %v1616 = vadd.f32 0.0, %v1615
        %1617 = vdwg.mxu0
        %1618 = vmatpush.msra.mxu0 %v1502
        %1619 = vmatpush.msra.mxu0 %v1496
        %1620 = vmatpush.msra.mxu0 %v1490
        %1621 = vmatpush.msra.mxu0 %v1484
        %1622 = vmatpush.msra.mxu0 %v1478
        %1623 = vmatpush.msra.mxu0 %v1472
        %1624 = vmatpush.msra.mxu0 %v1466
        %1625 = vmatpush.msra.mxu0 %v1460
        %1626 = vmatpush.msra.mxu0 %v1454
        %1627 = vmatpush.msra.mxu0 %v1448
        %1628 = vmatpush.msra.mxu0 %v1442
        %1629 = vmatpush.msra.mxu0 %v1436
        %1630 = vmatpush.msra.mxu0 %v1430
        %1631 = vmatpush.msra.mxu0 %v1424
        %1632 = vmatpush.msra.mxu0 %v1418
        %1633 = vmatpush.msra.mxu0 %v1412
        %1634 = vmatmul.f32.gmra.mxu0 %v1406
        %v1635 = vpop.f32.mrf.mxu0
        %v1636 = vadd.f32 0.0, %v1635
        %1637 = vmatmul.f32.gmra.mxu0 %v1403
        %v1638 = vpop.f32.mrf.mxu0
        %v1639 = vadd.f32 0.0, %v1638
        %1640 = vdwg.mxu0
        %1641 = vst [vmem:[%s291] sm:$0xff] %v1521
        %1642 = vst [vmem:[%s291 + $0x8] sm:$0xff] %v1544
        %1643 = vst [vmem:[%s291 + $0x10] sm:$0xff] %v1567
        %1644 = vst [vmem:[%s291 + $0x18] sm:$0xff] %v1590
        %1645 = vst [vmem:[%s291 + $0x20] sm:$0xff] %v1613
        %1646 = vst [vmem:[%s291 + $0x28] sm:$0xff] %v1636
        %1647 = vst [vmem:[%s291 + $0x30] sm:$0x7] %v1524
        %1648 = vst [vmem:[%s291 + $0x38] sm:$0x7] %v1547
        %1649 = vst [vmem:[%s291 + $0x40] sm:$0x7] %v1570
        %1650 = vst [vmem:[%s291 + $0x48] sm:$0x7] %v1593
        %1651 = vst [vmem:[%s291 + $0x50] sm:$0x7] %v1616
        %1652 = vst [vmem:[%s291 + $0x58] sm:$0x7] %v1639
        %v1653 = vld [vmem:[%s291] sm:$0xff]
        %v1654 = vld [vmem:[%s291 + $0x8] sm:$0xff]
        %v1655 = vld [vmem:[%s291 + $0x10] sm:$0xff]
        %v1656 = vld [vmem:[%s291 + $0x18] sm:$0xff]
        %v1657 = vld [vmem:[%s291 + $0x20] sm:$0xff]
        %v1658 = vld [vmem:[%s291 + $0x28] sm:$0xff]
        %v1659 = vld [vmem:[%s291 + $0x30] sm:$0x7]
        %v1660 = vld [vmem:[%s291 + $0x38] sm:$0x7]
        %v1661 = vld [vmem:[%s291 + $0x40] sm:$0x7]
        %v1662 = vld [vmem:[%s291 + $0x48] sm:$0x7]
        %v1663 = vld [vmem:[%s291 + $0x50] sm:$0x7]
        %v1664 = vld [vmem:[%s291 + $0x58] sm:$0x7]
        %s1665 = scalar_lea.vmem [#allocation7], 768
        %v1666 = vld [vmem:[%s1665] sm:$0xff]
        %v1667 = vld [vmem:[%s1665 + $0x8] sm:$0xff]
        %v1668 = vld [vmem:[%s1665 + $0x10] sm:$0xff]
        %v1669 = vld [vmem:[%s1665 + $0x18] sm:$0xff]
        %v1670 = vld [vmem:[%s1665 + $0x20] sm:$0xff]
        %v1671 = vld [vmem:[%s1665 + $0x28] sm:$0xff]
        %v1672 = vld [vmem:[%s1665 + $0x30] sm:$0xff]
        %v1673 = vld [vmem:[%s1665 + $0x38] sm:$0xff]
        %v1674 = vld [vmem:[%s1665 + $0x40] sm:$0xff]
        %v1675 = vld [vmem:[%s1665 + $0x48] sm:$0xff]
        %v1676 = vld [vmem:[%s1665 + $0x50] sm:$0xff]
        %v1677 = vld [vmem:[%s1665 + $0x58] sm:$0xff]
        %v1678 = vld [vmem:[%s1665 + $0x60] sm:$0xff]
        %v1679 = vld [vmem:[%s1665 + $0x68] sm:$0xff]
        %v1680 = vld [vmem:[%s1665 + $0x70] sm:$0xff]
        %v1681 = vld [vmem:[%s1665 + $0x78] sm:$0xff]
        %v1682 = vld [vmem:[%s1665 + $0x80] sm:$0xff]
        %v1683 = vld [vmem:[%s1665 + $0x88] sm:$0xff]
        %v1684 = vld [vmem:[%s1665 + $0x90] sm:$0xff]
        %v1685 = vld [vmem:[%s1665 + $0x98] sm:$0xff]
        %v1686 = vld [vmem:[%s1665 + $0xa0] sm:$0xff]
        %v1687 = vld [vmem:[%s1665 + $0xa8] sm:$0xff]
        %v1688 = vld [vmem:[%s1665 + $0xb0] sm:$0xff]
        %v1689 = vld [vmem:[%s1665 + $0xb8] sm:$0xff]
        %v1690 = vld [vmem:[%s1665 + $0xc0] sm:$0xff]
        %v1691 = vld [vmem:[%s1665 + $0xc8] sm:$0xff]
        %v1692 = vld [vmem:[%s1665 + $0xd0] sm:$0xff]
        %v1693 = vld [vmem:[%s1665 + $0xd8] sm:$0xff]
        %v1694 = vld [vmem:[%s1665 + $0xe0] sm:$0xff]
        %v1695 = vld [vmem:[%s1665 + $0xe8] sm:$0xff]
        %v1696 = vld [vmem:[%s1665 + $0xf0] sm:$0xff]
        %v1697 = vld [vmem:[%s1665 + $0xf8] sm:$0xff]
        %v1698 = vld [vmem:[%s1665 + $0x100] sm:$0xff]
        %v1699 = vld [vmem:[%s1665 + $0x108] sm:$0xff]
        %v1700 = vld [vmem:[%s1665 + $0x110] sm:$0xff]
        %v1701 = vld [vmem:[%s1665 + $0x118] sm:$0xff]
        %v1702 = vld [vmem:[%s1665 + $0x120] sm:$0xff]
        %v1703 = vld [vmem:[%s1665 + $0x128] sm:$0xff]
        %v1704 = vld [vmem:[%s1665 + $0x130] sm:$0xff]
        %v1705 = vld [vmem:[%s1665 + $0x138] sm:$0xff]
        %v1706 = vld [vmem:[%s1665 + $0x140] sm:$0xff]
        %v1707 = vld [vmem:[%s1665 + $0x148] sm:$0xff]
        %v1708 = vld [vmem:[%s1665 + $0x150] sm:$0xff]
        %v1709 = vld [vmem:[%s1665 + $0x158] sm:$0xff]
        %v1710 = vld [vmem:[%s1665 + $0x160] sm:$0xff]
        %v1711 = vld [vmem:[%s1665 + $0x168] sm:$0xff]
        %v1712 = vld [vmem:[%s1665 + $0x170] sm:$0xff]
        %v1713 = vld [vmem:[%s1665 + $0x178] sm:$0xff]
        %v1714 = vld [vmem:[%s1665 + $0x180] sm:$0xff]
        %v1715 = vld [vmem:[%s1665 + $0x188] sm:$0xff]
        %v1716 = vld [vmem:[%s1665 + $0x190] sm:$0xff]
        %v1717 = vld [vmem:[%s1665 + $0x198] sm:$0xff]
        %v1718 = vld [vmem:[%s1665 + $0x1a0] sm:$0xff]
        %v1719 = vld [vmem:[%s1665 + $0x1a8] sm:$0xff]
        %v1720 = vld [vmem:[%s1665 + $0x1b0] sm:$0xff]
        %v1721 = vld [vmem:[%s1665 + $0x1b8] sm:$0xff]
        %v1722 = vld [vmem:[%s1665 + $0x1c0] sm:$0xff]
        %v1723 = vld [vmem:[%s1665 + $0x1c8] sm:$0xff]
        %v1724 = vld [vmem:[%s1665 + $0x1d0] sm:$0xff]
        %v1725 = vld [vmem:[%s1665 + $0x1d8] sm:$0xff]
        %v1726 = vld [vmem:[%s1665 + $0x1e0] sm:$0xff]
        %v1727 = vld [vmem:[%s1665 + $0x1e8] sm:$0xff]
        %v1728 = vld [vmem:[%s1665 + $0x1f0] sm:$0xff]
        %v1729 = vld [vmem:[%s1665 + $0x1f8] sm:$0xff]
        %v1730 = vld [vmem:[%s1665 + $0x200] sm:$0xff]
        %v1731 = vld [vmem:[%s1665 + $0x208] sm:$0xff]
        %v1732 = vld [vmem:[%s1665 + $0x210] sm:$0xff]
        %v1733 = vld [vmem:[%s1665 + $0x218] sm:$0xff]
        %v1734 = vld [vmem:[%s1665 + $0x220] sm:$0xff]
        %v1735 = vld [vmem:[%s1665 + $0x228] sm:$0xff]
        %v1736 = vld [vmem:[%s1665 + $0x230] sm:$0xff]
        %v1737 = vld [vmem:[%s1665 + $0x238] sm:$0xff]
        %v1738 = vld [vmem:[%s1665 + $0x240] sm:$0xff]
        %v1739 = vld [vmem:[%s1665 + $0x248] sm:$0xff]
        %v1740 = vld [vmem:[%s1665 + $0x250] sm:$0xff]
        %v1741 = vld [vmem:[%s1665 + $0x258] sm:$0xff]
        %v1742 = vld [vmem:[%s1665 + $0x260] sm:$0xff]
        %v1743 = vld [vmem:[%s1665 + $0x268] sm:$0xff]
        %v1744 = vld [vmem:[%s1665 + $0x270] sm:$0xff]
        %v1745 = vld [vmem:[%s1665 + $0x278] sm:$0xff]
        %v1746 = vld [vmem:[%s1665 + $0x280] sm:$0xff]
        %v1747 = vld [vmem:[%s1665 + $0x288] sm:$0xff]
        %v1748 = vld [vmem:[%s1665 + $0x290] sm:$0xff]
        %v1749 = vld [vmem:[%s1665 + $0x298] sm:$0xff]
        %v1750 = vld [vmem:[%s1665 + $0x2a0] sm:$0xff]
        %v1751 = vld [vmem:[%s1665 + $0x2a8] sm:$0xff]
        %v1752 = vld [vmem:[%s1665 + $0x2b0] sm:$0xff]
        %v1753 = vld [vmem:[%s1665 + $0x2b8] sm:$0xff]
        %v1754 = vld [vmem:[%s1665 + $0x2c0] sm:$0xff]
        %v1755 = vld [vmem:[%s1665 + $0x2c8] sm:$0xff]
        %v1756 = vld [vmem:[%s1665 + $0x2d0] sm:$0xff]
        %v1757 = vld [vmem:[%s1665 + $0x2d8] sm:$0xff]
        %v1758 = vld [vmem:[%s1665 + $0x2e0] sm:$0xff]
        %v1759 = vld [vmem:[%s1665 + $0x2e8] sm:$0xff]
        %v1760 = vld [vmem:[%s1665 + $0x2f0] sm:$0xff]
        %v1761 = vld [vmem:[%s1665 + $0x2f8] sm:$0xff]
        %v1763 = vrot.slane %v1406, 1
        %v1764 = vrot.slane %v1403, 1
        %v1765 = vsel %vm461, %v1763, %v1764
        %1768 = vmatpush.msra.mxu0 %v1756
        %1769 = vmatpush.msra.mxu0 %v1750
        %1770 = vmatpush.msra.mxu0 %v1744
        %1771 = vmatpush.msra.mxu0 %v1738
        %1772 = vmatpush.msra.mxu0 %v1732
        %1773 = vmatpush.msra.mxu0 %v1726
        %1774 = vmatpush.msra.mxu0 %v1720
        %1775 = vmatpush.msra.mxu0 %v1714
        %1776 = vmatpush.msra.mxu0 %v1708
        %1777 = vmatpush.msra.mxu0 %v1702
        %1778 = vmatpush.msra.mxu0 %v1696
        %1779 = vmatpush.msra.mxu0 %v1690
        %1780 = vmatpush.msra.mxu0 %v1684
        %1781 = vmatpush.msra.mxu0 %v1678
        %1782 = vmatpush.msra.mxu0 %v1672
        %1783 = vmatpush.msra.mxu0 %v1666
        %1784 = vmatmul.f32.gmra.mxu0 %v1765
        %v1785 = vpop.f32.mrf.mxu0
        %v1786 = vadd.f32 0.0, %v1785
        %1787 = vmatmul.f32.gmra.mxu0 %v1764
        %v1788 = vpop.f32.mrf.mxu0
        %v1789 = vadd.f32 0.0, %v1788
        %1790 = vdwg.mxu0
        %1791 = vmatpush.msra.mxu0 %v1757
        %1792 = vmatpush.msra.mxu0 %v1751
        %1793 = vmatpush.msra.mxu0 %v1745
        %1794 = vmatpush.msra.mxu0 %v1739
        %1795 = vmatpush.msra.mxu0 %v1733
        %1796 = vmatpush.msra.mxu0 %v1727
        %1797 = vmatpush.msra.mxu0 %v1721
        %1798 = vmatpush.msra.mxu0 %v1715
        %1799 = vmatpush.msra.mxu0 %v1709
        %1800 = vmatpush.msra.mxu0 %v1703
        %1801 = vmatpush.msra.mxu0 %v1697
        %1802 = vmatpush.msra.mxu0 %v1691
        %1803 = vmatpush.msra.mxu0 %v1685
        %1804 = vmatpush.msra.mxu0 %v1679
        %1805 = vmatpush.msra.mxu0 %v1673
        %1806 = vmatpush.msra.mxu0 %v1667
        %1807 = vmatmul.f32.gmra.mxu0 %v1765
        %v1808 = vpop.f32.mrf.mxu0
        %v1809 = vadd.f32 0.0, %v1808
        %1810 = vmatmul.f32.gmra.mxu0 %v1764
        %v1811 = vpop.f32.mrf.mxu0
        %v1812 = vadd.f32 0.0, %v1811
        %1813 = vdwg.mxu0
        %1814 = vmatpush.msra.mxu0 %v1758
        %1815 = vmatpush.msra.mxu0 %v1752
        %1816 = vmatpush.msra.mxu0 %v1746
        %1817 = vmatpush.msra.mxu0 %v1740
        %1818 = vmatpush.msra.mxu0 %v1734
        %1819 = vmatpush.msra.mxu0 %v1728
        %1820 = vmatpush.msra.mxu0 %v1722
        %1821 = vmatpush.msra.mxu0 %v1716
        %1822 = vmatpush.msra.mxu0 %v1710
        %1823 = vmatpush.msra.mxu0 %v1704
        %1824 = vmatpush.msra.mxu0 %v1698
        %1825 = vmatpush.msra.mxu0 %v1692
        %1826 = vmatpush.msra.mxu0 %v1686
        %1827 = vmatpush.msra.mxu0 %v1680
        %1828 = vmatpush.msra.mxu0 %v1674
        %1829 = vmatpush.msra.mxu0 %v1668
        %1830 = vmatmul.f32.gmra.mxu0 %v1765
        %v1831 = vpop.f32.mrf.mxu0
        %v1832 = vadd.f32 0.0, %v1831
        %1833 = vmatmul.f32.gmra.mxu0 %v1764
        %v1834 = vpop.f32.mrf.mxu0
        %v1835 = vadd.f32 0.0, %v1834
        %1836 = vdwg.mxu0
        %1837 = vmatpush.msra.mxu0 %v1759
        %1838 = vmatpush.msra.mxu0 %v1753
        %1839 = vmatpush.msra.mxu0 %v1747
        %1840 = vmatpush.msra.mxu0 %v1741
        %1841 = vmatpush.msra.mxu0 %v1735
        %1842 = vmatpush.msra.mxu0 %v1729
        %1843 = vmatpush.msra.mxu0 %v1723
        %1844 = vmatpush.msra.mxu0 %v1717
        %1845 = vmatpush.msra.mxu0 %v1711
        %1846 = vmatpush.msra.mxu0 %v1705
        %1847 = vmatpush.msra.mxu0 %v1699
        %1848 = vmatpush.msra.mxu0 %v1693
        %1849 = vmatpush.msra.mxu0 %v1687
        %1850 = vmatpush.msra.mxu0 %v1681
        %1851 = vmatpush.msra.mxu0 %v1675
        %1852 = vmatpush.msra.mxu0 %v1669
        %1853 = vmatmul.f32.gmra.mxu0 %v1765
        %v1854 = vpop.f32.mrf.mxu0
        %v1855 = vadd.f32 0.0, %v1854
        %1856 = vmatmul.f32.gmra.mxu0 %v1764
        %v1857 = vpop.f32.mrf.mxu0
        %v1858 = vadd.f32 0.0, %v1857
        %1859 = vdwg.mxu0
        %1860 = vmatpush.msra.mxu0 %v1760
        %1861 = vmatpush.msra.mxu0 %v1754
        %1862 = vmatpush.msra.mxu0 %v1748
        %1863 = vmatpush.msra.mxu0 %v1742
        %1864 = vmatpush.msra.mxu0 %v1736
        %1865 = vmatpush.msra.mxu0 %v1730
        %1866 = vmatpush.msra.mxu0 %v1724
        %1867 = vmatpush.msra.mxu0 %v1718
        %1868 = vmatpush.msra.mxu0 %v1712
        %1869 = vmatpush.msra.mxu0 %v1706
        %1870 = vmatpush.msra.mxu0 %v1700
        %1871 = vmatpush.msra.mxu0 %v1694
        %1872 = vmatpush.msra.mxu0 %v1688
        %1873 = vmatpush.msra.mxu0 %v1682
        %1874 = vmatpush.msra.mxu0 %v1676
        %1875 = vmatpush.msra.mxu0 %v1670
        %1876 = vmatmul.f32.gmra.mxu0 %v1765
        %v1877 = vpop.f32.mrf.mxu0
        %v1878 = vadd.f32 0.0, %v1877
        %1879 = vmatmul.f32.gmra.mxu0 %v1764
        %v1880 = vpop.f32.mrf.mxu0
        %v1881 = vadd.f32 0.0, %v1880
        %1882 = vdwg.mxu0
        %1883 = vmatpush.msra.mxu0 %v1761
        %1884 = vmatpush.msra.mxu0 %v1755
        %1885 = vmatpush.msra.mxu0 %v1749
        %1886 = vmatpush.msra.mxu0 %v1743
        %1887 = vmatpush.msra.mxu0 %v1737
        %1888 = vmatpush.msra.mxu0 %v1731
        %1889 = vmatpush.msra.mxu0 %v1725
        %1890 = vmatpush.msra.mxu0 %v1719
        %1891 = vmatpush.msra.mxu0 %v1713
        %1892 = vmatpush.msra.mxu0 %v1707
        %1893 = vmatpush.msra.mxu0 %v1701
        %1894 = vmatpush.msra.mxu0 %v1695
        %1895 = vmatpush.msra.mxu0 %v1689
        %1896 = vmatpush.msra.mxu0 %v1683
        %1897 = vmatpush.msra.mxu0 %v1677
        %1898 = vmatpush.msra.mxu0 %v1671
        %1899 = vmatmul.f32.gmra.mxu0 %v1765
        %v1900 = vpop.f32.mrf.mxu0
        %v1901 = vadd.f32 0.0, %v1900
        %1902 = vmatmul.f32.gmra.mxu0 %v1764
        %v1903 = vpop.f32.mrf.mxu0
        %v1904 = vadd.f32 0.0, %v1903
        %1905 = vdwg.mxu0
        %v1906 = vadd.f32 %v1653, %v1786
        %v1907 = vadd.f32 %v1654, %v1809
        %v1908 = vadd.f32 %v1655, %v1832
        %v1909 = vadd.f32 %v1656, %v1855
        %v1910 = vadd.f32 %v1657, %v1878
        %v1911 = vadd.f32 %v1658, %v1901
        %v1912 = vadd.f32 %v1659, %v1789
        %v1913 = vadd.f32 %v1660, %v1812
        %v1914 = vadd.f32 %v1661, %v1835
        %v1915 = vadd.f32 %v1662, %v1858
        %v1916 = vadd.f32 %v1663, %v1881
        %v1917 = vadd.f32 %v1664, %v1904
        %1918 = vst [vmem:[%s291] sm:$0xff] %v1906
        %1919 = vst [vmem:[%s291 + $0x8] sm:$0xff] %v1907
        %1920 = vst [vmem:[%s291 + $0x10] sm:$0xff] %v1908
        %1921 = vst [vmem:[%s291 + $0x18] sm:$0xff] %v1909
        %1922 = vst [vmem:[%s291 + $0x20] sm:$0xff] %v1910
        %1923 = vst [vmem:[%s291 + $0x28] sm:$0xff] %v1911
        %1924 = vst [vmem:[%s291 + $0x30] sm:$0x7] %v1912
        %1925 = vst [vmem:[%s291 + $0x38] sm:$0x7] %v1913
        %1926 = vst [vmem:[%s291 + $0x40] sm:$0x7] %v1914
        %1927 = vst [vmem:[%s291 + $0x48] sm:$0x7] %v1915
        %1928 = vst [vmem:[%s291 + $0x50] sm:$0x7] %v1916
        %1929 = vst [vmem:[%s291 + $0x58] sm:$0x7] %v1917
        %v1930 = vld [vmem:[%s291] sm:$0xff]
        %v1931 = vld [vmem:[%s291 + $0x8] sm:$0xff]
        %v1932 = vld [vmem:[%s291 + $0x10] sm:$0xff]
        %v1933 = vld [vmem:[%s291 + $0x18] sm:$0xff]
        %v1934 = vld [vmem:[%s291 + $0x20] sm:$0xff]
        %v1935 = vld [vmem:[%s291 + $0x28] sm:$0xff]
        %v1936 = vld [vmem:[%s291 + $0x30] sm:$0x7]
        %v1937 = vld [vmem:[%s291 + $0x38] sm:$0x7]
        %v1938 = vld [vmem:[%s291 + $0x40] sm:$0x7]
        %v1939 = vld [vmem:[%s291 + $0x48] sm:$0x7]
        %v1940 = vld [vmem:[%s291 + $0x50] sm:$0x7]
        %v1941 = vld [vmem:[%s291 + $0x58] sm:$0x7]
        %s1942 = scalar_lea.vmem [#allocation7], 1536
        %v1943 = vld [vmem:[%s1942] sm:$0xff]
        %v1944 = vld [vmem:[%s1942 + $0x8] sm:$0xff]
        %v1945 = vld [vmem:[%s1942 + $0x10] sm:$0xff]
        %v1946 = vld [vmem:[%s1942 + $0x18] sm:$0xff]
        %v1947 = vld [vmem:[%s1942 + $0x20] sm:$0xff]
        %v1948 = vld [vmem:[%s1942 + $0x28] sm:$0xff]
        %v1949 = vld [vmem:[%s1942 + $0x30] sm:$0xff]
        %v1950 = vld [vmem:[%s1942 + $0x38] sm:$0xff]
        %v1951 = vld [vmem:[%s1942 + $0x40] sm:$0xff]
        %v1952 = vld [vmem:[%s1942 + $0x48] sm:$0xff]
        %v1953 = vld [vmem:[%s1942 + $0x50] sm:$0xff]
        %v1954 = vld [vmem:[%s1942 + $0x58] sm:$0xff]
        %v1955 = vld [vmem:[%s1942 + $0x60] sm:$0xff]
        %v1956 = vld [vmem:[%s1942 + $0x68] sm:$0xff]
        %v1957 = vld [vmem:[%s1942 + $0x70] sm:$0xff]
        %v1958 = vld [vmem:[%s1942 + $0x78] sm:$0xff]
        %v1959 = vld [vmem:[%s1942 + $0x80] sm:$0xff]
        %v1960 = vld [vmem:[%s1942 + $0x88] sm:$0xff]
        %v1961 = vld [vmem:[%s1942 + $0x90] sm:$0xff]
        %v1962 = vld [vmem:[%s1942 + $0x98] sm:$0xff]
        %v1963 = vld [vmem:[%s1942 + $0xa0] sm:$0xff]
        %v1964 = vld [vmem:[%s1942 + $0xa8] sm:$0xff]
        %v1965 = vld [vmem:[%s1942 + $0xb0] sm:$0xff]
        %v1966 = vld [vmem:[%s1942 + $0xb8] sm:$0xff]
        %v1967 = vld [vmem:[%s1942 + $0xc0] sm:$0xff]
        %v1968 = vld [vmem:[%s1942 + $0xc8] sm:$0xff]
        %v1969 = vld [vmem:[%s1942 + $0xd0] sm:$0xff]
        %v1970 = vld [vmem:[%s1942 + $0xd8] sm:$0xff]
        %v1971 = vld [vmem:[%s1942 + $0xe0] sm:$0xff]
        %v1972 = vld [vmem:[%s1942 + $0xe8] sm:$0xff]
        %v1973 = vld [vmem:[%s1942 + $0xf0] sm:$0xff]
        %v1974 = vld [vmem:[%s1942 + $0xf8] sm:$0xff]
        %v1975 = vld [vmem:[%s1942 + $0x100] sm:$0xff]
        %v1976 = vld [vmem:[%s1942 + $0x108] sm:$0xff]
        %v1977 = vld [vmem:[%s1942 + $0x110] sm:$0xff]
        %v1978 = vld [vmem:[%s1942 + $0x118] sm:$0xff]
        %v1979 = vld [vmem:[%s1942 + $0x120] sm:$0xff]
        %v1980 = vld [vmem:[%s1942 + $0x128] sm:$0xff]
        %v1981 = vld [vmem:[%s1942 + $0x130] sm:$0xff]
        %v1982 = vld [vmem:[%s1942 + $0x138] sm:$0xff]
        %v1983 = vld [vmem:[%s1942 + $0x140] sm:$0xff]
        %v1984 = vld [vmem:[%s1942 + $0x148] sm:$0xff]
        %v1985 = vld [vmem:[%s1942 + $0x150] sm:$0xff]
        %v1986 = vld [vmem:[%s1942 + $0x158] sm:$0xff]
        %v1987 = vld [vmem:[%s1942 + $0x160] sm:$0xff]
        %v1988 = vld [vmem:[%s1942 + $0x168] sm:$0xff]
        %v1989 = vld [vmem:[%s1942 + $0x170] sm:$0xff]
        %v1990 = vld [vmem:[%s1942 + $0x178] sm:$0xff]
        %v1991 = vld [vmem:[%s1942 + $0x180] sm:$0xff]
        %v1992 = vld [vmem:[%s1942 + $0x188] sm:$0xff]
        %v1993 = vld [vmem:[%s1942 + $0x190] sm:$0xff]
        %v1994 = vld [vmem:[%s1942 + $0x198] sm:$0xff]
        %v1995 = vld [vmem:[%s1942 + $0x1a0] sm:$0xff]
        %v1996 = vld [vmem:[%s1942 + $0x1a8] sm:$0xff]
        %v1997 = vld [vmem:[%s1942 + $0x1b0] sm:$0xff]
        %v1998 = vld [vmem:[%s1942 + $0x1b8] sm:$0xff]
        %v1999 = vld [vmem:[%s1942 + $0x1c0] sm:$0xff]
        %v2000 = vld [vmem:[%s1942 + $0x1c8] sm:$0xff]
        %v2001 = vld [vmem:[%s1942 + $0x1d0] sm:$0xff]
        %v2002 = vld [vmem:[%s1942 + $0x1d8] sm:$0xff]
        %v2003 = vld [vmem:[%s1942 + $0x1e0] sm:$0xff]
        %v2004 = vld [vmem:[%s1942 + $0x1e8] sm:$0xff]
        %v2005 = vld [vmem:[%s1942 + $0x1f0] sm:$0xff]
        %v2006 = vld [vmem:[%s1942 + $0x1f8] sm:$0xff]
        %v2007 = vld [vmem:[%s1942 + $0x200] sm:$0xff]
        %v2008 = vld [vmem:[%s1942 + $0x208] sm:$0xff]
        %v2009 = vld [vmem:[%s1942 + $0x210] sm:$0xff]
        %v2010 = vld [vmem:[%s1942 + $0x218] sm:$0xff]
        %v2011 = vld [vmem:[%s1942 + $0x220] sm:$0xff]
        %v2012 = vld [vmem:[%s1942 + $0x228] sm:$0xff]
        %v2013 = vld [vmem:[%s1942 + $0x230] sm:$0xff]
        %v2014 = vld [vmem:[%s1942 + $0x238] sm:$0xff]
        %v2015 = vld [vmem:[%s1942 + $0x240] sm:$0xff]
        %v2016 = vld [vmem:[%s1942 + $0x248] sm:$0xff]
        %v2017 = vld [vmem:[%s1942 + $0x250] sm:$0xff]
        %v2018 = vld [vmem:[%s1942 + $0x258] sm:$0xff]
        %v2019 = vld [vmem:[%s1942 + $0x260] sm:$0xff]
        %v2020 = vld [vmem:[%s1942 + $0x268] sm:$0xff]
        %v2021 = vld [vmem:[%s1942 + $0x270] sm:$0xff]
        %v2022 = vld [vmem:[%s1942 + $0x278] sm:$0xff]
        %v2023 = vld [vmem:[%s1942 + $0x280] sm:$0xff]
        %v2024 = vld [vmem:[%s1942 + $0x288] sm:$0xff]
        %v2025 = vld [vmem:[%s1942 + $0x290] sm:$0xff]
        %v2026 = vld [vmem:[%s1942 + $0x298] sm:$0xff]
        %v2027 = vld [vmem:[%s1942 + $0x2a0] sm:$0xff]
        %v2028 = vld [vmem:[%s1942 + $0x2a8] sm:$0xff]
        %v2029 = vld [vmem:[%s1942 + $0x2b0] sm:$0xff]
        %v2030 = vld [vmem:[%s1942 + $0x2b8] sm:$0xff]
        %v2031 = vld [vmem:[%s1942 + $0x2c0] sm:$0xff]
        %v2032 = vld [vmem:[%s1942 + $0x2c8] sm:$0xff]
        %v2033 = vld [vmem:[%s1942 + $0x2d0] sm:$0xff]
        %v2034 = vld [vmem:[%s1942 + $0x2d8] sm:$0xff]
        %v2035 = vld [vmem:[%s1942 + $0x2e0] sm:$0xff]
        %v2036 = vld [vmem:[%s1942 + $0x2e8] sm:$0xff]
        %v2037 = vld [vmem:[%s1942 + $0x2f0] sm:$0xff]
        %v2038 = vld [vmem:[%s1942 + $0x2f8] sm:$0xff]
        %v2039 = vrot.slane %v1406, 2
        %v2040 = vrot.slane %v1403, 2
        %v2041 = vsel %vm928, %v2039, %v2040
        %2044 = vmatpush.msra.mxu0 %v2033
        %2045 = vmatpush.msra.mxu0 %v2027
        %2046 = vmatpush.msra.mxu0 %v2021
        %2047 = vmatpush.msra.mxu0 %v2015
        %2048 = vmatpush.msra.mxu0 %v2009
        %2049 = vmatpush.msra.mxu0 %v2003
        %2050 = vmatpush.msra.mxu0 %v1997
        %2051 = vmatpush.msra.mxu0 %v1991
        %2052 = vmatpush.msra.mxu0 %v1985
        %2053 = vmatpush.msra.mxu0 %v1979
        %2054 = vmatpush.msra.mxu0 %v1973
        %2055 = vmatpush.msra.mxu0 %v1967
        %2056 = vmatpush.msra.mxu0 %v1961
        %2057 = vmatpush.msra.mxu0 %v1955
        %2058 = vmatpush.msra.mxu0 %v1949
        %2059 = vmatpush.msra.mxu0 %v1943
        %2060 = vmatmul.f32.gmra.mxu0 %v2041
        %v2061 = vpop.f32.mrf.mxu0
        %v2062 = vadd.f32 0.0, %v2061
        %2063 = vmatmul.f32.gmra.mxu0 %v2040
        %v2064 = vpop.f32.mrf.mxu0
        %v2065 = vadd.f32 0.0, %v2064
        %2066 = vdwg.mxu0
        %2067 = vmatpush.msra.mxu0 %v2034
        %2068 = vmatpush.msra.mxu0 %v2028
        %2069 = vmatpush.msra.mxu0 %v2022
        %2070 = vmatpush.msra.mxu0 %v2016
        %2071 = vmatpush.msra.mxu0 %v2010
        %2072 = vmatpush.msra.mxu0 %v2004
        %2073 = vmatpush.msra.mxu0 %v1998
        %2074 = vmatpush.msra.mxu0 %v1992
        %2075 = vmatpush.msra.mxu0 %v1986
        %2076 = vmatpush.msra.mxu0 %v1980
        %2077 = vmatpush.msra.mxu0 %v1974
        %2078 = vmatpush.msra.mxu0 %v1968
        %2079 = vmatpush.msra.mxu0 %v1962
        %2080 = vmatpush.msra.mxu0 %v1956
        %2081 = vmatpush.msra.mxu0 %v1950
        %2082 = vmatpush.msra.mxu0 %v1944
        %2083 = vmatmul.f32.gmra.mxu0 %v2041
        %v2084 = vpop.f32.mrf.mxu0
        %v2085 = vadd.f32 0.0, %v2084
        %2086 = vmatmul.f32.gmra.mxu0 %v2040
        %v2087 = vpop.f32.mrf.mxu0
        %v2088 = vadd.f32 0.0, %v2087
        %2089 = vdwg.mxu0
        %2090 = vmatpush.msra.mxu0 %v2035
        %2091 = vmatpush.msra.mxu0 %v2029
        %2092 = vmatpush.msra.mxu0 %v2023
        %2093 = vmatpush.msra.mxu0 %v2017
        %2094 = vmatpush.msra.mxu0 %v2011
        %2095 = vmatpush.msra.mxu0 %v2005
        %2096 = vmatpush.msra.mxu0 %v1999
        %2097 = vmatpush.msra.mxu0 %v1993
        %2098 = vmatpush.msra.mxu0 %v1987
        %2099 = vmatpush.msra.mxu0 %v1981
        %2100 = vmatpush.msra.mxu0 %v1975
        %2101 = vmatpush.msra.mxu0 %v1969
        %2102 = vmatpush.msra.mxu0 %v1963
        %2103 = vmatpush.msra.mxu0 %v1957
        %2104 = vmatpush.msra.mxu0 %v1951
        %2105 = vmatpush.msra.mxu0 %v1945
        %2106 = vmatmul.f32.gmra.mxu0 %v2041
        %v2107 = vpop.f32.mrf.mxu0
        %v2108 = vadd.f32 0.0, %v2107
        %2109 = vmatmul.f32.gmra.mxu0 %v2040
        %v2110 = vpop.f32.mrf.mxu0
        %v2111 = vadd.f32 0.0, %v2110
        %2112 = vdwg.mxu0
        %2113 = vmatpush.msra.mxu0 %v2036
        %2114 = vmatpush.msra.mxu0 %v2030
        %2115 = vmatpush.msra.mxu0 %v2024
        %2116 = vmatpush.msra.mxu0 %v2018
        %2117 = vmatpush.msra.mxu0 %v2012
        %2118 = vmatpush.msra.mxu0 %v2006
        %2119 = vmatpush.msra.mxu0 %v2000
        %2120 = vmatpush.msra.mxu0 %v1994
        %2121 = vmatpush.msra.mxu0 %v1988
        %2122 = vmatpush.msra.mxu0 %v1982
        %2123 = vmatpush.msra.mxu0 %v1976
        %2124 = vmatpush.msra.mxu0 %v1970
        %2125 = vmatpush.msra.mxu0 %v1964
        %2126 = vmatpush.msra.mxu0 %v1958
        %2127 = vmatpush.msra.mxu0 %v1952
        %2128 = vmatpush.msra.mxu0 %v1946
        %2129 = vmatmul.f32.gmra.mxu0 %v2041
        %v2130 = vpop.f32.mrf.mxu0
        %v2131 = vadd.f32 0.0, %v2130
        %2132 = vmatmul.f32.gmra.mxu0 %v2040
        %v2133 = vpop.f32.mrf.mxu0
        %v2134 = vadd.f32 0.0, %v2133
        %2135 = vdwg.mxu0
        %2136 = vmatpush.msra.mxu0 %v2037
        %2137 = vmatpush.msra.mxu0 %v2031
        %2138 = vmatpush.msra.mxu0 %v2025
        %2139 = vmatpush.msra.mxu0 %v2019
        %2140 = vmatpush.msra.mxu0 %v2013
        %2141 = vmatpush.msra.mxu0 %v2007
        %2142 = vmatpush.msra.mxu0 %v2001
        %2143 = vmatpush.msra.mxu0 %v1995
        %2144 = vmatpush.msra.mxu0 %v1989
        %2145 = vmatpush.msra.mxu0 %v1983
        %2146 = vmatpush.msra.mxu0 %v1977
        %2147 = vmatpush.msra.mxu0 %v1971
        %2148 = vmatpush.msra.mxu0 %v1965
        %2149 = vmatpush.msra.mxu0 %v1959
        %2150 = vmatpush.msra.mxu0 %v1953
        %2151 = vmatpush.msra.mxu0 %v1947
        %2152 = vmatmul.f32.gmra.mxu0 %v2041
        %v2153 = vpop.f32.mrf.mxu0
        %v2154 = vadd.f32 0.0, %v2153
        %2155 = vmatmul.f32.gmra.mxu0 %v2040
        %v2156 = vpop.f32.mrf.mxu0
        %v2157 = vadd.f32 0.0, %v2156
        %2158 = vdwg.mxu0
        %2159 = vmatpush.msra.mxu0 %v2038
        %2160 = vmatpush.msra.mxu0 %v2032
        %2161 = vmatpush.msra.mxu0 %v2026
        %2162 = vmatpush.msra.mxu0 %v2020
        %2163 = vmatpush.msra.mxu0 %v2014
        %2164 = vmatpush.msra.mxu0 %v2008
        %2165 = vmatpush.msra.mxu0 %v2002
        %2166 = vmatpush.msra.mxu0 %v1996
        %2167 = vmatpush.msra.mxu0 %v1990
        %2168 = vmatpush.msra.mxu0 %v1984
        %2169 = vmatpush.msra.mxu0 %v1978
        %2170 = vmatpush.msra.mxu0 %v1972
        %2171 = vmatpush.msra.mxu0 %v1966
        %2172 = vmatpush.msra.mxu0 %v1960
        %2173 = vmatpush.msra.mxu0 %v1954
        %2174 = vmatpush.msra.mxu0 %v1948
        %2175 = vmatmul.f32.gmra.mxu0 %v2041
        %v2176 = vpop.f32.mrf.mxu0
        %v2177 = vadd.f32 0.0, %v2176
        %2178 = vmatmul.f32.gmra.mxu0 %v2040
        %v2179 = vpop.f32.mrf.mxu0
        %v2180 = vadd.f32 0.0, %v2179
        %2181 = vdwg.mxu0
        %v2182 = vadd.f32 %v1930, %v2062
        %v2183 = vadd.f32 %v1931, %v2085
        %v2184 = vadd.f32 %v1932, %v2108
        %v2185 = vadd.f32 %v1933, %v2131
        %v2186 = vadd.f32 %v1934, %v2154
        %v2187 = vadd.f32 %v1935, %v2177
        %v2188 = vadd.f32 %v1936, %v2065
        %v2189 = vadd.f32 %v1937, %v2088
        %v2190 = vadd.f32 %v1938, %v2111
        %v2191 = vadd.f32 %v1939, %v2134
        %v2192 = vadd.f32 %v1940, %v2157
        %v2193 = vadd.f32 %v1941, %v2180
        %2194 = vst [vmem:[%s291] sm:$0xff] %v2182
        %2195 = vst [vmem:[%s291 + $0x8] sm:$0xff] %v2183
        %2196 = vst [vmem:[%s291 + $0x10] sm:$0xff] %v2184
        %2197 = vst [vmem:[%s291 + $0x18] sm:$0xff] %v2185
        %2198 = vst [vmem:[%s291 + $0x20] sm:$0xff] %v2186
        %2199 = vst [vmem:[%s291 + $0x28] sm:$0xff] %v2187
        %2200 = vst [vmem:[%s291 + $0x30] sm:$0x7] %v2188
        %2201 = vst [vmem:[%s291 + $0x38] sm:$0x7] %v2189
        %2202 = vst [vmem:[%s291 + $0x40] sm:$0x7] %v2190
        %2203 = vst [vmem:[%s291 + $0x48] sm:$0x7] %v2191
        %2204 = vst [vmem:[%s291 + $0x50] sm:$0x7] %v2192
        %2205 = vst [vmem:[%s291 + $0x58] sm:$0x7] %v2193
        %v2206 = vld [vmem:[%s291] sm:$0xff]
        %v2207 = vld [vmem:[%s291 + $0x8] sm:$0xff]
        %v2208 = vld [vmem:[%s291 + $0x10] sm:$0xff]
        %v2209 = vld [vmem:[%s291 + $0x18] sm:$0xff]
        %v2210 = vld [vmem:[%s291 + $0x20] sm:$0xff]
        %v2211 = vld [vmem:[%s291 + $0x28] sm:$0xff]
        %v2212 = vld [vmem:[%s291 + $0x30] sm:$0x7]
        %v2213 = vld [vmem:[%s291 + $0x38] sm:$0x7]
        %v2214 = vld [vmem:[%s291 + $0x40] sm:$0x7]
        %v2215 = vld [vmem:[%s291 + $0x48] sm:$0x7]
        %v2216 = vld [vmem:[%s291 + $0x50] sm:$0x7]
        %v2217 = vld [vmem:[%s291 + $0x58] sm:$0x7]
        %s2218 = scalar_lea.vmem [#allocation7], 2304
        %v2219 = vld [vmem:[%s2218] sm:$0xff]
        %v2220 = vld [vmem:[%s2218 + $0x8] sm:$0xff]
        %v2221 = vld [vmem:[%s2218 + $0x10] sm:$0xff]
        %v2222 = vld [vmem:[%s2218 + $0x18] sm:$0xff]
        %v2223 = vld [vmem:[%s2218 + $0x20] sm:$0xff]
        %v2224 = vld [vmem:[%s2218 + $0x28] sm:$0xff]
        %v2225 = vld [vmem:[%s2218 + $0x30] sm:$0xff]
        %v2226 = vld [vmem:[%s2218 + $0x38] sm:$0xff]
        %v2227 = vld [vmem:[%s2218 + $0x40] sm:$0xff]
        %v2228 = vld [vmem:[%s2218 + $0x48] sm:$0xff]
        %v2229 = vld [vmem:[%s2218 + $0x50] sm:$0xff]
        %v2230 = vld [vmem:[%s2218 + $0x58] sm:$0xff]
        %v2231 = vld [vmem:[%s2218 + $0x60] sm:$0xff]
        %v2232 = vld [vmem:[%s2218 + $0x68] sm:$0xff]
        %v2233 = vld [vmem:[%s2218 + $0x70] sm:$0xff]
        %v2234 = vld [vmem:[%s2218 + $0x78] sm:$0xff]
        %v2235 = vld [vmem:[%s2218 + $0x80] sm:$0xff]
        %v2236 = vld [vmem:[%s2218 + $0x88] sm:$0xff]
        %v2237 = vld [vmem:[%s2218 + $0x90] sm:$0xff]
        %v2238 = vld [vmem:[%s2218 + $0x98] sm:$0xff]
        %v2239 = vld [vmem:[%s2218 + $0xa0] sm:$0xff]
        %v2240 = vld [vmem:[%s2218 + $0xa8] sm:$0xff]
        %v2241 = vld [vmem:[%s2218 + $0xb0] sm:$0xff]
        %v2242 = vld [vmem:[%s2218 + $0xb8] sm:$0xff]
        %v2243 = vld [vmem:[%s2218 + $0xc0] sm:$0xff]
        %v2244 = vld [vmem:[%s2218 + $0xc8] sm:$0xff]
        %v2245 = vld [vmem:[%s2218 + $0xd0] sm:$0xff]
        %v2246 = vld [vmem:[%s2218 + $0xd8] sm:$0xff]
        %v2247 = vld [vmem:[%s2218 + $0xe0] sm:$0xff]
        %v2248 = vld [vmem:[%s2218 + $0xe8] sm:$0xff]
        %v2249 = vld [vmem:[%s2218 + $0xf0] sm:$0xff]
        %v2250 = vld [vmem:[%s2218 + $0xf8] sm:$0xff]
        %v2251 = vld [vmem:[%s2218 + $0x100] sm:$0xff]
        %v2252 = vld [vmem:[%s2218 + $0x108] sm:$0xff]
        %v2253 = vld [vmem:[%s2218 + $0x110] sm:$0xff]
        %v2254 = vld [vmem:[%s2218 + $0x118] sm:$0xff]
        %v2255 = vld [vmem:[%s2218 + $0x120] sm:$0xff]
        %v2256 = vld [vmem:[%s2218 + $0x128] sm:$0xff]
        %v2257 = vld [vmem:[%s2218 + $0x130] sm:$0xff]
        %v2258 = vld [vmem:[%s2218 + $0x138] sm:$0xff]
        %v2259 = vld [vmem:[%s2218 + $0x140] sm:$0xff]
        %v2260 = vld [vmem:[%s2218 + $0x148] sm:$0xff]
        %v2261 = vld [vmem:[%s2218 + $0x150] sm:$0xff]
        %v2262 = vld [vmem:[%s2218 + $0x158] sm:$0xff]
        %v2263 = vld [vmem:[%s2218 + $0x160] sm:$0xff]
        %v2264 = vld [vmem:[%s2218 + $0x168] sm:$0xff]
        %v2265 = vld [vmem:[%s2218 + $0x170] sm:$0xff]
        %v2266 = vld [vmem:[%s2218 + $0x178] sm:$0xff]
        %v2267 = vld [vmem:[%s2218 + $0x180] sm:$0xff]
        %v2268 = vld [vmem:[%s2218 + $0x188] sm:$0xff]
        %v2269 = vld [vmem:[%s2218 + $0x190] sm:$0xff]
        %v2270 = vld [vmem:[%s2218 + $0x198] sm:$0xff]
        %v2271 = vld [vmem:[%s2218 + $0x1a0] sm:$0xff]
        %v2272 = vld [vmem:[%s2218 + $0x1a8] sm:$0xff]
        %v2273 = vld [vmem:[%s2218 + $0x1b0] sm:$0xff]
        %v2274 = vld [vmem:[%s2218 + $0x1b8] sm:$0xff]
        %v2275 = vld [vmem:[%s2218 + $0x1c0] sm:$0xff]
        %v2276 = vld [vmem:[%s2218 + $0x1c8] sm:$0xff]
        %v2277 = vld [vmem:[%s2218 + $0x1d0] sm:$0xff]
        %v2278 = vld [vmem:[%s2218 + $0x1d8] sm:$0xff]
        %v2279 = vld [vmem:[%s2218 + $0x1e0] sm:$0xff]
        %v2280 = vld [vmem:[%s2218 + $0x1e8] sm:$0xff]
        %v2281 = vld [vmem:[%s2218 + $0x1f0] sm:$0xff]
        %v2282 = vld [vmem:[%s2218 + $0x1f8] sm:$0xff]
        %v2283 = vld [vmem:[%s2218 + $0x200] sm:$0xff]
        %v2284 = vld [vmem:[%s2218 + $0x208] sm:$0xff]
        %v2285 = vld [vmem:[%s2218 + $0x210] sm:$0xff]
        %v2286 = vld [vmem:[%s2218 + $0x218] sm:$0xff]
        %v2287 = vld [vmem:[%s2218 + $0x220] sm:$0xff]
        %v2288 = vld [vmem:[%s2218 + $0x228] sm:$0xff]
        %v2289 = vld [vmem:[%s2218 + $0x230] sm:$0xff]
        %v2290 = vld [vmem:[%s2218 + $0x238] sm:$0xff]
        %v2291 = vld [vmem:[%s2218 + $0x240] sm:$0xff]
        %v2292 = vld [vmem:[%s2218 + $0x248] sm:$0xff]
        %v2293 = vld [vmem:[%s2218 + $0x250] sm:$0xff]
        %v2294 = vld [vmem:[%s2218 + $0x258] sm:$0xff]
        %v2295 = vld [vmem:[%s2218 + $0x260] sm:$0xff]
        %v2296 = vld [vmem:[%s2218 + $0x268] sm:$0xff]
        %v2297 = vld [vmem:[%s2218 + $0x270] sm:$0xff]
        %v2298 = vld [vmem:[%s2218 + $0x278] sm:$0xff]
        %v2299 = vld [vmem:[%s2218 + $0x280] sm:$0xff]
        %v2300 = vld [vmem:[%s2218 + $0x288] sm:$0xff]
        %v2301 = vld [vmem:[%s2218 + $0x290] sm:$0xff]
        %v2302 = vld [vmem:[%s2218 + $0x298] sm:$0xff]
        %v2303 = vld [vmem:[%s2218 + $0x2a0] sm:$0xff]
        %v2304 = vld [vmem:[%s2218 + $0x2a8] sm:$0xff]
        %v2305 = vld [vmem:[%s2218 + $0x2b0] sm:$0xff]
        %v2306 = vld [vmem:[%s2218 + $0x2b8] sm:$0xff]
        %v2307 = vld [vmem:[%s2218 + $0x2c0] sm:$0xff]
        %v2308 = vld [vmem:[%s2218 + $0x2c8] sm:$0xff]
        %v2309 = vld [vmem:[%s2218 + $0x2d0] sm:$0xff]
        %v2310 = vld [vmem:[%s2218 + $0x2d8] sm:$0xff]
        %v2311 = vld [vmem:[%s2218 + $0x2e0] sm:$0xff]
        %v2312 = vld [vmem:[%s2218 + $0x2e8] sm:$0xff]
        %v2313 = vld [vmem:[%s2218 + $0x2f0] sm:$0xff]
        %v2314 = vld [vmem:[%s2218 + $0x2f8] sm:$0xff]
        %v2315 = vrot.slane %v1406, 3
        %v2316 = vrot.slane %v1403, 3
        %v2317 = vsel %vm1305, %v2315, %v2316
        %2320 = vmatpush.msra.mxu0 %v2309
        %2321 = vmatpush.msra.mxu0 %v2303
        %2322 = vmatpush.msra.mxu0 %v2297
        %2323 = vmatpush.msra.mxu0 %v2291
        %2324 = vmatpush.msra.mxu0 %v2285
        %2325 = vmatpush.msra.mxu0 %v2279
        %2326 = vmatpush.msra.mxu0 %v2273
        %2327 = vmatpush.msra.mxu0 %v2267
        %2328 = vmatpush.msra.mxu0 %v2261
        %2329 = vmatpush.msra.mxu0 %v2255
        %2330 = vmatpush.msra.mxu0 %v2249
        %2331 = vmatpush.msra.mxu0 %v2243
        %2332 = vmatpush.msra.mxu0 %v2237
        %2333 = vmatpush.msra.mxu0 %v2231
        %2334 = vmatpush.msra.mxu0 %v2225
        %2335 = vmatpush.msra.mxu0 %v2219
        %2336 = vmatmul.f32.gmra.mxu0 %v2317
        %v2337 = vpop.f32.mrf.mxu0
        %v2338 = vadd.f32 0.0, %v2337
        %2339 = vmatmul.f32.gmra.mxu0 %v2316
        %v2340 = vpop.f32.mrf.mxu0
        %v2341 = vadd.f32 0.0, %v2340
        %2342 = vdwg.mxu0
        %2343 = vmatpush.msra.mxu0 %v2310
        %2344 = vmatpush.msra.mxu0 %v2304
        %2345 = vmatpush.msra.mxu0 %v2298
        %2346 = vmatpush.msra.mxu0 %v2292
        %2347 = vmatpush.msra.mxu0 %v2286
        %2348 = vmatpush.msra.mxu0 %v2280
        %2349 = vmatpush.msra.mxu0 %v2274
        %2350 = vmatpush.msra.mxu0 %v2268
        %2351 = vmatpush.msra.mxu0 %v2262
        %2352 = vmatpush.msra.mxu0 %v2256
        %2353 = vmatpush.msra.mxu0 %v2250
        %2354 = vmatpush.msra.mxu0 %v2244
        %2355 = vmatpush.msra.mxu0 %v2238
        %2356 = vmatpush.msra.mxu0 %v2232
        %2357 = vmatpush.msra.mxu0 %v2226
        %2358 = vmatpush.msra.mxu0 %v2220
        %2359 = vmatmul.f32.gmra.mxu0 %v2317
        %v2360 = vpop.f32.mrf.mxu0
        %v2361 = vadd.f32 0.0, %v2360
        %2362 = vmatmul.f32.gmra.mxu0 %v2316
        %v2363 = vpop.f32.mrf.mxu0
        %v2364 = vadd.f32 0.0, %v2363
        %2365 = vdwg.mxu0
        %2366 = vmatpush.msra.mxu0 %v2311
        %2367 = vmatpush.msra.mxu0 %v2305
        %2368 = vmatpush.msra.mxu0 %v2299
        %2369 = vmatpush.msra.mxu0 %v2293
        %2370 = vmatpush.msra.mxu0 %v2287
        %2371 = vmatpush.msra.mxu0 %v2281
        %2372 = vmatpush.msra.mxu0 %v2275
        %2373 = vmatpush.msra.mxu0 %v2269
        %2374 = vmatpush.msra.mxu0 %v2263
        %2375 = vmatpush.msra.mxu0 %v2257
        %2376 = vmatpush.msra.mxu0 %v2251
        %2377 = vmatpush.msra.mxu0 %v2245
        %2378 = vmatpush.msra.mxu0 %v2239
        %2379 = vmatpush.msra.mxu0 %v2233
        %2380 = vmatpush.msra.mxu0 %v2227
        %2381 = vmatpush.msra.mxu0 %v2221
        %2382 = vmatmul.f32.gmra.mxu0 %v2317
        %v2383 = vpop.f32.mrf.mxu0
        %v2384 = vadd.f32 0.0, %v2383
        %2385 = vmatmul.f32.gmra.mxu0 %v2316
        %v2386 = vpop.f32.mrf.mxu0
        %v2387 = vadd.f32 0.0, %v2386
        %2388 = vdwg.mxu0
        %2389 = vmatpush.msra.mxu0 %v2312
        %2390 = vmatpush.msra.mxu0 %v2306
        %2391 = vmatpush.msra.mxu0 %v2300
        %2392 = vmatpush.msra.mxu0 %v2294
        %2393 = vmatpush.msra.mxu0 %v2288
        %2394 = vmatpush.msra.mxu0 %v2282
        %2395 = vmatpush.msra.mxu0 %v2276
        %2396 = vmatpush.msra.mxu0 %v2270
        %2397 = vmatpush.msra.mxu0 %v2264
        %2398 = vmatpush.msra.mxu0 %v2258
        %2399 = vmatpush.msra.mxu0 %v2252
        %2400 = vmatpush.msra.mxu0 %v2246
        %2401 = vmatpush.msra.mxu0 %v2240
        %2402 = vmatpush.msra.mxu0 %v2234
        %2403 = vmatpush.msra.mxu0 %v2228
        %2404 = vmatpush.msra.mxu0 %v2222
        %2405 = vmatmul.f32.gmra.mxu0 %v2317
        %v2406 = vpop.f32.mrf.mxu0
        %v2407 = vadd.f32 0.0, %v2406
        %2408 = vmatmul.f32.gmra.mxu0 %v2316
        %v2409 = vpop.f32.mrf.mxu0
        %v2410 = vadd.f32 0.0, %v2409
        %2411 = vdwg.mxu0
        %2412 = vmatpush.msra.mxu0 %v2313
        %2413 = vmatpush.msra.mxu0 %v2307
        %2414 = vmatpush.msra.mxu0 %v2301
        %2415 = vmatpush.msra.mxu0 %v2295
        %2416 = vmatpush.msra.mxu0 %v2289
        %2417 = vmatpush.msra.mxu0 %v2283
        %2418 = vmatpush.msra.mxu0 %v2277
        %2419 = vmatpush.msra.mxu0 %v2271
        %2420 = vmatpush.msra.mxu0 %v2265
        %2421 = vmatpush.msra.mxu0 %v2259
        %2422 = vmatpush.msra.mxu0 %v2253
        %2423 = vmatpush.msra.mxu0 %v2247
        %2424 = vmatpush.msra.mxu0 %v2241
        %2425 = vmatpush.msra.mxu0 %v2235
        %2426 = vmatpush.msra.mxu0 %v2229
        %2427 = vmatpush.msra.mxu0 %v2223
        %2428 = vmatmul.f32.gmra.mxu0 %v2317
        %v2429 = vpop.f32.mrf.mxu0
        %v2430 = vadd.f32 0.0, %v2429
        %2431 = vmatmul.f32.gmra.mxu0 %v2316
        %v2432 = vpop.f32.mrf.mxu0
        %v2433 = vadd.f32 0.0, %v2432
        %2434 = vdwg.mxu0
        %2435 = vmatpush.msra.mxu0 %v2314
        %2436 = vmatpush.msra.mxu0 %v2308
        %2437 = vmatpush.msra.mxu0 %v2302
        %2438 = vmatpush.msra.mxu0 %v2296
        %2439 = vmatpush.msra.mxu0 %v2290
        %2440 = vmatpush.msra.mxu0 %v2284
        %2441 = vmatpush.msra.mxu0 %v2278
        %2442 = vmatpush.msra.mxu0 %v2272
        %2443 = vmatpush.msra.mxu0 %v2266
        %2444 = vmatpush.msra.mxu0 %v2260
        %2445 = vmatpush.msra.mxu0 %v2254
        %2446 = vmatpush.msra.mxu0 %v2248
        %2447 = vmatpush.msra.mxu0 %v2242
        %2448 = vmatpush.msra.mxu0 %v2236
        %2449 = vmatpush.msra.mxu0 %v2230
        %2450 = vmatpush.msra.mxu0 %v2224
        %2451 = vmatmul.f32.gmra.mxu0 %v2317
        %v2452 = vpop.f32.mrf.mxu0
        %v2453 = vadd.f32 0.0, %v2452
        %2454 = vmatmul.f32.gmra.mxu0 %v2316
        %v2455 = vpop.f32.mrf.mxu0
        %v2456 = vadd.f32 0.0, %v2455
        %2457 = vdwg.mxu0
        %v2458 = vadd.f32 %v2206, %v2338
        %v2459 = vadd.f32 %v2207, %v2361
        %v2460 = vadd.f32 %v2208, %v2384
        %v2461 = vadd.f32 %v2209, %v2407
        %v2462 = vadd.f32 %v2210, %v2430
        %v2463 = vadd.f32 %v2211, %v2453
        %v2464 = vadd.f32 %v2212, %v2341
        %v2465 = vadd.f32 %v2213, %v2364
        %v2466 = vadd.f32 %v2214, %v2387
        %v2467 = vadd.f32 %v2215, %v2410
        %v2468 = vadd.f32 %v2216, %v2433
        %v2469 = vadd.f32 %v2217, %v2456
        %2470 = vst [vmem:[%s291] sm:$0xff] %v2458
        %2471 = vst [vmem:[%s291 + $0x8] sm:$0xff] %v2459
        %2472 = vst [vmem:[%s291 + $0x10] sm:$0xff] %v2460
        %2473 = vst [vmem:[%s291 + $0x18] sm:$0xff] %v2461
        %2474 = vst [vmem:[%s291 + $0x20] sm:$0xff] %v2462
        %2475 = vst [vmem:[%s291 + $0x28] sm:$0xff] %v2463
        %2476 = vst [vmem:[%s291 + $0x30] sm:$0x7] %v2464
        %2477 = vst [vmem:[%s291 + $0x38] sm:$0x7] %v2465
        %2478 = vst [vmem:[%s291 + $0x40] sm:$0x7] %v2466
        %2479 = vst [vmem:[%s291 + $0x48] sm:$0x7] %v2467
        %2480 = vst [vmem:[%s291 + $0x50] sm:$0x7] %v2468
        %2481 = vst [vmem:[%s291 + $0x58] sm:$0x7] %v2469
        %v2482 = vld [vmem:[%s291] sm:$0xff]
        %v2483 = vld [vmem:[%s291 + $0x8] sm:$0xff]
        %v2484 = vld [vmem:[%s291 + $0x10] sm:$0xff]
        %v2485 = vld [vmem:[%s291 + $0x18] sm:$0xff]
        %v2486 = vld [vmem:[%s291 + $0x20] sm:$0xff]
        %v2487 = vld [vmem:[%s291 + $0x28] sm:$0xff]
        %v2488 = vld [vmem:[%s291 + $0x30] sm:$0x7]
        %v2489 = vld [vmem:[%s291 + $0x38] sm:$0x7]
        %v2490 = vld [vmem:[%s291 + $0x40] sm:$0x7]
        %v2491 = vld [vmem:[%s291 + $0x48] sm:$0x7]
        %v2492 = vld [vmem:[%s291 + $0x50] sm:$0x7]
        %v2493 = vld [vmem:[%s291 + $0x58] sm:$0x7]
        %s2494 = scalar_lea.vmem [#allocation7], 3072
        %v2495 = vld [vmem:[%s2494] sm:$0xff]
        %v2496 = vld [vmem:[%s2494 + $0x8] sm:$0xff]
        %v2497 = vld [vmem:[%s2494 + $0x10] sm:$0xff]
        %v2498 = vld [vmem:[%s2494 + $0x18] sm:$0xff]
        %v2499 = vld [vmem:[%s2494 + $0x20] sm:$0xff]
        %v2500 = vld [vmem:[%s2494 + $0x28] sm:$0xff]
        %v2501 = vld [vmem:[%s2494 + $0x30] sm:$0xff]
        %v2502 = vld [vmem:[%s2494 + $0x38] sm:$0xff]
        %v2503 = vld [vmem:[%s2494 + $0x40] sm:$0xff]
        %v2504 = vld [vmem:[%s2494 + $0x48] sm:$0xff]
        %v2505 = vld [vmem:[%s2494 + $0x50] sm:$0xff]
        %v2506 = vld [vmem:[%s2494 + $0x58] sm:$0xff]
        %v2507 = vld [vmem:[%s2494 + $0x60] sm:$0xff]
        %v2508 = vld [vmem:[%s2494 + $0x68] sm:$0xff]
        %v2509 = vld [vmem:[%s2494 + $0x70] sm:$0xff]
        %v2510 = vld [vmem:[%s2494 + $0x78] sm:$0xff]
        %v2511 = vld [vmem:[%s2494 + $0x80] sm:$0xff]
        %v2512 = vld [vmem:[%s2494 + $0x88] sm:$0xff]
        %v2513 = vld [vmem:[%s2494 + $0x90] sm:$0xff]
        %v2514 = vld [vmem:[%s2494 + $0x98] sm:$0xff]
        %v2515 = vld [vmem:[%s2494 + $0xa0] sm:$0xff]
        %v2516 = vld [vmem:[%s2494 + $0xa8] sm:$0xff]
        %v2517 = vld [vmem:[%s2494 + $0xb0] sm:$0xff]
        %v2518 = vld [vmem:[%s2494 + $0xb8] sm:$0xff]
        %v2519 = vld [vmem:[%s2494 + $0xc0] sm:$0xff]
        %v2520 = vld [vmem:[%s2494 + $0xc8] sm:$0xff]
        %v2521 = vld [vmem:[%s2494 + $0xd0] sm:$0xff]
        %v2522 = vld [vmem:[%s2494 + $0xd8] sm:$0xff]
        %v2523 = vld [vmem:[%s2494 + $0xe0] sm:$0xff]
        %v2524 = vld [vmem:[%s2494 + $0xe8] sm:$0xff]
        %v2525 = vld [vmem:[%s2494 + $0xf0] sm:$0xff]
        %v2526 = vld [vmem:[%s2494 + $0xf8] sm:$0xff]
        %v2527 = vld [vmem:[%s2494 + $0x100] sm:$0xff]
        %v2528 = vld [vmem:[%s2494 + $0x108] sm:$0xff]
        %v2529 = vld [vmem:[%s2494 + $0x110] sm:$0xff]
        %v2530 = vld [vmem:[%s2494 + $0x118] sm:$0xff]
        %v2531 = vld [vmem:[%s2494 + $0x120] sm:$0xff]
        %v2532 = vld [vmem:[%s2494 + $0x128] sm:$0xff]
        %v2533 = vld [vmem:[%s2494 + $0x130] sm:$0xff]
        %v2534 = vld [vmem:[%s2494 + $0x138] sm:$0xff]
        %v2535 = vld [vmem:[%s2494 + $0x140] sm:$0xff]
        %v2536 = vld [vmem:[%s2494 + $0x148] sm:$0xff]
        %v2537 = vld [vmem:[%s2494 + $0x150] sm:$0xff]
        %v2538 = vld [vmem:[%s2494 + $0x158] sm:$0xff]
        %v2539 = vld [vmem:[%s2494 + $0x160] sm:$0xff]
        %v2540 = vld [vmem:[%s2494 + $0x168] sm:$0xff]
        %v2541 = vld [vmem:[%s2494 + $0x170] sm:$0xff]
        %v2542 = vld [vmem:[%s2494 + $0x178] sm:$0xff]
        %v2543 = vld [vmem:[%s2494 + $0x180] sm:$0xff]
        %v2544 = vld [vmem:[%s2494 + $0x188] sm:$0xff]
        %v2545 = vld [vmem:[%s2494 + $0x190] sm:$0xff]
        %v2546 = vld [vmem:[%s2494 + $0x198] sm:$0xff]
        %v2547 = vld [vmem:[%s2494 + $0x1a0] sm:$0xff]
        %v2548 = vld [vmem:[%s2494 + $0x1a8] sm:$0xff]
        %v2549 = vld [vmem:[%s2494 + $0x1b0] sm:$0xff]
        %v2550 = vld [vmem:[%s2494 + $0x1b8] sm:$0xff]
        %v2551 = vld [vmem:[%s2494 + $0x1c0] sm:$0xff]
        %v2552 = vld [vmem:[%s2494 + $0x1c8] sm:$0xff]
        %v2553 = vld [vmem:[%s2494 + $0x1d0] sm:$0xff]
        %v2554 = vld [vmem:[%s2494 + $0x1d8] sm:$0xff]
        %v2555 = vld [vmem:[%s2494 + $0x1e0] sm:$0xff]
        %v2556 = vld [vmem:[%s2494 + $0x1e8] sm:$0xff]
        %v2557 = vld [vmem:[%s2494 + $0x1f0] sm:$0xff]
        %v2558 = vld [vmem:[%s2494 + $0x1f8] sm:$0xff]
        %v2559 = vld [vmem:[%s2494 + $0x200] sm:$0xff]
        %v2560 = vld [vmem:[%s2494 + $0x208] sm:$0xff]
        %v2561 = vld [vmem:[%s2494 + $0x210] sm:$0xff]
        %v2562 = vld [vmem:[%s2494 + $0x218] sm:$0xff]
        %v2563 = vld [vmem:[%s2494 + $0x220] sm:$0xff]
        %v2564 = vld [vmem:[%s2494 + $0x228] sm:$0xff]
        %v2565 = vld [vmem:[%s2494 + $0x230] sm:$0xff]
        %v2566 = vld [vmem:[%s2494 + $0x238] sm:$0xff]
        %v2567 = vld [vmem:[%s2494 + $0x240] sm:$0xff]
        %v2568 = vld [vmem:[%s2494 + $0x248] sm:$0xff]
        %v2569 = vld [vmem:[%s2494 + $0x250] sm:$0xff]
        %v2570 = vld [vmem:[%s2494 + $0x258] sm:$0xff]
        %v2571 = vld [vmem:[%s2494 + $0x260] sm:$0xff]
        %v2572 = vld [vmem:[%s2494 + $0x268] sm:$0xff]
        %v2573 = vld [vmem:[%s2494 + $0x270] sm:$0xff]
        %v2574 = vld [vmem:[%s2494 + $0x278] sm:$0xff]
        %v2575 = vld [vmem:[%s2494 + $0x280] sm:$0xff]
        %v2576 = vld [vmem:[%s2494 + $0x288] sm:$0xff]
        %v2577 = vld [vmem:[%s2494 + $0x290] sm:$0xff]
        %v2578 = vld [vmem:[%s2494 + $0x298] sm:$0xff]
        %v2579 = vld [vmem:[%s2494 + $0x2a0] sm:$0xff]
        %v2580 = vld [vmem:[%s2494 + $0x2a8] sm:$0xff]
        %v2581 = vld [vmem:[%s2494 + $0x2b0] sm:$0xff]
        %v2582 = vld [vmem:[%s2494 + $0x2b8] sm:$0xff]
        %v2583 = vld [vmem:[%s2494 + $0x2c0] sm:$0xff]
        %v2584 = vld [vmem:[%s2494 + $0x2c8] sm:$0xff]
        %v2585 = vld [vmem:[%s2494 + $0x2d0] sm:$0xff]
        %v2586 = vld [vmem:[%s2494 + $0x2d8] sm:$0xff]
        %v2587 = vld [vmem:[%s2494 + $0x2e0] sm:$0xff]
        %v2588 = vld [vmem:[%s2494 + $0x2e8] sm:$0xff]
        %v2589 = vld [vmem:[%s2494 + $0x2f0] sm:$0xff]
        %v2590 = vld [vmem:[%s2494 + $0x2f8] sm:$0xff]
        %v2591 = vrot.slane %v1406, 4
        %v2592 = vrot.slane %v1403, 4
        %v2593 = vsel %vm1310, %v2591, %v2592
        %2596 = vmatpush.msra.mxu0 %v2585
        %2597 = vmatpush.msra.mxu0 %v2579
        %2598 = vmatpush.msra.mxu0 %v2573
        %2599 = vmatpush.msra.mxu0 %v2567
        %2600 = vmatpush.msra.mxu0 %v2561
        %2601 = vmatpush.msra.mxu0 %v2555
        %2602 = vmatpush.msra.mxu0 %v2549
        %2603 = vmatpush.msra.mxu0 %v2543
        %2604 = vmatpush.msra.mxu0 %v2537
        %2605 = vmatpush.msra.mxu0 %v2531
        %2606 = vmatpush.msra.mxu0 %v2525
        %2607 = vmatpush.msra.mxu0 %v2519
        %2608 = vmatpush.msra.mxu0 %v2513
        %2609 = vmatpush.msra.mxu0 %v2507
        %2610 = vmatpush.msra.mxu0 %v2501
        %2611 = vmatpush.msra.mxu0 %v2495
        %2612 = vmatmul.f32.gmra.mxu0 %v2593
        %v2613 = vpop.f32.mrf.mxu0
        %v2614 = vadd.f32 0.0, %v2613
        %2615 = vmatmul.f32.gmra.mxu0 %v2592
        %v2616 = vpop.f32.mrf.mxu0
        %v2617 = vadd.f32 0.0, %v2616
        %2618 = vdwg.mxu0
        %2619 = vmatpush.msra.mxu0 %v2586
        %2620 = vmatpush.msra.mxu0 %v2580
        %2621 = vmatpush.msra.mxu0 %v2574
        %2622 = vmatpush.msra.mxu0 %v2568
        %2623 = vmatpush.msra.mxu0 %v2562
        %2624 = vmatpush.msra.mxu0 %v2556
        %2625 = vmatpush.msra.mxu0 %v2550
        %2626 = vmatpush.msra.mxu0 %v2544
        %2627 = vmatpush.msra.mxu0 %v2538
        %2628 = vmatpush.msra.mxu0 %v2532
        %2629 = vmatpush.msra.mxu0 %v2526
        %2630 = vmatpush.msra.mxu0 %v2520
        %2631 = vmatpush.msra.mxu0 %v2514
        %2632 = vmatpush.msra.mxu0 %v2508
        %2633 = vmatpush.msra.mxu0 %v2502
        %2634 = vmatpush.msra.mxu0 %v2496
        %2635 = vmatmul.f32.gmra.mxu0 %v2593
        %v2636 = vpop.f32.mrf.mxu0
        %v2637 = vadd.f32 0.0, %v2636
        %2638 = vmatmul.f32.gmra.mxu0 %v2592
        %v2639 = vpop.f32.mrf.mxu0
        %v2640 = vadd.f32 0.0, %v2639
        %2641 = vdwg.mxu0
        %2642 = vmatpush.msra.mxu0 %v2587
        %2643 = vmatpush.msra.mxu0 %v2581
        %2644 = vmatpush.msra.mxu0 %v2575
        %2645 = vmatpush.msra.mxu0 %v2569
        %2646 = vmatpush.msra.mxu0 %v2563
        %2647 = vmatpush.msra.mxu0 %v2557
        %2648 = vmatpush.msra.mxu0 %v2551
        %2649 = vmatpush.msra.mxu0 %v2545
        %2650 = vmatpush.msra.mxu0 %v2539
        %2651 = vmatpush.msra.mxu0 %v2533
        %2652 = vmatpush.msra.mxu0 %v2527
        %2653 = vmatpush.msra.mxu0 %v2521
        %2654 = vmatpush.msra.mxu0 %v2515
        %2655 = vmatpush.msra.mxu0 %v2509
        %2656 = vmatpush.msra.mxu0 %v2503
        %2657 = vmatpush.msra.mxu0 %v2497
        %2658 = vmatmul.f32.gmra.mxu0 %v2593
        %v2659 = vpop.f32.mrf.mxu0
        %v2660 = vadd.f32 0.0, %v2659
        %2661 = vmatmul.f32.gmra.mxu0 %v2592
        %v2662 = vpop.f32.mrf.mxu0
        %v2663 = vadd.f32 0.0, %v2662
        %2664 = vdwg.mxu0
        %2665 = vmatpush.msra.mxu0 %v2588
        %2666 = vmatpush.msra.mxu0 %v2582
        %2667 = vmatpush.msra.mxu0 %v2576
        %2668 = vmatpush.msra.mxu0 %v2570
        %2669 = vmatpush.msra.mxu0 %v2564
        %2670 = vmatpush.msra.mxu0 %v2558
        %2671 = vmatpush.msra.mxu0 %v2552
        %2672 = vmatpush.msra.mxu0 %v2546
        %2673 = vmatpush.msra.mxu0 %v2540
        %2674 = vmatpush.msra.mxu0 %v2534
        %2675 = vmatpush.msra.mxu0 %v2528
        %2676 = vmatpush.msra.mxu0 %v2522
        %2677 = vmatpush.msra.mxu0 %v2516
        %2678 = vmatpush.msra.mxu0 %v2510
        %2679 = vmatpush.msra.mxu0 %v2504
        %2680 = vmatpush.msra.mxu0 %v2498
        %2681 = vmatmul.f32.gmra.mxu0 %v2593
        %v2682 = vpop.f32.mrf.mxu0
        %v2683 = vadd.f32 0.0, %v2682
        %2684 = vmatmul.f32.gmra.mxu0 %v2592
        %v2685 = vpop.f32.mrf.mxu0
        %v2686 = vadd.f32 0.0, %v2685
        %2687 = vdwg.mxu0
        %2688 = vmatpush.msra.mxu0 %v2589
        %2689 = vmatpush.msra.mxu0 %v2583
        %2690 = vmatpush.msra.mxu0 %v2577
        %2691 = vmatpush.msra.mxu0 %v2571
        %2692 = vmatpush.msra.mxu0 %v2565
        %2693 = vmatpush.msra.mxu0 %v2559
        %2694 = vmatpush.msra.mxu0 %v2553
        %2695 = vmatpush.msra.mxu0 %v2547
        %2696 = vmatpush.msra.mxu0 %v2541
        %2697 = vmatpush.msra.mxu0 %v2535
        %2698 = vmatpush.msra.mxu0 %v2529
        %2699 = vmatpush.msra.mxu0 %v2523
        %2700 = vmatpush.msra.mxu0 %v2517
        %2701 = vmatpush.msra.mxu0 %v2511
        %2702 = vmatpush.msra.mxu0 %v2505
        %2703 = vmatpush.msra.mxu0 %v2499
        %2704 = vmatmul.f32.gmra.mxu0 %v2593
        %v2705 = vpop.f32.mrf.mxu0
        %v2706 = vadd.f32 0.0, %v2705
        %2707 = vmatmul.f32.gmra.mxu0 %v2592
        %v2708 = vpop.f32.mrf.mxu0
        %v2709 = vadd.f32 0.0, %v2708
        %2710 = vdwg.mxu0
        %2711 = vmatpush.msra.mxu0 %v2590
        %2712 = vmatpush.msra.mxu0 %v2584
        %2713 = vmatpush.msra.mxu0 %v2578
        %2714 = vmatpush.msra.mxu0 %v2572
        %2715 = vmatpush.msra.mxu0 %v2566
        %2716 = vmatpush.msra.mxu0 %v2560
        %2717 = vmatpush.msra.mxu0 %v2554
        %2718 = vmatpush.msra.mxu0 %v2548
        %2719 = vmatpush.msra.mxu0 %v2542
        %2720 = vmatpush.msra.mxu0 %v2536
        %2721 = vmatpush.msra.mxu0 %v2530
        %2722 = vmatpush.msra.mxu0 %v2524
        %2723 = vmatpush.msra.mxu0 %v2518
        %2724 = vmatpush.msra.mxu0 %v2512
        %2725 = vmatpush.msra.mxu0 %v2506
        %2726 = vmatpush.msra.mxu0 %v2500
        %2727 = vmatmul.f32.gmra.mxu0 %v2593
        %v2728 = vpop.f32.mrf.mxu0
        %v2729 = vadd.f32 0.0, %v2728
        %2730 = vmatmul.f32.gmra.mxu0 %v2592
        %v2731 = vpop.f32.mrf.mxu0
        %v2732 = vadd.f32 0.0, %v2731
        %2733 = vdwg.mxu0
        %v2734 = vadd.f32 %v2482, %v2614
        %v2735 = vadd.f32 %v2483, %v2637
        %v2736 = vadd.f32 %v2484, %v2660
        %v2737 = vadd.f32 %v2485, %v2683
        %v2738 = vadd.f32 %v2486, %v2706
        %v2739 = vadd.f32 %v2487, %v2729
        %v2740 = vadd.f32 %v2488, %v2617
        %v2741 = vadd.f32 %v2489, %v2640
        %v2742 = vadd.f32 %v2490, %v2663
        %v2743 = vadd.f32 %v2491, %v2686
        %v2744 = vadd.f32 %v2492, %v2709
        %v2745 = vadd.f32 %v2493, %v2732
        %2746 = vst [vmem:[%s291] sm:$0xff] %v2734
        %2747 = vst [vmem:[%s291 + $0x8] sm:$0xff] %v2735
        %2748 = vst [vmem:[%s291 + $0x10] sm:$0xff] %v2736
        %2749 = vst [vmem:[%s291 + $0x18] sm:$0xff] %v2737
        %2750 = vst [vmem:[%s291 + $0x20] sm:$0xff] %v2738
        %2751 = vst [vmem:[%s291 + $0x28] sm:$0xff] %v2739
        %2752 = vst [vmem:[%s291 + $0x30] sm:$0x7] %v2740
        %2753 = vst [vmem:[%s291 + $0x38] sm:$0x7] %v2741
        %2754 = vst [vmem:[%s291 + $0x40] sm:$0x7] %v2742
        %2755 = vst [vmem:[%s291 + $0x48] sm:$0x7] %v2743
        %2756 = vst [vmem:[%s291 + $0x50] sm:$0x7] %v2744
        %2757 = vst [vmem:[%s291 + $0x58] sm:$0x7] %v2745
        %v2758 = vld [vmem:[%s291] sm:$0xff]
        %v2759 = vld [vmem:[%s291 + $0x8] sm:$0xff]
        %v2760 = vld [vmem:[%s291 + $0x10] sm:$0xff]
        %v2761 = vld [vmem:[%s291 + $0x18] sm:$0xff]
        %v2762 = vld [vmem:[%s291 + $0x20] sm:$0xff]
        %v2763 = vld [vmem:[%s291 + $0x28] sm:$0xff]
        %v2764 = vld [vmem:[%s291 + $0x30] sm:$0x7]
        %v2765 = vld [vmem:[%s291 + $0x38] sm:$0x7]
        %v2766 = vld [vmem:[%s291 + $0x40] sm:$0x7]
        %v2767 = vld [vmem:[%s291 + $0x48] sm:$0x7]
        %v2768 = vld [vmem:[%s291 + $0x50] sm:$0x7]
        %v2769 = vld [vmem:[%s291 + $0x58] sm:$0x7]
        %s2770 = scalar_lea.vmem [#allocation7], 3840
        %v2771 = vld [vmem:[%s2770] sm:$0xff]
        %v2772 = vld [vmem:[%s2770 + $0x8] sm:$0xff]
        %v2773 = vld [vmem:[%s2770 + $0x10] sm:$0xff]
        %v2774 = vld [vmem:[%s2770 + $0x18] sm:$0xff]
        %v2775 = vld [vmem:[%s2770 + $0x20] sm:$0xff]
        %v2776 = vld [vmem:[%s2770 + $0x28] sm:$0xff]
        %v2777 = vld [vmem:[%s2770 + $0x30] sm:$0xff]
        %v2778 = vld [vmem:[%s2770 + $0x38] sm:$0xff]
        %v2779 = vld [vmem:[%s2770 + $0x40] sm:$0xff]
        %v2780 = vld [vmem:[%s2770 + $0x48] sm:$0xff]
        %v2781 = vld [vmem:[%s2770 + $0x50] sm:$0xff]
        %v2782 = vld [vmem:[%s2770 + $0x58] sm:$0xff]
        %v2783 = vld [vmem:[%s2770 + $0x60] sm:$0xff]
        %v2784 = vld [vmem:[%s2770 + $0x68] sm:$0xff]
        %v2785 = vld [vmem:[%s2770 + $0x70] sm:$0xff]
        %v2786 = vld [vmem:[%s2770 + $0x78] sm:$0xff]
        %v2787 = vld [vmem:[%s2770 + $0x80] sm:$0xff]
        %v2788 = vld [vmem:[%s2770 + $0x88] sm:$0xff]
        %v2789 = vld [vmem:[%s2770 + $0x90] sm:$0xff]
        %v2790 = vld [vmem:[%s2770 + $0x98] sm:$0xff]
        %v2791 = vld [vmem:[%s2770 + $0xa0] sm:$0xff]
        %v2792 = vld [vmem:[%s2770 + $0xa8] sm:$0xff]
        %v2793 = vld [vmem:[%s2770 + $0xb0] sm:$0xff]
        %v2794 = vld [vmem:[%s2770 + $0xb8] sm:$0xff]
        %v2795 = vld [vmem:[%s2770 + $0xc0] sm:$0xff]
        %v2796 = vld [vmem:[%s2770 + $0xc8] sm:$0xff]
        %v2797 = vld [vmem:[%s2770 + $0xd0] sm:$0xff]
        %v2798 = vld [vmem:[%s2770 + $0xd8] sm:$0xff]
        %v2799 = vld [vmem:[%s2770 + $0xe0] sm:$0xff]
        %v2800 = vld [vmem:[%s2770 + $0xe8] sm:$0xff]
        %v2801 = vld [vmem:[%s2770 + $0xf0] sm:$0xff]
        %v2802 = vld [vmem:[%s2770 + $0xf8] sm:$0xff]
        %v2803 = vld [vmem:[%s2770 + $0x100] sm:$0xff]
        %v2804 = vld [vmem:[%s2770 + $0x108] sm:$0xff]
        %v2805 = vld [vmem:[%s2770 + $0x110] sm:$0xff]
        %v2806 = vld [vmem:[%s2770 + $0x118] sm:$0xff]
        %v2807 = vld [vmem:[%s2770 + $0x120] sm:$0xff]
        %v2808 = vld [vmem:[%s2770 + $0x128] sm:$0xff]
        %v2809 = vld [vmem:[%s2770 + $0x130] sm:$0xff]
        %v2810 = vld [vmem:[%s2770 + $0x138] sm:$0xff]
        %v2811 = vld [vmem:[%s2770 + $0x140] sm:$0xff]
        %v2812 = vld [vmem:[%s2770 + $0x148] sm:$0xff]
        %v2813 = vld [vmem:[%s2770 + $0x150] sm:$0xff]
        %v2814 = vld [vmem:[%s2770 + $0x158] sm:$0xff]
        %v2815 = vld [vmem:[%s2770 + $0x160] sm:$0xff]
        %v2816 = vld [vmem:[%s2770 + $0x168] sm:$0xff]
        %v2817 = vld [vmem:[%s2770 + $0x170] sm:$0xff]
        %v2818 = vld [vmem:[%s2770 + $0x178] sm:$0xff]
        %v2819 = vld [vmem:[%s2770 + $0x180] sm:$0xff]
        %v2820 = vld [vmem:[%s2770 + $0x188] sm:$0xff]
        %v2821 = vld [vmem:[%s2770 + $0x190] sm:$0xff]
        %v2822 = vld [vmem:[%s2770 + $0x198] sm:$0xff]
        %v2823 = vld [vmem:[%s2770 + $0x1a0] sm:$0xff]
        %v2824 = vld [vmem:[%s2770 + $0x1a8] sm:$0xff]
        %v2825 = vld [vmem:[%s2770 + $0x1b0] sm:$0xff]
        %v2826 = vld [vmem:[%s2770 + $0x1b8] sm:$0xff]
        %v2827 = vld [vmem:[%s2770 + $0x1c0] sm:$0xff]
        %v2828 = vld [vmem:[%s2770 + $0x1c8] sm:$0xff]
        %v2829 = vld [vmem:[%s2770 + $0x1d0] sm:$0xff]
        %v2830 = vld [vmem:[%s2770 + $0x1d8] sm:$0xff]
        %v2831 = vld [vmem:[%s2770 + $0x1e0] sm:$0xff]
        %v2832 = vld [vmem:[%s2770 + $0x1e8] sm:$0xff]
        %v2833 = vld [vmem:[%s2770 + $0x1f0] sm:$0xff]
        %v2834 = vld [vmem:[%s2770 + $0x1f8] sm:$0xff]
        %v2835 = vld [vmem:[%s2770 + $0x200] sm:$0xff]
        %v2836 = vld [vmem:[%s2770 + $0x208] sm:$0xff]
        %v2837 = vld [vmem:[%s2770 + $0x210] sm:$0xff]
        %v2838 = vld [vmem:[%s2770 + $0x218] sm:$0xff]
        %v2839 = vld [vmem:[%s2770 + $0x220] sm:$0xff]
        %v2840 = vld [vmem:[%s2770 + $0x228] sm:$0xff]
        %v2841 = vld [vmem:[%s2770 + $0x230] sm:$0xff]
        %v2842 = vld [vmem:[%s2770 + $0x238] sm:$0xff]
        %v2843 = vld [vmem:[%s2770 + $0x240] sm:$0xff]
        %v2844 = vld [vmem:[%s2770 + $0x248] sm:$0xff]
        %v2845 = vld [vmem:[%s2770 + $0x250] sm:$0xff]
        %v2846 = vld [vmem:[%s2770 + $0x258] sm:$0xff]
        %v2847 = vld [vmem:[%s2770 + $0x260] sm:$0xff]
        %v2848 = vld [vmem:[%s2770 + $0x268] sm:$0xff]
        %v2849 = vld [vmem:[%s2770 + $0x270] sm:$0xff]
        %v2850 = vld [vmem:[%s2770 + $0x278] sm:$0xff]
        %v2851 = vld [vmem:[%s2770 + $0x280] sm:$0xff]
        %v2852 = vld [vmem:[%s2770 + $0x288] sm:$0xff]
        %v2853 = vld [vmem:[%s2770 + $0x290] sm:$0xff]
        %v2854 = vld [vmem:[%s2770 + $0x298] sm:$0xff]
        %v2855 = vld [vmem:[%s2770 + $0x2a0] sm:$0xff]
        %v2856 = vld [vmem:[%s2770 + $0x2a8] sm:$0xff]
        %v2857 = vld [vmem:[%s2770 + $0x2b0] sm:$0xff]
        %v2858 = vld [vmem:[%s2770 + $0x2b8] sm:$0xff]
        %v2859 = vld [vmem:[%s2770 + $0x2c0] sm:$0xff]
        %v2860 = vld [vmem:[%s2770 + $0x2c8] sm:$0xff]
        %v2861 = vld [vmem:[%s2770 + $0x2d0] sm:$0xff]
        %v2862 = vld [vmem:[%s2770 + $0x2d8] sm:$0xff]
        %v2863 = vld [vmem:[%s2770 + $0x2e0] sm:$0xff]
        %v2864 = vld [vmem:[%s2770 + $0x2e8] sm:$0xff]
        %v2865 = vld [vmem:[%s2770 + $0x2f0] sm:$0xff]
        %v2866 = vld [vmem:[%s2770 + $0x2f8] sm:$0xff]
        %v2867 = vrot.slane %v1406, 5
        %v2868 = vrot.slane %v1403, 5
        %v2869 = vsel %vm1233, %v2867, %v2868
        %2872 = vmatpush.msra.mxu0 %v2861
        %2873 = vmatpush.msra.mxu0 %v2855
        %2874 = vmatpush.msra.mxu0 %v2849
        %2875 = vmatpush.msra.mxu0 %v2843
        %2876 = vmatpush.msra.mxu0 %v2837
        %2877 = vmatpush.msra.mxu0 %v2831
        %2878 = vmatpush.msra.mxu0 %v2825
        %2879 = vmatpush.msra.mxu0 %v2819
        %2880 = vmatpush.msra.mxu0 %v2813
        %2881 = vmatpush.msra.mxu0 %v2807
        %2882 = vmatpush.msra.mxu0 %v2801
        %2883 = vmatpush.msra.mxu0 %v2795
        %2884 = vmatpush.msra.mxu0 %v2789
        %2885 = vmatpush.msra.mxu0 %v2783
        %2886 = vmatpush.msra.mxu0 %v2777
        %2887 = vmatpush.msra.mxu0 %v2771
        %2888 = vmatmul.f32.gmra.mxu0 %v2869
        %v2889 = vpop.f32.mrf.mxu0
        %v2890 = vadd.f32 0.0, %v2889
        %2891 = vmatmul.f32.gmra.mxu0 %v2868
        %v2892 = vpop.f32.mrf.mxu0
        %v2893 = vadd.f32 0.0, %v2892
        %2894 = vdwg.mxu0
        %2895 = vmatpush.msra.mxu0 %v2862
        %2896 = vmatpush.msra.mxu0 %v2856
        %2897 = vmatpush.msra.mxu0 %v2850
        %2898 = vmatpush.msra.mxu0 %v2844
        %2899 = vmatpush.msra.mxu0 %v2838
        %2900 = vmatpush.msra.mxu0 %v2832
        %2901 = vmatpush.msra.mxu0 %v2826
        %2902 = vmatpush.msra.mxu0 %v2820
        %2903 = vmatpush.msra.mxu0 %v2814
        %2904 = vmatpush.msra.mxu0 %v2808
        %2905 = vmatpush.msra.mxu0 %v2802
        %2906 = vmatpush.msra.mxu0 %v2796
        %2907 = vmatpush.msra.mxu0 %v2790
        %2908 = vmatpush.msra.mxu0 %v2784
        %2909 = vmatpush.msra.mxu0 %v2778
        %2910 = vmatpush.msra.mxu0 %v2772
        %2911 = vmatmul.f32.gmra.mxu0 %v2869
        %v2912 = vpop.f32.mrf.mxu0
        %v2913 = vadd.f32 0.0, %v2912
        %2914 = vmatmul.f32.gmra.mxu0 %v2868
        %v2915 = vpop.f32.mrf.mxu0
        %v2916 = vadd.f32 0.0, %v2915
        %2917 = vdwg.mxu0
        %2918 = vmatpush.msra.mxu0 %v2863
        %2919 = vmatpush.msra.mxu0 %v2857
        %2920 = vmatpush.msra.mxu0 %v2851
        %2921 = vmatpush.msra.mxu0 %v2845
        %2922 = vmatpush.msra.mxu0 %v2839
        %2923 = vmatpush.msra.mxu0 %v2833
        %2924 = vmatpush.msra.mxu0 %v2827
        %2925 = vmatpush.msra.mxu0 %v2821
        %2926 = vmatpush.msra.mxu0 %v2815
        %2927 = vmatpush.msra.mxu0 %v2809
        %2928 = vmatpush.msra.mxu0 %v2803
        %2929 = vmatpush.msra.mxu0 %v2797
        %2930 = vmatpush.msra.mxu0 %v2791
        %2931 = vmatpush.msra.mxu0 %v2785
        %2932 = vmatpush.msra.mxu0 %v2779
        %2933 = vmatpush.msra.mxu0 %v2773
        %2934 = vmatmul.f32.gmra.mxu0 %v2869
        %v2935 = vpop.f32.mrf.mxu0
        %v2936 = vadd.f32 0.0, %v2935
        %2937 = vmatmul.f32.gmra.mxu0 %v2868
        %v2938 = vpop.f32.mrf.mxu0
        %v2939 = vadd.f32 0.0, %v2938
        %2940 = vdwg.mxu0
        %2941 = vmatpush.msra.mxu0 %v2864
        %2942 = vmatpush.msra.mxu0 %v2858
        %2943 = vmatpush.msra.mxu0 %v2852
        %2944 = vmatpush.msra.mxu0 %v2846
        %2945 = vmatpush.msra.mxu0 %v2840
        %2946 = vmatpush.msra.mxu0 %v2834
        %2947 = vmatpush.msra.mxu0 %v2828
        %2948 = vmatpush.msra.mxu0 %v2822
        %2949 = vmatpush.msra.mxu0 %v2816
        %2950 = vmatpush.msra.mxu0 %v2810
        %2951 = vmatpush.msra.mxu0 %v2804
        %2952 = vmatpush.msra.mxu0 %v2798
        %2953 = vmatpush.msra.mxu0 %v2792
        %2954 = vmatpush.msra.mxu0 %v2786
        %2955 = vmatpush.msra.mxu0 %v2780
        %2956 = vmatpush.msra.mxu0 %v2774
        %2957 = vmatmul.f32.gmra.mxu0 %v2869
        %v2958 = vpop.f32.mrf.mxu0
        %v2959 = vadd.f32 0.0, %v2958
        %2960 = vmatmul.f32.gmra.mxu0 %v2868
        %v2961 = vpop.f32.mrf.mxu0
        %v2962 = vadd.f32 0.0, %v2961
        %2963 = vdwg.mxu0
        %2964 = vmatpush.msra.mxu0 %v2865
        %2965 = vmatpush.msra.mxu0 %v2859
        %2966 = vmatpush.msra.mxu0 %v2853
        %2967 = vmatpush.msra.mxu0 %v2847
        %2968 = vmatpush.msra.mxu0 %v2841
        %2969 = vmatpush.msra.mxu0 %v2835
        %2970 = vmatpush.msra.mxu0 %v2829
        %2971 = vmatpush.msra.mxu0 %v2823
        %2972 = vmatpush.msra.mxu0 %v2817
        %2973 = vmatpush.msra.mxu0 %v2811
        %2974 = vmatpush.msra.mxu0 %v2805
        %2975 = vmatpush.msra.mxu0 %v2799
        %2976 = vmatpush.msra.mxu0 %v2793
        %2977 = vmatpush.msra.mxu0 %v2787
        %2978 = vmatpush.msra.mxu0 %v2781
        %2979 = vmatpush.msra.mxu0 %v2775
        %2980 = vmatmul.f32.gmra.mxu0 %v2869
        %v2981 = vpop.f32.mrf.mxu0
        %v2982 = vadd.f32 0.0, %v2981
        %2983 = vmatmul.f32.gmra.mxu0 %v2868
        %v2984 = vpop.f32.mrf.mxu0
        %v2985 = vadd.f32 0.0, %v2984
        %2986 = vdwg.mxu0
        %2987 = vmatpush.msra.mxu0 %v2866
        %2988 = vmatpush.msra.mxu0 %v2860
        %2989 = vmatpush.msra.mxu0 %v2854
        %2990 = vmatpush.msra.mxu0 %v2848
        %2991 = vmatpush.msra.mxu0 %v2842
        %2992 = vmatpush.msra.mxu0 %v2836
        %2993 = vmatpush.msra.mxu0 %v2830
        %2994 = vmatpush.msra.mxu0 %v2824
        %2995 = vmatpush.msra.mxu0 %v2818
        %2996 = vmatpush.msra.mxu0 %v2812
        %2997 = vmatpush.msra.mxu0 %v2806
        %2998 = vmatpush.msra.mxu0 %v2800
        %2999 = vmatpush.msra.mxu0 %v2794
        %3000 = vmatpush.msra.mxu0 %v2788
        %3001 = vmatpush.msra.mxu0 %v2782
        %3002 = vmatpush.msra.mxu0 %v2776
        %3003 = vmatmul.f32.gmra.mxu0 %v2869
        %v3004 = vpop.f32.mrf.mxu0
        %v3005 = vadd.f32 0.0, %v3004
        %3006 = vmatmul.f32.gmra.mxu0 %v2868
        %v3007 = vpop.f32.mrf.mxu0
        %v3008 = vadd.f32 0.0, %v3007
        %3009 = vdwg.mxu0
        %v3010 = vadd.f32 %v2758, %v2890
        %v3011 = vadd.f32 %v2759, %v2913
        %v3012 = vadd.f32 %v2760, %v2936
        %v3013 = vadd.f32 %v2761, %v2959
        %v3014 = vadd.f32 %v2762, %v2982
        %v3015 = vadd.f32 %v2763, %v3005
        %v3016 = vadd.f32 %v2764, %v2893
        %v3017 = vadd.f32 %v2765, %v2916
        %v3018 = vadd.f32 %v2766, %v2939
        %v3019 = vadd.f32 %v2767, %v2962
        %v3020 = vadd.f32 %v2768, %v2985
        %v3021 = vadd.f32 %v2769, %v3008
        %3022 = vst [vmem:[%s291] sm:$0xff] %v3010
        %3023 = vst [vmem:[%s291 + $0x8] sm:$0xff] %v3011
        %3024 = vst [vmem:[%s291 + $0x10] sm:$0xff] %v3012
        %3025 = vst [vmem:[%s291 + $0x18] sm:$0xff] %v3013
        %3026 = vst [vmem:[%s291 + $0x20] sm:$0xff] %v3014
        %3027 = vst [vmem:[%s291 + $0x28] sm:$0xff] %v3015
        %3028 = vst [vmem:[%s291 + $0x30] sm:$0x7] %v3016
        %3029 = vst [vmem:[%s291 + $0x38] sm:$0x7] %v3017
        %3030 = vst [vmem:[%s291 + $0x40] sm:$0x7] %v3018
        %3031 = vst [vmem:[%s291 + $0x48] sm:$0x7] %v3019
        %3032 = vst [vmem:[%s291 + $0x50] sm:$0x7] %v3020
        %3033 = vst [vmem:[%s291 + $0x58] sm:$0x7] %v3021
        %v3034 = vld [vmem:[%s291] sm:$0xff]
        %v3035 = vld [vmem:[%s291 + $0x8] sm:$0xff]
        %v3036 = vld [vmem:[%s291 + $0x10] sm:$0xff]
        %v3037 = vld [vmem:[%s291 + $0x18] sm:$0xff]
        %v3038 = vld [vmem:[%s291 + $0x20] sm:$0xff]
        %v3039 = vld [vmem:[%s291 + $0x28] sm:$0xff]
        %v3040 = vld [vmem:[%s291 + $0x30] sm:$0x7]
        %v3041 = vld [vmem:[%s291 + $0x38] sm:$0x7]
        %v3042 = vld [vmem:[%s291 + $0x40] sm:$0x7]
        %v3043 = vld [vmem:[%s291 + $0x48] sm:$0x7]
        %v3044 = vld [vmem:[%s291 + $0x50] sm:$0x7]
        %v3045 = vld [vmem:[%s291 + $0x58] sm:$0x7]
        %s3046 = scalar_lea.vmem [#allocation7], 4608
        %v3047 = vld [vmem:[%s3046] sm:$0xff]
        %v3048 = vld [vmem:[%s3046 + $0x8] sm:$0xff]
        %v3049 = vld [vmem:[%s3046 + $0x10] sm:$0xff]
        %v3050 = vld [vmem:[%s3046 + $0x18] sm:$0xff]
        %v3051 = vld [vmem:[%s3046 + $0x20] sm:$0xff]
        %v3052 = vld [vmem:[%s3046 + $0x28] sm:$0xff]
        %v3053 = vld [vmem:[%s3046 + $0x30] sm:$0xff]
        %v3054 = vld [vmem:[%s3046 + $0x38] sm:$0xff]
        %v3055 = vld [vmem:[%s3046 + $0x40] sm:$0xff]
        %v3056 = vld [vmem:[%s3046 + $0x48] sm:$0xff]
        %v3057 = vld [vmem:[%s3046 + $0x50] sm:$0xff]
        %v3058 = vld [vmem:[%s3046 + $0x58] sm:$0xff]
        %v3059 = vld [vmem:[%s3046 + $0x60] sm:$0xff]
        %v3060 = vld [vmem:[%s3046 + $0x68] sm:$0xff]
        %v3061 = vld [vmem:[%s3046 + $0x70] sm:$0xff]
        %v3062 = vld [vmem:[%s3046 + $0x78] sm:$0xff]
        %v3063 = vld [vmem:[%s3046 + $0x80] sm:$0xff]
        %v3064 = vld [vmem:[%s3046 + $0x88] sm:$0xff]
        %v3065 = vld [vmem:[%s3046 + $0x90] sm:$0xff]
        %v3066 = vld [vmem:[%s3046 + $0x98] sm:$0xff]
        %v3067 = vld [vmem:[%s3046 + $0xa0] sm:$0xff]
        %v3068 = vld [vmem:[%s3046 + $0xa8] sm:$0xff]
        %v3069 = vld [vmem:[%s3046 + $0xb0] sm:$0xff]
        %v3070 = vld [vmem:[%s3046 + $0xb8] sm:$0xff]
        %v3071 = vld [vmem:[%s3046 + $0xc0] sm:$0xff]
        %v3072 = vld [vmem:[%s3046 + $0xc8] sm:$0xff]
        %v3073 = vld [vmem:[%s3046 + $0xd0] sm:$0xff]
        %v3074 = vld [vmem:[%s3046 + $0xd8] sm:$0xff]
        %v3075 = vld [vmem:[%s3046 + $0xe0] sm:$0xff]
        %v3076 = vld [vmem:[%s3046 + $0xe8] sm:$0xff]
        %v3077 = vld [vmem:[%s3046 + $0xf0] sm:$0xff]
        %v3078 = vld [vmem:[%s3046 + $0xf8] sm:$0xff]
        %v3079 = vld [vmem:[%s3046 + $0x100] sm:$0xff]
        %v3080 = vld [vmem:[%s3046 + $0x108] sm:$0xff]
        %v3081 = vld [vmem:[%s3046 + $0x110] sm:$0xff]
        %v3082 = vld [vmem:[%s3046 + $0x118] sm:$0xff]
        %v3083 = vld [vmem:[%s3046 + $0x120] sm:$0xff]
        %v3084 = vld [vmem:[%s3046 + $0x128] sm:$0xff]
        %v3085 = vld [vmem:[%s3046 + $0x130] sm:$0xff]
        %v3086 = vld [vmem:[%s3046 + $0x138] sm:$0xff]
        %v3087 = vld [vmem:[%s3046 + $0x140] sm:$0xff]
        %v3088 = vld [vmem:[%s3046 + $0x148] sm:$0xff]
        %v3089 = vld [vmem:[%s3046 + $0x150] sm:$0xff]
        %v3090 = vld [vmem:[%s3046 + $0x158] sm:$0xff]
        %v3091 = vld [vmem:[%s3046 + $0x160] sm:$0xff]
        %v3092 = vld [vmem:[%s3046 + $0x168] sm:$0xff]
        %v3093 = vld [vmem:[%s3046 + $0x170] sm:$0xff]
        %v3094 = vld [vmem:[%s3046 + $0x178] sm:$0xff]
        %v3095 = vld [vmem:[%s3046 + $0x180] sm:$0xff]
        %v3096 = vld [vmem:[%s3046 + $0x188] sm:$0xff]
        %v3097 = vld [vmem:[%s3046 + $0x190] sm:$0xff]
        %v3098 = vld [vmem:[%s3046 + $0x198] sm:$0xff]
        %v3099 = vld [vmem:[%s3046 + $0x1a0] sm:$0xff]
        %v3100 = vld [vmem:[%s3046 + $0x1a8] sm:$0xff]
        %v3101 = vld [vmem:[%s3046 + $0x1b0] sm:$0xff]
        %v3102 = vld [vmem:[%s3046 + $0x1b8] sm:$0xff]
        %v3103 = vld [vmem:[%s3046 + $0x1c0] sm:$0xff]
        %v3104 = vld [vmem:[%s3046 + $0x1c8] sm:$0xff]
        %v3105 = vld [vmem:[%s3046 + $0x1d0] sm:$0xff]
        %v3106 = vld [vmem:[%s3046 + $0x1d8] sm:$0xff]
        %v3107 = vld [vmem:[%s3046 + $0x1e0] sm:$0xff]
        %v3108 = vld [vmem:[%s3046 + $0x1e8] sm:$0xff]
        %v3109 = vld [vmem:[%s3046 + $0x1f0] sm:$0xff]
        %v3110 = vld [vmem:[%s3046 + $0x1f8] sm:$0xff]
        %v3111 = vld [vmem:[%s3046 + $0x200] sm:$0xff]
        %v3112 = vld [vmem:[%s3046 + $0x208] sm:$0xff]
        %v3113 = vld [vmem:[%s3046 + $0x210] sm:$0xff]
        %v3114 = vld [vmem:[%s3046 + $0x218] sm:$0xff]
        %v3115 = vld [vmem:[%s3046 + $0x220] sm:$0xff]
        %v3116 = vld [vmem:[%s3046 + $0x228] sm:$0xff]
        %v3117 = vld [vmem:[%s3046 + $0x230] sm:$0xff]
        %v3118 = vld [vmem:[%s3046 + $0x238] sm:$0xff]
        %v3119 = vld [vmem:[%s3046 + $0x240] sm:$0xff]
        %v3120 = vld [vmem:[%s3046 + $0x248] sm:$0xff]
        %v3121 = vld [vmem:[%s3046 + $0x250] sm:$0xff]
        %v3122 = vld [vmem:[%s3046 + $0x258] sm:$0xff]
        %v3123 = vld [vmem:[%s3046 + $0x260] sm:$0xff]
        %v3124 = vld [vmem:[%s3046 + $0x268] sm:$0xff]
        %v3125 = vld [vmem:[%s3046 + $0x270] sm:$0xff]
        %v3126 = vld [vmem:[%s3046 + $0x278] sm:$0xff]
        %v3127 = vld [vmem:[%s3046 + $0x280] sm:$0xff]
        %v3128 = vld [vmem:[%s3046 + $0x288] sm:$0xff]
        %v3129 = vld [vmem:[%s3046 + $0x290] sm:$0xff]
        %v3130 = vld [vmem:[%s3046 + $0x298] sm:$0xff]
        %v3131 = vld [vmem:[%s3046 + $0x2a0] sm:$0xff]
        %v3132 = vld [vmem:[%s3046 + $0x2a8] sm:$0xff]
        %v3133 = vld [vmem:[%s3046 + $0x2b0] sm:$0xff]
        %v3134 = vld [vmem:[%s3046 + $0x2b8] sm:$0xff]
        %v3135 = vld [vmem:[%s3046 + $0x2c0] sm:$0xff]
        %v3136 = vld [vmem:[%s3046 + $0x2c8] sm:$0xff]
        %v3137 = vld [vmem:[%s3046 + $0x2d0] sm:$0xff]
        %v3138 = vld [vmem:[%s3046 + $0x2d8] sm:$0xff]
        %v3139 = vld [vmem:[%s3046 + $0x2e0] sm:$0xff]
        %v3140 = vld [vmem:[%s3046 + $0x2e8] sm:$0xff]
        %v3141 = vld [vmem:[%s3046 + $0x2f0] sm:$0xff]
        %v3142 = vld [vmem:[%s3046 + $0x2f8] sm:$0xff]
        %v3144 = vrot.slane %v1406, 6
        %v3145 = vrot.slane %v1403, 6
        %v3146 = vsel %vm1292, %v3144, %v3145
        %v3147 = vrot.slane 0.0, 6
        %v3148 = vsel %vm1292, %v3145, %v3147
        %3151 = vmatpush.msra.mxu0 %v3137
        %3152 = vmatpush.msra.mxu0 %v3131
        %3153 = vmatpush.msra.mxu0 %v3125
        %3154 = vmatpush.msra.mxu0 %v3119
        %3155 = vmatpush.msra.mxu0 %v3113
        %3156 = vmatpush.msra.mxu0 %v3107
        %3157 = vmatpush.msra.mxu0 %v3101
        %3158 = vmatpush.msra.mxu0 %v3095
        %3159 = vmatpush.msra.mxu0 %v3089
        %3160 = vmatpush.msra.mxu0 %v3083
        %3161 = vmatpush.msra.mxu0 %v3077
        %3162 = vmatpush.msra.mxu0 %v3071
        %3163 = vmatpush.msra.mxu0 %v3065
        %3164 = vmatpush.msra.mxu0 %v3059
        %3165 = vmatpush.msra.mxu0 %v3053
        %3166 = vmatpush.msra.mxu0 %v3047
        %3167 = vmatmul.f32.gmra.mxu0 %v3146
        %v3168 = vpop.f32.mrf.mxu0
        %v3169 = vadd.f32 0.0, %v3168
        %3170 = vmatmul.f32.gmra.mxu0 %v3148
        %v3171 = vpop.f32.mrf.mxu0
        %v3172 = vadd.f32 0.0, %v3171
        %3173 = vdwg.mxu0
        %3174 = vmatpush.msra.mxu0 %v3138
        %3175 = vmatpush.msra.mxu0 %v3132
        %3176 = vmatpush.msra.mxu0 %v3126
        %3177 = vmatpush.msra.mxu0 %v3120
        %3178 = vmatpush.msra.mxu0 %v3114
        %3179 = vmatpush.msra.mxu0 %v3108
        %3180 = vmatpush.msra.mxu0 %v3102
        %3181 = vmatpush.msra.mxu0 %v3096
        %3182 = vmatpush.msra.mxu0 %v3090
        %3183 = vmatpush.msra.mxu0 %v3084
        %3184 = vmatpush.msra.mxu0 %v3078
        %3185 = vmatpush.msra.mxu0 %v3072
        %3186 = vmatpush.msra.mxu0 %v3066
        %3187 = vmatpush.msra.mxu0 %v3060
        %3188 = vmatpush.msra.mxu0 %v3054
        %3189 = vmatpush.msra.mxu0 %v3048
        %3190 = vmatmul.f32.gmra.mxu0 %v3146
        %v3191 = vpop.f32.mrf.mxu0
        %v3192 = vadd.f32 0.0, %v3191
        %3193 = vmatmul.f32.gmra.mxu0 %v3148
        %v3194 = vpop.f32.mrf.mxu0
        %v3195 = vadd.f32 0.0, %v3194
        %3196 = vdwg.mxu0
        %3197 = vmatpush.msra.mxu0 %v3139
        %3198 = vmatpush.msra.mxu0 %v3133
        %3199 = vmatpush.msra.mxu0 %v3127
        %3200 = vmatpush.msra.mxu0 %v3121
        %3201 = vmatpush.msra.mxu0 %v3115
        %3202 = vmatpush.msra.mxu0 %v3109
        %3203 = vmatpush.msra.mxu0 %v3103
        %3204 = vmatpush.msra.mxu0 %v3097
        %3205 = vmatpush.msra.mxu0 %v3091
        %3206 = vmatpush.msra.mxu0 %v3085
        %3207 = vmatpush.msra.mxu0 %v3079
        %3208 = vmatpush.msra.mxu0 %v3073
        %3209 = vmatpush.msra.mxu0 %v3067
        %3210 = vmatpush.msra.mxu0 %v3061
        %3211 = vmatpush.msra.mxu0 %v3055
        %3212 = vmatpush.msra.mxu0 %v3049
        %3213 = vmatmul.f32.gmra.mxu0 %v3146
        %v3214 = vpop.f32.mrf.mxu0
        %v3215 = vadd.f32 0.0, %v3214
        %3216 = vmatmul.f32.gmra.mxu0 %v3148
        %v3217 = vpop.f32.mrf.mxu0
        %v3218 = vadd.f32 0.0, %v3217
        %3219 = vdwg.mxu0
        %3220 = vmatpush.msra.mxu0 %v3140
        %3221 = vmatpush.msra.mxu0 %v3134
        %3222 = vmatpush.msra.mxu0 %v3128
        %3223 = vmatpush.msra.mxu0 %v3122
        %3224 = vmatpush.msra.mxu0 %v3116
        %3225 = vmatpush.msra.mxu0 %v3110
        %3226 = vmatpush.msra.mxu0 %v3104
        %3227 = vmatpush.msra.mxu0 %v3098
        %3228 = vmatpush.msra.mxu0 %v3092
        %3229 = vmatpush.msra.mxu0 %v3086
        %3230 = vmatpush.msra.mxu0 %v3080
        %3231 = vmatpush.msra.mxu0 %v3074
        %3232 = vmatpush.msra.mxu0 %v3068
        %3233 = vmatpush.msra.mxu0 %v3062
        %3234 = vmatpush.msra.mxu0 %v3056
        %3235 = vmatpush.msra.mxu0 %v3050
        %3236 = vmatmul.f32.gmra.mxu0 %v3146
        %v3237 = vpop.f32.mrf.mxu0
        %v3238 = vadd.f32 0.0, %v3237
        %3239 = vmatmul.f32.gmra.mxu0 %v3148
        %v3240 = vpop.f32.mrf.mxu0
        %v3241 = vadd.f32 0.0, %v3240
        %3242 = vdwg.mxu0
        %3243 = vmatpush.msra.mxu0 %v3141
        %3244 = vmatpush.msra.mxu0 %v3135
        %3245 = vmatpush.msra.mxu0 %v3129
        %3246 = vmatpush.msra.mxu0 %v3123
        %3247 = vmatpush.msra.mxu0 %v3117
        %3248 = vmatpush.msra.mxu0 %v3111
        %3249 = vmatpush.msra.mxu0 %v3105
        %3250 = vmatpush.msra.mxu0 %v3099
        %3251 = vmatpush.msra.mxu0 %v3093
        %3252 = vmatpush.msra.mxu0 %v3087
        %3253 = vmatpush.msra.mxu0 %v3081
        %3254 = vmatpush.msra.mxu0 %v3075
        %3255 = vmatpush.msra.mxu0 %v3069
        %3256 = vmatpush.msra.mxu0 %v3063
        %3257 = vmatpush.msra.mxu0 %v3057
        %3258 = vmatpush.msra.mxu0 %v3051
        %3259 = vmatmul.f32.gmra.mxu0 %v3146
        %v3260 = vpop.f32.mrf.mxu0
        %v3261 = vadd.f32 0.0, %v3260
        %3262 = vmatmul.f32.gmra.mxu0 %v3148
        %v3263 = vpop.f32.mrf.mxu0
        %v3264 = vadd.f32 0.0, %v3263
        %3265 = vdwg.mxu0
        %3266 = vmatpush.msra.mxu0 %v3142
        %3267 = vmatpush.msra.mxu0 %v3136
        %3268 = vmatpush.msra.mxu0 %v3130
        %3269 = vmatpush.msra.mxu0 %v3124
        %3270 = vmatpush.msra.mxu0 %v3118
        %3271 = vmatpush.msra.mxu0 %v3112
        %3272 = vmatpush.msra.mxu0 %v3106
        %3273 = vmatpush.msra.mxu0 %v3100
        %3274 = vmatpush.msra.mxu0 %v3094
        %3275 = vmatpush.msra.mxu0 %v3088
        %3276 = vmatpush.msra.mxu0 %v3082
        %3277 = vmatpush.msra.mxu0 %v3076
        %3278 = vmatpush.msra.mxu0 %v3070
        %3279 = vmatpush.msra.mxu0 %v3064
        %3280 = vmatpush.msra.mxu0 %v3058
        %3281 = vmatpush.msra.mxu0 %v3052
        %3282 = vmatmul.f32.gmra.mxu0 %v3146
        %v3283 = vpop.f32.mrf.mxu0
        %v3284 = vadd.f32 0.0, %v3283
        %3285 = vmatmul.f32.gmra.mxu0 %v3148
        %v3286 = vpop.f32.mrf.mxu0
        %v3287 = vadd.f32 0.0, %v3286
        %3288 = vdwg.mxu0
        %v3289 = vadd.f32 %v3034, %v3169
        %v3290 = vadd.f32 %v3035, %v3192
        %v3291 = vadd.f32 %v3036, %v3215
        %v3292 = vadd.f32 %v3037, %v3238
        %v3293 = vadd.f32 %v3038, %v3261
        %v3294 = vadd.f32 %v3039, %v3284
        %v3295 = vadd.f32 %v3040, %v3172
        %v3296 = vadd.f32 %v3041, %v3195
        %v3297 = vadd.f32 %v3042, %v3218
        %v3298 = vadd.f32 %v3043, %v3241
        %v3299 = vadd.f32 %v3044, %v3264
        %v3300 = vadd.f32 %v3045, %v3287
        %3301 = vst [vmem:[%s291] sm:$0xff] %v3289
        %3302 = vst [vmem:[%s291 + $0x8] sm:$0xff] %v3290
        %3303 = vst [vmem:[%s291 + $0x10] sm:$0xff] %v3291
        %3304 = vst [vmem:[%s291 + $0x18] sm:$0xff] %v3292
        %3305 = vst [vmem:[%s291 + $0x20] sm:$0xff] %v3293
        %3306 = vst [vmem:[%s291 + $0x28] sm:$0xff] %v3294
        %3307 = vst [vmem:[%s291 + $0x30] sm:$0x7] %v3295
        %3308 = vst [vmem:[%s291 + $0x38] sm:$0x7] %v3296
        %3309 = vst [vmem:[%s291 + $0x40] sm:$0x7] %v3297
        %3310 = vst [vmem:[%s291 + $0x48] sm:$0x7] %v3298
        %3311 = vst [vmem:[%s291 + $0x50] sm:$0x7] %v3299
        %3312 = vst [vmem:[%s291 + $0x58] sm:$0x7] %v3300
        %v3313 = vld [vmem:[%s291] sm:$0xff]
        %v3314 = vld [vmem:[%s291 + $0x8] sm:$0xff]
        %v3315 = vld [vmem:[%s291 + $0x10] sm:$0xff]
        %v3316 = vld [vmem:[%s291 + $0x18] sm:$0xff]
        %v3317 = vld [vmem:[%s291 + $0x20] sm:$0xff]
        %v3318 = vld [vmem:[%s291 + $0x28] sm:$0xff]
        %v3319 = vld [vmem:[%s291 + $0x30] sm:$0x7]
        %v3320 = vld [vmem:[%s291 + $0x38] sm:$0x7]
        %v3321 = vld [vmem:[%s291 + $0x40] sm:$0x7]
        %v3322 = vld [vmem:[%s291 + $0x48] sm:$0x7]
        %v3323 = vld [vmem:[%s291 + $0x50] sm:$0x7]
        %v3324 = vld [vmem:[%s291 + $0x58] sm:$0x7]
        %s3325 = scalar_lea.vmem [#allocation7], 5376
        %v3326 = vld [vmem:[%s3325] sm:$0xff]
        %v3327 = vld [vmem:[%s3325 + $0x8] sm:$0xff]
        %v3328 = vld [vmem:[%s3325 + $0x10] sm:$0xff]
        %v3329 = vld [vmem:[%s3325 + $0x18] sm:$0xff]
        %v3330 = vld [vmem:[%s3325 + $0x20] sm:$0xff]
        %v3331 = vld [vmem:[%s3325 + $0x28] sm:$0xff]
        %v3332 = vld [vmem:[%s3325 + $0x30] sm:$0xff]
        %v3333 = vld [vmem:[%s3325 + $0x38] sm:$0xff]
        %v3334 = vld [vmem:[%s3325 + $0x40] sm:$0xff]
        %v3335 = vld [vmem:[%s3325 + $0x48] sm:$0xff]
        %v3336 = vld [vmem:[%s3325 + $0x50] sm:$0xff]
        %v3337 = vld [vmem:[%s3325 + $0x58] sm:$0xff]
        %v3338 = vld [vmem:[%s3325 + $0x60] sm:$0xff]
        %v3339 = vld [vmem:[%s3325 + $0x68] sm:$0xff]
        %v3340 = vld [vmem:[%s3325 + $0x70] sm:$0xff]
        %v3341 = vld [vmem:[%s3325 + $0x78] sm:$0xff]
        %v3342 = vld [vmem:[%s3325 + $0x80] sm:$0xff]
        %v3343 = vld [vmem:[%s3325 + $0x88] sm:$0xff]
        %v3344 = vld [vmem:[%s3325 + $0x90] sm:$0xff]
        %v3345 = vld [vmem:[%s3325 + $0x98] sm:$0xff]
        %v3346 = vld [vmem:[%s3325 + $0xa0] sm:$0xff]
        %v3347 = vld [vmem:[%s3325 + $0xa8] sm:$0xff]
        %v3348 = vld [vmem:[%s3325 + $0xb0] sm:$0xff]
        %v3349 = vld [vmem:[%s3325 + $0xb8] sm:$0xff]
        %v3350 = vld [vmem:[%s3325 + $0xc0] sm:$0xff]
        %v3351 = vld [vmem:[%s3325 + $0xc8] sm:$0xff]
        %v3352 = vld [vmem:[%s3325 + $0xd0] sm:$0xff]
        %v3353 = vld [vmem:[%s3325 + $0xd8] sm:$0xff]
        %v3354 = vld [vmem:[%s3325 + $0xe0] sm:$0xff]
        %v3355 = vld [vmem:[%s3325 + $0xe8] sm:$0xff]
        %v3356 = vld [vmem:[%s3325 + $0xf0] sm:$0xff]
        %v3357 = vld [vmem:[%s3325 + $0xf8] sm:$0xff]
        %v3358 = vld [vmem:[%s3325 + $0x100] sm:$0xff]
        %v3359 = vld [vmem:[%s3325 + $0x108] sm:$0xff]
        %v3360 = vld [vmem:[%s3325 + $0x110] sm:$0xff]
        %v3361 = vld [vmem:[%s3325 + $0x118] sm:$0xff]
        %v3362 = vld [vmem:[%s3325 + $0x120] sm:$0xff]
        %v3363 = vld [vmem:[%s3325 + $0x128] sm:$0xff]
        %v3364 = vld [vmem:[%s3325 + $0x130] sm:$0xff]
        %v3365 = vld [vmem:[%s3325 + $0x138] sm:$0xff]
        %v3366 = vld [vmem:[%s3325 + $0x140] sm:$0xff]
        %v3367 = vld [vmem:[%s3325 + $0x148] sm:$0xff]
        %v3368 = vld [vmem:[%s3325 + $0x150] sm:$0xff]
        %v3369 = vld [vmem:[%s3325 + $0x158] sm:$0xff]
        %v3370 = vld [vmem:[%s3325 + $0x160] sm:$0xff]
        %v3371 = vld [vmem:[%s3325 + $0x168] sm:$0xff]
        %v3372 = vld [vmem:[%s3325 + $0x170] sm:$0xff]
        %v3373 = vld [vmem:[%s3325 + $0x178] sm:$0xff]
        %v3374 = vld [vmem:[%s3325 + $0x180] sm:$0xff]
        %v3375 = vld [vmem:[%s3325 + $0x188] sm:$0xff]
        %v3376 = vld [vmem:[%s3325 + $0x190] sm:$0xff]
        %v3377 = vld [vmem:[%s3325 + $0x198] sm:$0xff]
        %v3378 = vld [vmem:[%s3325 + $0x1a0] sm:$0xff]
        %v3379 = vld [vmem:[%s3325 + $0x1a8] sm:$0xff]
        %v3380 = vld [vmem:[%s3325 + $0x1b0] sm:$0xff]
        %v3381 = vld [vmem:[%s3325 + $0x1b8] sm:$0xff]
        %v3382 = vld [vmem:[%s3325 + $0x1c0] sm:$0xff]
        %v3383 = vld [vmem:[%s3325 + $0x1c8] sm:$0xff]
        %v3384 = vld [vmem:[%s3325 + $0x1d0] sm:$0xff]
        %v3385 = vld [vmem:[%s3325 + $0x1d8] sm:$0xff]
        %v3386 = vld [vmem:[%s3325 + $0x1e0] sm:$0xff]
        %v3387 = vld [vmem:[%s3325 + $0x1e8] sm:$0xff]
        %v3388 = vld [vmem:[%s3325 + $0x1f0] sm:$0xff]
        %v3389 = vld [vmem:[%s3325 + $0x1f8] sm:$0xff]
        %v3390 = vld [vmem:[%s3325 + $0x200] sm:$0xff]
        %v3391 = vld [vmem:[%s3325 + $0x208] sm:$0xff]
        %v3392 = vld [vmem:[%s3325 + $0x210] sm:$0xff]
        %v3393 = vld [vmem:[%s3325 + $0x218] sm:$0xff]
        %v3394 = vld [vmem:[%s3325 + $0x220] sm:$0xff]
        %v3395 = vld [vmem:[%s3325 + $0x228] sm:$0xff]
        %v3396 = vld [vmem:[%s3325 + $0x230] sm:$0xff]
        %v3397 = vld [vmem:[%s3325 + $0x238] sm:$0xff]
        %v3398 = vld [vmem:[%s3325 + $0x240] sm:$0xff]
        %v3399 = vld [vmem:[%s3325 + $0x248] sm:$0xff]
        %v3400 = vld [vmem:[%s3325 + $0x250] sm:$0xff]
        %v3401 = vld [vmem:[%s3325 + $0x258] sm:$0xff]
        %v3402 = vld [vmem:[%s3325 + $0x260] sm:$0xff]
        %v3403 = vld [vmem:[%s3325 + $0x268] sm:$0xff]
        %v3404 = vld [vmem:[%s3325 + $0x270] sm:$0xff]
        %v3405 = vld [vmem:[%s3325 + $0x278] sm:$0xff]
        %v3406 = vld [vmem:[%s3325 + $0x280] sm:$0xff]
        %v3407 = vld [vmem:[%s3325 + $0x288] sm:$0xff]
        %v3408 = vld [vmem:[%s3325 + $0x290] sm:$0xff]
        %v3409 = vld [vmem:[%s3325 + $0x298] sm:$0xff]
        %v3410 = vld [vmem:[%s3325 + $0x2a0] sm:$0xff]
        %v3411 = vld [vmem:[%s3325 + $0x2a8] sm:$0xff]
        %v3412 = vld [vmem:[%s3325 + $0x2b0] sm:$0xff]
        %v3413 = vld [vmem:[%s3325 + $0x2b8] sm:$0xff]
        %v3414 = vld [vmem:[%s3325 + $0x2c0] sm:$0xff]
        %v3415 = vld [vmem:[%s3325 + $0x2c8] sm:$0xff]
        %v3416 = vld [vmem:[%s3325 + $0x2d0] sm:$0xff]
        %v3417 = vld [vmem:[%s3325 + $0x2d8] sm:$0xff]
        %v3418 = vld [vmem:[%s3325 + $0x2e0] sm:$0xff]
        %v3419 = vld [vmem:[%s3325 + $0x2e8] sm:$0xff]
        %v3420 = vld [vmem:[%s3325 + $0x2f0] sm:$0xff]
        %v3421 = vld [vmem:[%s3325 + $0x2f8] sm:$0xff]
        %v3422 = vrot.slane %v1406, 7
        %v3423 = vrot.slane %v1403, 7
        %v3424 = vsel %vm1302, %v3422, %v3423
        %v3425 = vrot.slane 0.0, 7
        %v3426 = vsel %vm1302, %v3423, %v3425
        %3429 = vmatpush.msra.mxu0 %v3416
        %3430 = vmatpush.msra.mxu0 %v3410
        %3431 = vmatpush.msra.mxu0 %v3404
        %3432 = vmatpush.msra.mxu0 %v3398
        %3433 = vmatpush.msra.mxu0 %v3392
        %3434 = vmatpush.msra.mxu0 %v3386
        %3435 = vmatpush.msra.mxu0 %v3380
        %3436 = vmatpush.msra.mxu0 %v3374
        %3437 = vmatpush.msra.mxu0 %v3368
        %3438 = vmatpush.msra.mxu0 %v3362
        %3439 = vmatpush.msra.mxu0 %v3356
        %3440 = vmatpush.msra.mxu0 %v3350
        %3441 = vmatpush.msra.mxu0 %v3344
        %3442 = vmatpush.msra.mxu0 %v3338
        %3443 = vmatpush.msra.mxu0 %v3332
        %3444 = vmatpush.msra.mxu0 %v3326
        %3445 = vmatmul.f32.gmra.mxu0 %v3424
        %v3446 = vpop.f32.mrf.mxu0
        %v3447 = vadd.f32 0.0, %v3446
        %3448 = vmatmul.f32.gmra.mxu0 %v3426
        %v3449 = vpop.f32.mrf.mxu0
        %v3450 = vadd.f32 0.0, %v3449
        %3451 = vdwg.mxu0
        %3452 = vmatpush.msra.mxu0 %v3417
        %3453 = vmatpush.msra.mxu0 %v3411
        %3454 = vmatpush.msra.mxu0 %v3405
        %3455 = vmatpush.msra.mxu0 %v3399
        %3456 = vmatpush.msra.mxu0 %v3393
        %3457 = vmatpush.msra.mxu0 %v3387
        %3458 = vmatpush.msra.mxu0 %v3381
        %3459 = vmatpush.msra.mxu0 %v3375
        %3460 = vmatpush.msra.mxu0 %v3369
        %3461 = vmatpush.msra.mxu0 %v3363
        %3462 = vmatpush.msra.mxu0 %v3357
        %3463 = vmatpush.msra.mxu0 %v3351
        %3464 = vmatpush.msra.mxu0 %v3345
        %3465 = vmatpush.msra.mxu0 %v3339
        %3466 = vmatpush.msra.mxu0 %v3333
        %3467 = vmatpush.msra.mxu0 %v3327
        %3468 = vmatmul.f32.gmra.mxu0 %v3424
        %v3469 = vpop.f32.mrf.mxu0
        %v3470 = vadd.f32 0.0, %v3469
        %3471 = vmatmul.f32.gmra.mxu0 %v3426
        %v3472 = vpop.f32.mrf.mxu0
        %v3473 = vadd.f32 0.0, %v3472
        %3474 = vdwg.mxu0
        %3475 = vmatpush.msra.mxu0 %v3418
        %3476 = vmatpush.msra.mxu0 %v3412
        %3477 = vmatpush.msra.mxu0 %v3406
        %3478 = vmatpush.msra.mxu0 %v3400
        %3479 = vmatpush.msra.mxu0 %v3394
        %3480 = vmatpush.msra.mxu0 %v3388
        %3481 = vmatpush.msra.mxu0 %v3382
        %3482 = vmatpush.msra.mxu0 %v3376
        %3483 = vmatpush.msra.mxu0 %v3370
        %3484 = vmatpush.msra.mxu0 %v3364
        %3485 = vmatpush.msra.mxu0 %v3358
        %3486 = vmatpush.msra.mxu0 %v3352
        %3487 = vmatpush.msra.mxu0 %v3346
        %3488 = vmatpush.msra.mxu0 %v3340
        %3489 = vmatpush.msra.mxu0 %v3334
        %3490 = vmatpush.msra.mxu0 %v3328
        %3491 = vmatmul.f32.gmra.mxu0 %v3424
        %v3492 = vpop.f32.mrf.mxu0
        %v3493 = vadd.f32 0.0, %v3492
        %3494 = vmatmul.f32.gmra.mxu0 %v3426
        %v3495 = vpop.f32.mrf.mxu0
        %v3496 = vadd.f32 0.0, %v3495
        %3497 = vdwg.mxu0
        %3498 = vmatpush.msra.mxu0 %v3419
        %3499 = vmatpush.msra.mxu0 %v3413
        %3500 = vmatpush.msra.mxu0 %v3407
        %3501 = vmatpush.msra.mxu0 %v3401
        %3502 = vmatpush.msra.mxu0 %v3395
        %3503 = vmatpush.msra.mxu0 %v3389
        %3504 = vmatpush.msra.mxu0 %v3383
        %3505 = vmatpush.msra.mxu0 %v3377
        %3506 = vmatpush.msra.mxu0 %v3371
        %3507 = vmatpush.msra.mxu0 %v3365
        %3508 = vmatpush.msra.mxu0 %v3359
        %3509 = vmatpush.msra.mxu0 %v3353
        %3510 = vmatpush.msra.mxu0 %v3347
        %3511 = vmatpush.msra.mxu0 %v3341
        %3512 = vmatpush.msra.mxu0 %v3335
        %3513 = vmatpush.msra.mxu0 %v3329
        %3514 = vmatmul.f32.gmra.mxu0 %v3424
        %v3515 = vpop.f32.mrf.mxu0
        %v3516 = vadd.f32 0.0, %v3515
        %3517 = vmatmul.f32.gmra.mxu0 %v3426
        %v3518 = vpop.f32.mrf.mxu0
        %v3519 = vadd.f32 0.0, %v3518
        %3520 = vdwg.mxu0
        %3521 = vmatpush.msra.mxu0 %v3420
        %3522 = vmatpush.msra.mxu0 %v3414
        %3523 = vmatpush.msra.mxu0 %v3408
        %3524 = vmatpush.msra.mxu0 %v3402
        %3525 = vmatpush.msra.mxu0 %v3396
        %3526 = vmatpush.msra.mxu0 %v3390
        %3527 = vmatpush.msra.mxu0 %v3384
        %3528 = vmatpush.msra.mxu0 %v3378
        %3529 = vmatpush.msra.mxu0 %v3372
        %3530 = vmatpush.msra.mxu0 %v3366
        %3531 = vmatpush.msra.mxu0 %v3360
        %3532 = vmatpush.msra.mxu0 %v3354
        %3533 = vmatpush.msra.mxu0 %v3348
        %3534 = vmatpush.msra.mxu0 %v3342
        %3535 = vmatpush.msra.mxu0 %v3336
        %3536 = vmatpush.msra.mxu0 %v3330
        %3537 = vmatmul.f32.gmra.mxu0 %v3424
        %v3538 = vpop.f32.mrf.mxu0
        %v3539 = vadd.f32 0.0, %v3538
        %3540 = vmatmul.f32.gmra.mxu0 %v3426
        %v3541 = vpop.f32.mrf.mxu0
        %v3542 = vadd.f32 0.0, %v3541
        %3543 = vdwg.mxu0
        %3544 = vmatpush.msra.mxu0 %v3421
        %3545 = vmatpush.msra.mxu0 %v3415
        %3546 = vmatpush.msra.mxu0 %v3409
        %3547 = vmatpush.msra.mxu0 %v3403
        %3548 = vmatpush.msra.mxu0 %v3397
        %3549 = vmatpush.msra.mxu0 %v3391
        %3550 = vmatpush.msra.mxu0 %v3385
        %3551 = vmatpush.msra.mxu0 %v3379
        %3552 = vmatpush.msra.mxu0 %v3373
        %3553 = vmatpush.msra.mxu0 %v3367
        %3554 = vmatpush.msra.mxu0 %v3361
        %3555 = vmatpush.msra.mxu0 %v3355
        %3556 = vmatpush.msra.mxu0 %v3349
        %3557 = vmatpush.msra.mxu0 %v3343
        %3558 = vmatpush.msra.mxu0 %v3337
        %3559 = vmatpush.msra.mxu0 %v3331
        %3560 = vmatmul.f32.gmra.mxu0 %v3424
        %v3561 = vpop.f32.mrf.mxu0
        %v3562 = vadd.f32 0.0, %v3561
        %3563 = vmatmul.f32.gmra.mxu0 %v3426
        %v3564 = vpop.f32.mrf.mxu0
        %v3565 = vadd.f32 0.0, %v3564
        %3566 = vdwg.mxu0
        %v3567 = vadd.f32 %v3313, %v3447
        %v3568 = vadd.f32 %v3314, %v3470
        %v3569 = vadd.f32 %v3315, %v3493
        %v3570 = vadd.f32 %v3316, %v3516
        %v3571 = vadd.f32 %v3317, %v3539
        %v3572 = vadd.f32 %v3318, %v3562
        %v3573 = vadd.f32 %v3319, %v3450
        %v3574 = vadd.f32 %v3320, %v3473
        %v3575 = vadd.f32 %v3321, %v3496
        %v3576 = vadd.f32 %v3322, %v3519
        %v3577 = vadd.f32 %v3323, %v3542
        %v3578 = vadd.f32 %v3324, %v3565
        %3579 = vst [vmem:[%s291] sm:$0xff] %v3567
        %3580 = vst [vmem:[%s291 + $0x8] sm:$0xff] %v3568
        %3581 = vst [vmem:[%s291 + $0x10] sm:$0xff] %v3569
        %3582 = vst [vmem:[%s291 + $0x18] sm:$0xff] %v3570
        %3583 = vst [vmem:[%s291 + $0x20] sm:$0xff] %v3571
        %3584 = vst [vmem:[%s291 + $0x28] sm:$0xff] %v3572
        %3585 = vst [vmem:[%s291 + $0x30] sm:$0x7] %v3573
        %3586 = vst [vmem:[%s291 + $0x38] sm:$0x7] %v3574
        %3587 = vst [vmem:[%s291 + $0x40] sm:$0x7] %v3575
        %3588 = vst [vmem:[%s291 + $0x48] sm:$0x7] %v3576
        %3589 = vst [vmem:[%s291 + $0x50] sm:$0x7] %v3577
        %3590 = vst [vmem:[%s291 + $0x58] sm:$0x7] %v3578
        %v3591 = vld [vmem:[%s291] sm:$0xff]
        %v3592 = vld [vmem:[%s291 + $0x8] sm:$0xff]
        %v3593 = vld [vmem:[%s291 + $0x10] sm:$0xff]
        %v3594 = vld [vmem:[%s291 + $0x18] sm:$0xff]
        %v3595 = vld [vmem:[%s291 + $0x20] sm:$0xff]
        %v3596 = vld [vmem:[%s291 + $0x28] sm:$0xff]
        %v3597 = vld [vmem:[%s291 + $0x30] sm:$0x7]
        %v3598 = vld [vmem:[%s291 + $0x38] sm:$0x7]
        %v3599 = vld [vmem:[%s291 + $0x40] sm:$0x7]
        %v3600 = vld [vmem:[%s291 + $0x48] sm:$0x7]
        %v3601 = vld [vmem:[%s291 + $0x50] sm:$0x7]
        %v3602 = vld [vmem:[%s291 + $0x58] sm:$0x7]
        %s3603 = scalar_lea.vmem [#allocation7], 6144
        %v3604 = vld [vmem:[%s3603] sm:$0xff]
        %v3605 = vld [vmem:[%s3603 + $0x8] sm:$0xff]
        %v3606 = vld [vmem:[%s3603 + $0x10] sm:$0xff]
        %v3607 = vld [vmem:[%s3603 + $0x18] sm:$0xff]
        %v3608 = vld [vmem:[%s3603 + $0x20] sm:$0xff]
        %v3609 = vld [vmem:[%s3603 + $0x28] sm:$0xff]
        %v3610 = vld [vmem:[%s3603 + $0x30] sm:$0xff]
        %v3611 = vld [vmem:[%s3603 + $0x38] sm:$0xff]
        %v3612 = vld [vmem:[%s3603 + $0x40] sm:$0xff]
        %v3613 = vld [vmem:[%s3603 + $0x48] sm:$0xff]
        %v3614 = vld [vmem:[%s3603 + $0x50] sm:$0xff]
        %v3615 = vld [vmem:[%s3603 + $0x58] sm:$0xff]
        %v3616 = vld [vmem:[%s3603 + $0x60] sm:$0xff]
        %v3617 = vld [vmem:[%s3603 + $0x68] sm:$0xff]
        %v3618 = vld [vmem:[%s3603 + $0x70] sm:$0xff]
        %v3619 = vld [vmem:[%s3603 + $0x78] sm:$0xff]
        %v3620 = vld [vmem:[%s3603 + $0x80] sm:$0xff]
        %v3621 = vld [vmem:[%s3603 + $0x88] sm:$0xff]
        %v3622 = vld [vmem:[%s3603 + $0x90] sm:$0xff]
        %v3623 = vld [vmem:[%s3603 + $0x98] sm:$0xff]
        %v3624 = vld [vmem:[%s3603 + $0xa0] sm:$0xff]
        %v3625 = vld [vmem:[%s3603 + $0xa8] sm:$0xff]
        %v3626 = vld [vmem:[%s3603 + $0xb0] sm:$0xff]
        %v3627 = vld [vmem:[%s3603 + $0xb8] sm:$0xff]
        %v3628 = vld [vmem:[%s3603 + $0xc0] sm:$0xff]
        %v3629 = vld [vmem:[%s3603 + $0xc8] sm:$0xff]
        %v3630 = vld [vmem:[%s3603 + $0xd0] sm:$0xff]
        %v3631 = vld [vmem:[%s3603 + $0xd8] sm:$0xff]
        %v3632 = vld [vmem:[%s3603 + $0xe0] sm:$0xff]
        %v3633 = vld [vmem:[%s3603 + $0xe8] sm:$0xff]
        %v3634 = vld [vmem:[%s3603 + $0xf0] sm:$0xff]
        %v3635 = vld [vmem:[%s3603 + $0xf8] sm:$0xff]
        %v3636 = vld [vmem:[%s3603 + $0x100] sm:$0xff]
        %v3637 = vld [vmem:[%s3603 + $0x108] sm:$0xff]
        %v3638 = vld [vmem:[%s3603 + $0x110] sm:$0xff]
        %v3639 = vld [vmem:[%s3603 + $0x118] sm:$0xff]
        %v3640 = vld [vmem:[%s3603 + $0x120] sm:$0xff]
        %v3641 = vld [vmem:[%s3603 + $0x128] sm:$0xff]
        %v3642 = vld [vmem:[%s3603 + $0x130] sm:$0xff]
        %v3643 = vld [vmem:[%s3603 + $0x138] sm:$0xff]
        %v3644 = vld [vmem:[%s3603 + $0x140] sm:$0xff]
        %v3645 = vld [vmem:[%s3603 + $0x148] sm:$0xff]
        %v3646 = vld [vmem:[%s3603 + $0x150] sm:$0xff]
        %v3647 = vld [vmem:[%s3603 + $0x158] sm:$0xff]
        %v3648 = vld [vmem:[%s3603 + $0x160] sm:$0xff]
        %v3649 = vld [vmem:[%s3603 + $0x168] sm:$0xff]
        %v3650 = vld [vmem:[%s3603 + $0x170] sm:$0xff]
        %v3651 = vld [vmem:[%s3603 + $0x178] sm:$0xff]
        %v3652 = vld [vmem:[%s3603 + $0x180] sm:$0xff]
        %v3653 = vld [vmem:[%s3603 + $0x188] sm:$0xff]
        %v3654 = vld [vmem:[%s3603 + $0x190] sm:$0xff]
        %v3655 = vld [vmem:[%s3603 + $0x198] sm:$0xff]
        %v3656 = vld [vmem:[%s3603 + $0x1a0] sm:$0xff]
        %v3657 = vld [vmem:[%s3603 + $0x1a8] sm:$0xff]
        %v3658 = vld [vmem:[%s3603 + $0x1b0] sm:$0xff]
        %v3659 = vld [vmem:[%s3603 + $0x1b8] sm:$0xff]
        %v3660 = vld [vmem:[%s3603 + $0x1c0] sm:$0xff]
        %v3661 = vld [vmem:[%s3603 + $0x1c8] sm:$0xff]
        %v3662 = vld [vmem:[%s3603 + $0x1d0] sm:$0xff]
        %v3663 = vld [vmem:[%s3603 + $0x1d8] sm:$0xff]
        %v3664 = vld [vmem:[%s3603 + $0x1e0] sm:$0xff]
        %v3665 = vld [vmem:[%s3603 + $0x1e8] sm:$0xff]
        %v3666 = vld [vmem:[%s3603 + $0x1f0] sm:$0xff]
        %v3667 = vld [vmem:[%s3603 + $0x1f8] sm:$0xff]
        %v3668 = vld [vmem:[%s3603 + $0x200] sm:$0xff]
        %v3669 = vld [vmem:[%s3603 + $0x208] sm:$0xff]
        %v3670 = vld [vmem:[%s3603 + $0x210] sm:$0xff]
        %v3671 = vld [vmem:[%s3603 + $0x218] sm:$0xff]
        %v3672 = vld [vmem:[%s3603 + $0x220] sm:$0xff]
        %v3673 = vld [vmem:[%s3603 + $0x228] sm:$0xff]
        %v3674 = vld [vmem:[%s3603 + $0x230] sm:$0xff]
        %v3675 = vld [vmem:[%s3603 + $0x238] sm:$0xff]
        %v3676 = vld [vmem:[%s3603 + $0x240] sm:$0xff]
        %v3677 = vld [vmem:[%s3603 + $0x248] sm:$0xff]
        %v3678 = vld [vmem:[%s3603 + $0x250] sm:$0xff]
        %v3679 = vld [vmem:[%s3603 + $0x258] sm:$0xff]
        %v3680 = vld [vmem:[%s3603 + $0x260] sm:$0xff]
        %v3681 = vld [vmem:[%s3603 + $0x268] sm:$0xff]
        %v3682 = vld [vmem:[%s3603 + $0x270] sm:$0xff]
        %v3683 = vld [vmem:[%s3603 + $0x278] sm:$0xff]
        %v3684 = vld [vmem:[%s3603 + $0x280] sm:$0xff]
        %v3685 = vld [vmem:[%s3603 + $0x288] sm:$0xff]
        %v3686 = vld [vmem:[%s3603 + $0x290] sm:$0xff]
        %v3687 = vld [vmem:[%s3603 + $0x298] sm:$0xff]
        %v3688 = vld [vmem:[%s3603 + $0x2a0] sm:$0xff]
        %v3689 = vld [vmem:[%s3603 + $0x2a8] sm:$0xff]
        %v3690 = vld [vmem:[%s3603 + $0x2b0] sm:$0xff]
        %v3691 = vld [vmem:[%s3603 + $0x2b8] sm:$0xff]
        %v3692 = vld [vmem:[%s3603 + $0x2c0] sm:$0xff]
        %v3693 = vld [vmem:[%s3603 + $0x2c8] sm:$0xff]
        %v3694 = vld [vmem:[%s3603 + $0x2d0] sm:$0xff]
        %v3695 = vld [vmem:[%s3603 + $0x2d8] sm:$0xff]
        %v3696 = vld [vmem:[%s3603 + $0x2e0] sm:$0xff]
        %v3697 = vld [vmem:[%s3603 + $0x2e8] sm:$0xff]
        %v3698 = vld [vmem:[%s3603 + $0x2f0] sm:$0xff]
        %v3699 = vld [vmem:[%s3603 + $0x2f8] sm:$0xff]
        %3700 = vmatpush.msra.mxu0 %v3694
        %3701 = vmatpush.msra.mxu0 %v3688
        %3702 = vmatpush.msra.mxu0 %v3682
        %3703 = vmatpush.msra.mxu0 %v3676
        %3704 = vmatpush.msra.mxu0 %v3670
        %3705 = vmatpush.msra.mxu0 %v3664
        %3706 = vmatpush.msra.mxu0 %v3658
        %3707 = vmatpush.msra.mxu0 %v3652
        %3708 = vmatpush.msra.mxu0 %v3646
        %3709 = vmatpush.msra.mxu0 %v3640
        %3710 = vmatpush.msra.mxu0 %v3634
        %3711 = vmatpush.msra.mxu0 %v3628
        %3712 = vmatpush.msra.mxu0 %v3622
        %3713 = vmatpush.msra.mxu0 %v3616
        %3714 = vmatpush.msra.mxu0 %v3610
        %3715 = vmatpush.msra.mxu0 %v3604
        %3716 = vmatmul.f32.gmra.mxu0 %v1403
        %v3717 = vpop.f32.mrf.mxu0
        %v3718 = vadd.f32 0.0, %v3717
        %3719 = vmatmul.f32.gmra.mxu0 0.0
        %v3720 = vpop.f32.mrf.mxu0
        %v3721 = vadd.f32 0.0, %v3720
        %3722 = vdwg.mxu0
        %3723 = vmatpush.msra.mxu0 %v3695
        %3724 = vmatpush.msra.mxu0 %v3689
        %3725 = vmatpush.msra.mxu0 %v3683
        %3726 = vmatpush.msra.mxu0 %v3677
        %3727 = vmatpush.msra.mxu0 %v3671
        %3728 = vmatpush.msra.mxu0 %v3665
        %3729 = vmatpush.msra.mxu0 %v3659
        %3730 = vmatpush.msra.mxu0 %v3653
        %3731 = vmatpush.msra.mxu0 %v3647
        %3732 = vmatpush.msra.mxu0 %v3641
        %3733 = vmatpush.msra.mxu0 %v3635
        %3734 = vmatpush.msra.mxu0 %v3629
        %3735 = vmatpush.msra.mxu0 %v3623
        %3736 = vmatpush.msra.mxu0 %v3617
        %3737 = vmatpush.msra.mxu0 %v3611
        %3738 = vmatpush.msra.mxu0 %v3605
        %3739 = vmatmul.f32.gmra.mxu0 %v1403
        %v3740 = vpop.f32.mrf.mxu0
        %v3741 = vadd.f32 0.0, %v3740
        %3742 = vmatmul.f32.gmra.mxu0 0.0
        %v3743 = vpop.f32.mrf.mxu0
        %v3744 = vadd.f32 0.0, %v3743
        %3745 = vdwg.mxu0
        %3746 = vmatpush.msra.mxu0 %v3696
        %3747 = vmatpush.msra.mxu0 %v3690
        %3748 = vmatpush.msra.mxu0 %v3684
        %3749 = vmatpush.msra.mxu0 %v3678
        %3750 = vmatpush.msra.mxu0 %v3672
        %3751 = vmatpush.msra.mxu0 %v3666
        %3752 = vmatpush.msra.mxu0 %v3660
        %3753 = vmatpush.msra.mxu0 %v3654
        %3754 = vmatpush.msra.mxu0 %v3648
        %3755 = vmatpush.msra.mxu0 %v3642
        %3756 = vmatpush.msra.mxu0 %v3636
        %3757 = vmatpush.msra.mxu0 %v3630
        %3758 = vmatpush.msra.mxu0 %v3624
        %3759 = vmatpush.msra.mxu0 %v3618
        %3760 = vmatpush.msra.mxu0 %v3612
        %3761 = vmatpush.msra.mxu0 %v3606
        %3762 = vmatmul.f32.gmra.mxu0 %v1403
        %v3763 = vpop.f32.mrf.mxu0
        %v3764 = vadd.f32 0.0, %v3763
        %3765 = vmatmul.f32.gmra.mxu0 0.0
        %v3766 = vpop.f32.mrf.mxu0
        %v3767 = vadd.f32 0.0, %v3766
        %3768 = vdwg.mxu0
        %3769 = vmatpush.msra.mxu0 %v3697
        %3770 = vmatpush.msra.mxu0 %v3691
        %3771 = vmatpush.msra.mxu0 %v3685
        %3772 = vmatpush.msra.mxu0 %v3679
        %3773 = vmatpush.msra.mxu0 %v3673
        %3774 = vmatpush.msra.mxu0 %v3667
        %3775 = vmatpush.msra.mxu0 %v3661
        %3776 = vmatpush.msra.mxu0 %v3655
        %3777 = vmatpush.msra.mxu0 %v3649
        %3778 = vmatpush.msra.mxu0 %v3643
        %3779 = vmatpush.msra.mxu0 %v3637
        %3780 = vmatpush.msra.mxu0 %v3631
        %3781 = vmatpush.msra.mxu0 %v3625
        %3782 = vmatpush.msra.mxu0 %v3619
        %3783 = vmatpush.msra.mxu0 %v3613
        %3784 = vmatpush.msra.mxu0 %v3607
        %3785 = vmatmul.f32.gmra.mxu0 %v1403
        %v3786 = vpop.f32.mrf.mxu0
        %v3787 = vadd.f32 0.0, %v3786
        %3788 = vmatmul.f32.gmra.mxu0 0.0
        %v3789 = vpop.f32.mrf.mxu0
        %v3790 = vadd.f32 0.0, %v3789
        %3791 = vdwg.mxu0
        %3792 = vmatpush.msra.mxu0 %v3698
        %3793 = vmatpush.msra.mxu0 %v3692
        %3794 = vmatpush.msra.mxu0 %v3686
        %3795 = vmatpush.msra.mxu0 %v3680
        %3796 = vmatpush.msra.mxu0 %v3674
        %3797 = vmatpush.msra.mxu0 %v3668
        %3798 = vmatpush.msra.mxu0 %v3662
        %3799 = vmatpush.msra.mxu0 %v3656
        %3800 = vmatpush.msra.mxu0 %v3650
        %3801 = vmatpush.msra.mxu0 %v3644
        %3802 = vmatpush.msra.mxu0 %v3638
        %3803 = vmatpush.msra.mxu0 %v3632
        %3804 = vmatpush.msra.mxu0 %v3626
        %3805 = vmatpush.msra.mxu0 %v3620
        %3806 = vmatpush.msra.mxu0 %v3614
        %3807 = vmatpush.msra.mxu0 %v3608
        %3808 = vmatmul.f32.gmra.mxu0 %v1403
        %v3809 = vpop.f32.mrf.mxu0
        %v3810 = vadd.f32 0.0, %v3809
        %3811 = vmatmul.f32.gmra.mxu0 0.0
        %v3812 = vpop.f32.mrf.mxu0
        %v3813 = vadd.f32 0.0, %v3812
        %3814 = vdwg.mxu0
        %3815 = vmatpush.msra.mxu0 %v3699
        %3816 = vmatpush.msra.mxu0 %v3693
        %3817 = vmatpush.msra.mxu0 %v3687
        %3818 = vmatpush.msra.mxu0 %v3681
        %3819 = vmatpush.msra.mxu0 %v3675
        %3820 = vmatpush.msra.mxu0 %v3669
        %3821 = vmatpush.msra.mxu0 %v3663
        %3822 = vmatpush.msra.mxu0 %v3657
        %3823 = vmatpush.msra.mxu0 %v3651
        %3824 = vmatpush.msra.mxu0 %v3645
        %3825 = vmatpush.msra.mxu0 %v3639
        %3826 = vmatpush.msra.mxu0 %v3633
        %3827 = vmatpush.msra.mxu0 %v3627
        %3828 = vmatpush.msra.mxu0 %v3621
        %3829 = vmatpush.msra.mxu0 %v3615
        %3830 = vmatpush.msra.mxu0 %v3609
        %3831 = vmatmul.f32.gmra.mxu0 %v1403
        %v3832 = vpop.f32.mrf.mxu0
        %v3833 = vadd.f32 0.0, %v3832
        %3834 = vmatmul.f32.gmra.mxu0 0.0
        %v3835 = vpop.f32.mrf.mxu0
        %v3836 = vadd.f32 0.0, %v3835
        %3837 = vdwg.mxu0
        %v3838 = vadd.f32 %v3591, %v3718
        %v3839 = vadd.f32 %v3592, %v3741
        %v3840 = vadd.f32 %v3593, %v3764
        %v3841 = vadd.f32 %v3594, %v3787
        %v3842 = vadd.f32 %v3595, %v3810
        %v3843 = vadd.f32 %v3596, %v3833
        %v3844 = vadd.f32 %v3597, %v3721
        %v3845 = vadd.f32 %v3598, %v3744
        %v3846 = vadd.f32 %v3599, %v3767
        %v3847 = vadd.f32 %v3600, %v3790
        %v3848 = vadd.f32 %v3601, %v3813
        %v3849 = vadd.f32 %v3602, %v3836
        %3850 = vst [vmem:[%s291] sm:$0xff] %v3838
        %3851 = vst [vmem:[%s291 + $0x8] sm:$0xff] %v3839
        %3852 = vst [vmem:[%s291 + $0x10] sm:$0xff] %v3840
        %3853 = vst [vmem:[%s291 + $0x18] sm:$0xff] %v3841
        %3854 = vst [vmem:[%s291 + $0x20] sm:$0xff] %v3842
        %3855 = vst [vmem:[%s291 + $0x28] sm:$0xff] %v3843
        %3856 = vst [vmem:[%s291 + $0x30] sm:$0x7] %v3844
        %3857 = vst [vmem:[%s291 + $0x38] sm:$0x7] %v3845
        %3858 = vst [vmem:[%s291 + $0x40] sm:$0x7] %v3846
        %3859 = vst [vmem:[%s291 + $0x48] sm:$0x7] %v3847
        %3860 = vst [vmem:[%s291 + $0x50] sm:$0x7] %v3848
        %3861 = vst [vmem:[%s291 + $0x58] sm:$0x7] %v3849
        %v3862 = vld [vmem:[%s291] sm:$0xff]
        %v3863 = vld [vmem:[%s291 + $0x8] sm:$0xff]
        %v3864 = vld [vmem:[%s291 + $0x10] sm:$0xff]
        %v3865 = vld [vmem:[%s291 + $0x18] sm:$0xff]
        %v3866 = vld [vmem:[%s291 + $0x20] sm:$0xff]
        %v3867 = vld [vmem:[%s291 + $0x28] sm:$0xff]
        %v3868 = vld [vmem:[%s291 + $0x30] sm:$0x7]
        %v3869 = vld [vmem:[%s291 + $0x38] sm:$0x7]
        %v3870 = vld [vmem:[%s291 + $0x40] sm:$0x7]
        %v3871 = vld [vmem:[%s291 + $0x48] sm:$0x7]
        %v3872 = vld [vmem:[%s291 + $0x50] sm:$0x7]
        %v3873 = vld [vmem:[%s291 + $0x58] sm:$0x7]
        %s3874 = scalar_lea.vmem [#allocation7], 6912
        %v3875 = vld [vmem:[%s3874] sm:$0xff]
        %v3876 = vld [vmem:[%s3874 + $0x8] sm:$0xff]
        %v3877 = vld [vmem:[%s3874 + $0x10] sm:$0xff]
        %v3878 = vld [vmem:[%s3874 + $0x18] sm:$0xff]
        %v3879 = vld [vmem:[%s3874 + $0x20] sm:$0xff]
        %v3880 = vld [vmem:[%s3874 + $0x28] sm:$0xff]
        %v3881 = vld [vmem:[%s3874 + $0x30] sm:$0xff]
        %v3882 = vld [vmem:[%s3874 + $0x38] sm:$0xff]
        %v3883 = vld [vmem:[%s3874 + $0x40] sm:$0xff]
        %v3884 = vld [vmem:[%s3874 + $0x48] sm:$0xff]
        %v3885 = vld [vmem:[%s3874 + $0x50] sm:$0xff]
        %v3886 = vld [vmem:[%s3874 + $0x58] sm:$0xff]
        %v3887 = vld [vmem:[%s3874 + $0x60] sm:$0xff]
        %v3888 = vld [vmem:[%s3874 + $0x68] sm:$0xff]
        %v3889 = vld [vmem:[%s3874 + $0x70] sm:$0xff]
        %v3890 = vld [vmem:[%s3874 + $0x78] sm:$0xff]
        %v3891 = vld [vmem:[%s3874 + $0x80] sm:$0xff]
        %v3892 = vld [vmem:[%s3874 + $0x88] sm:$0xff]
        %v3893 = vld [vmem:[%s3874 + $0x90] sm:$0xff]
        %v3894 = vld [vmem:[%s3874 + $0x98] sm:$0xff]
        %v3895 = vld [vmem:[%s3874 + $0xa0] sm:$0xff]
        %v3896 = vld [vmem:[%s3874 + $0xa8] sm:$0xff]
        %v3897 = vld [vmem:[%s3874 + $0xb0] sm:$0xff]
        %v3898 = vld [vmem:[%s3874 + $0xb8] sm:$0xff]
        %v3899 = vld [vmem:[%s3874 + $0xc0] sm:$0xff]
        %v3900 = vld [vmem:[%s3874 + $0xc8] sm:$0xff]
        %v3901 = vld [vmem:[%s3874 + $0xd0] sm:$0xff]
        %v3902 = vld [vmem:[%s3874 + $0xd8] sm:$0xff]
        %v3903 = vld [vmem:[%s3874 + $0xe0] sm:$0xff]
        %v3904 = vld [vmem:[%s3874 + $0xe8] sm:$0xff]
        %v3905 = vld [vmem:[%s3874 + $0xf0] sm:$0xff]
        %v3906 = vld [vmem:[%s3874 + $0xf8] sm:$0xff]
        %v3907 = vld [vmem:[%s3874 + $0x100] sm:$0xff]
        %v3908 = vld [vmem:[%s3874 + $0x108] sm:$0xff]
        %v3909 = vld [vmem:[%s3874 + $0x110] sm:$0xff]
        %v3910 = vld [vmem:[%s3874 + $0x118] sm:$0xff]
        %v3911 = vld [vmem:[%s3874 + $0x120] sm:$0xff]
        %v3912 = vld [vmem:[%s3874 + $0x128] sm:$0xff]
        %v3913 = vld [vmem:[%s3874 + $0x130] sm:$0xff]
        %v3914 = vld [vmem:[%s3874 + $0x138] sm:$0xff]
        %v3915 = vld [vmem:[%s3874 + $0x140] sm:$0xff]
        %v3916 = vld [vmem:[%s3874 + $0x148] sm:$0xff]
        %v3917 = vld [vmem:[%s3874 + $0x150] sm:$0xff]
        %v3918 = vld [vmem:[%s3874 + $0x158] sm:$0xff]
        %v3919 = vld [vmem:[%s3874 + $0x160] sm:$0xff]
        %v3920 = vld [vmem:[%s3874 + $0x168] sm:$0xff]
        %v3921 = vld [vmem:[%s3874 + $0x170] sm:$0xff]
        %v3922 = vld [vmem:[%s3874 + $0x178] sm:$0xff]
        %v3923 = vld [vmem:[%s3874 + $0x180] sm:$0xff]
        %v3924 = vld [vmem:[%s3874 + $0x188] sm:$0xff]
        %v3925 = vld [vmem:[%s3874 + $0x190] sm:$0xff]
        %v3926 = vld [vmem:[%s3874 + $0x198] sm:$0xff]
        %v3927 = vld [vmem:[%s3874 + $0x1a0] sm:$0xff]
        %v3928 = vld [vmem:[%s3874 + $0x1a8] sm:$0xff]
        %v3929 = vld [vmem:[%s3874 + $0x1b0] sm:$0xff]
        %v3930 = vld [vmem:[%s3874 + $0x1b8] sm:$0xff]
        %v3931 = vld [vmem:[%s3874 + $0x1c0] sm:$0xff]
        %v3932 = vld [vmem:[%s3874 + $0x1c8] sm:$0xff]
        %v3933 = vld [vmem:[%s3874 + $0x1d0] sm:$0xff]
        %v3934 = vld [vmem:[%s3874 + $0x1d8] sm:$0xff]
        %v3935 = vld [vmem:[%s3874 + $0x1e0] sm:$0xff]
        %v3936 = vld [vmem:[%s3874 + $0x1e8] sm:$0xff]
        %v3937 = vld [vmem:[%s3874 + $0x1f0] sm:$0xff]
        %v3938 = vld [vmem:[%s3874 + $0x1f8] sm:$0xff]
        %v3939 = vld [vmem:[%s3874 + $0x200] sm:$0xff]
        %v3940 = vld [vmem:[%s3874 + $0x208] sm:$0xff]
        %v3941 = vld [vmem:[%s3874 + $0x210] sm:$0xff]
        %v3942 = vld [vmem:[%s3874 + $0x218] sm:$0xff]
        %v3943 = vld [vmem:[%s3874 + $0x220] sm:$0xff]
        %v3944 = vld [vmem:[%s3874 + $0x228] sm:$0xff]
        %v3945 = vld [vmem:[%s3874 + $0x230] sm:$0xff]
        %v3946 = vld [vmem:[%s3874 + $0x238] sm:$0xff]
        %v3947 = vld [vmem:[%s3874 + $0x240] sm:$0xff]
        %v3948 = vld [vmem:[%s3874 + $0x248] sm:$0xff]
        %v3949 = vld [vmem:[%s3874 + $0x250] sm:$0xff]
        %v3950 = vld [vmem:[%s3874 + $0x258] sm:$0xff]
        %v3951 = vld [vmem:[%s3874 + $0x260] sm:$0xff]
        %v3952 = vld [vmem:[%s3874 + $0x268] sm:$0xff]
        %v3953 = vld [vmem:[%s3874 + $0x270] sm:$0xff]
        %v3954 = vld [vmem:[%s3874 + $0x278] sm:$0xff]
        %v3955 = vld [vmem:[%s3874 + $0x280] sm:$0xff]
        %v3956 = vld [vmem:[%s3874 + $0x288] sm:$0xff]
        %v3957 = vld [vmem:[%s3874 + $0x290] sm:$0xff]
        %v3958 = vld [vmem:[%s3874 + $0x298] sm:$0xff]
        %v3959 = vld [vmem:[%s3874 + $0x2a0] sm:$0xff]
        %v3960 = vld [vmem:[%s3874 + $0x2a8] sm:$0xff]
        %v3961 = vld [vmem:[%s3874 + $0x2b0] sm:$0xff]
        %v3962 = vld [vmem:[%s3874 + $0x2b8] sm:$0xff]
        %v3963 = vld [vmem:[%s3874 + $0x2c0] sm:$0xff]
        %v3964 = vld [vmem:[%s3874 + $0x2c8] sm:$0xff]
        %v3965 = vld [vmem:[%s3874 + $0x2d0] sm:$0xff]
        %v3966 = vld [vmem:[%s3874 + $0x2d8] sm:$0xff]
        %v3967 = vld [vmem:[%s3874 + $0x2e0] sm:$0xff]
        %v3968 = vld [vmem:[%s3874 + $0x2e8] sm:$0xff]
        %v3969 = vld [vmem:[%s3874 + $0x2f0] sm:$0xff]
        %v3970 = vld [vmem:[%s3874 + $0x2f8] sm:$0xff]
        %v3971 = vrot.slane 0.0, 1
        %v3972 = vsel %vm461, %v1764, %v3971
        %3975 = vmatpush.msra.mxu0 %v3965
        %3976 = vmatpush.msra.mxu0 %v3959
        %3977 = vmatpush.msra.mxu0 %v3953
        %3978 = vmatpush.msra.mxu0 %v3947
        %3979 = vmatpush.msra.mxu0 %v3941
        %3980 = vmatpush.msra.mxu0 %v3935
        %3981 = vmatpush.msra.mxu0 %v3929
        %3982 = vmatpush.msra.mxu0 %v3923
        %3983 = vmatpush.msra.mxu0 %v3917
        %3984 = vmatpush.msra.mxu0 %v3911
        %3985 = vmatpush.msra.mxu0 %v3905
        %3986 = vmatpush.msra.mxu0 %v3899
        %3987 = vmatpush.msra.mxu0 %v3893
        %3988 = vmatpush.msra.mxu0 %v3887
        %3989 = vmatpush.msra.mxu0 %v3881
        %3990 = vmatpush.msra.mxu0 %v3875
        %3991 = vmatmul.f32.gmra.mxu0 %v3972
        %v3992 = vpop.f32.mrf.mxu0
        %v3993 = vadd.f32 0.0, %v3992
        %3994 = vmatmul.f32.gmra.mxu0 %v3971
        %v3995 = vpop.f32.mrf.mxu0
        %v3996 = vadd.f32 0.0, %v3995
        %3997 = vdwg.mxu0
        %3998 = vmatpush.msra.mxu0 %v3966
        %3999 = vmatpush.msra.mxu0 %v3960
        %4000 = vmatpush.msra.mxu0 %v3954
        %4001 = vmatpush.msra.mxu0 %v3948
        %4002 = vmatpush.msra.mxu0 %v3942
        %4003 = vmatpush.msra.mxu0 %v3936
        %4004 = vmatpush.msra.mxu0 %v3930
        %4005 = vmatpush.msra.mxu0 %v3924
        %4006 = vmatpush.msra.mxu0 %v3918
        %4007 = vmatpush.msra.mxu0 %v3912
        %4008 = vmatpush.msra.mxu0 %v3906
        %4009 = vmatpush.msra.mxu0 %v3900
        %4010 = vmatpush.msra.mxu0 %v3894
        %4011 = vmatpush.msra.mxu0 %v3888
        %4012 = vmatpush.msra.mxu0 %v3882
        %4013 = vmatpush.msra.mxu0 %v3876
        %4014 = vmatmul.f32.gmra.mxu0 %v3972
        %v4015 = vpop.f32.mrf.mxu0
        %v4016 = vadd.f32 0.0, %v4015
        %4017 = vmatmul.f32.gmra.mxu0 %v3971
        %v4018 = vpop.f32.mrf.mxu0
        %v4019 = vadd.f32 0.0, %v4018
        %4020 = vdwg.mxu0
        %4021 = vmatpush.msra.mxu0 %v3967
        %4022 = vmatpush.msra.mxu0 %v3961
        %4023 = vmatpush.msra.mxu0 %v3955
        %4024 = vmatpush.msra.mxu0 %v3949
        %4025 = vmatpush.msra.mxu0 %v3943
        %4026 = vmatpush.msra.mxu0 %v3937
        %4027 = vmatpush.msra.mxu0 %v3931
        %4028 = vmatpush.msra.mxu0 %v3925
        %4029 = vmatpush.msra.mxu0 %v3919
        %4030 = vmatpush.msra.mxu0 %v3913
        %4031 = vmatpush.msra.mxu0 %v3907
        %4032 = vmatpush.msra.mxu0 %v3901
        %4033 = vmatpush.msra.mxu0 %v3895
        %4034 = vmatpush.msra.mxu0 %v3889
        %4035 = vmatpush.msra.mxu0 %v3883
        %4036 = vmatpush.msra.mxu0 %v3877
        %4037 = vmatmul.f32.gmra.mxu0 %v3972
        %v4038 = vpop.f32.mrf.mxu0
        %v4039 = vadd.f32 0.0, %v4038
        %4040 = vmatmul.f32.gmra.mxu0 %v3971
        %v4041 = vpop.f32.mrf.mxu0
        %v4042 = vadd.f32 0.0, %v4041
        %4043 = vdwg.mxu0
        %4044 = vmatpush.msra.mxu0 %v3968
        %4045 = vmatpush.msra.mxu0 %v3962
        %4046 = vmatpush.msra.mxu0 %v3956
        %4047 = vmatpush.msra.mxu0 %v3950
        %4048 = vmatpush.msra.mxu0 %v3944
        %4049 = vmatpush.msra.mxu0 %v3938
        %4050 = vmatpush.msra.mxu0 %v3932
        %4051 = vmatpush.msra.mxu0 %v3926
        %4052 = vmatpush.msra.mxu0 %v3920
        %4053 = vmatpush.msra.mxu0 %v3914
        %4054 = vmatpush.msra.mxu0 %v3908
        %4055 = vmatpush.msra.mxu0 %v3902
        %4056 = vmatpush.msra.mxu0 %v3896
        %4057 = vmatpush.msra.mxu0 %v3890
        %4058 = vmatpush.msra.mxu0 %v3884
        %4059 = vmatpush.msra.mxu0 %v3878
        %4060 = vmatmul.f32.gmra.mxu0 %v3972
        %v4061 = vpop.f32.mrf.mxu0
        %v4062 = vadd.f32 0.0, %v4061
        %4063 = vmatmul.f32.gmra.mxu0 %v3971
        %v4064 = vpop.f32.mrf.mxu0
        %v4065 = vadd.f32 0.0, %v4064
        %4066 = vdwg.mxu0
        %4067 = vmatpush.msra.mxu0 %v3969
        %4068 = vmatpush.msra.mxu0 %v3963
        %4069 = vmatpush.msra.mxu0 %v3957
        %4070 = vmatpush.msra.mxu0 %v3951
        %4071 = vmatpush.msra.mxu0 %v3945
        %4072 = vmatpush.msra.mxu0 %v3939
        %4073 = vmatpush.msra.mxu0 %v3933
        %4074 = vmatpush.msra.mxu0 %v3927
        %4075 = vmatpush.msra.mxu0 %v3921
        %4076 = vmatpush.msra.mxu0 %v3915
        %4077 = vmatpush.msra.mxu0 %v3909
        %4078 = vmatpush.msra.mxu0 %v3903
        %4079 = vmatpush.msra.mxu0 %v3897
        %4080 = vmatpush.msra.mxu0 %v3891
        %4081 = vmatpush.msra.mxu0 %v3885
        %4082 = vmatpush.msra.mxu0 %v3879
        %4083 = vmatmul.f32.gmra.mxu0 %v3972
        %v4084 = vpop.f32.mrf.mxu0
        %v4085 = vadd.f32 0.0, %v4084
        %4086 = vmatmul.f32.gmra.mxu0 %v3971
        %v4087 = vpop.f32.mrf.mxu0
        %v4088 = vadd.f32 0.0, %v4087
        %4089 = vdwg.mxu0
        %4090 = vmatpush.msra.mxu0 %v3970
        %4091 = vmatpush.msra.mxu0 %v3964
        %4092 = vmatpush.msra.mxu0 %v3958
        %4093 = vmatpush.msra.mxu0 %v3952
        %4094 = vmatpush.msra.mxu0 %v3946
        %4095 = vmatpush.msra.mxu0 %v3940
        %4096 = vmatpush.msra.mxu0 %v3934
        %4097 = vmatpush.msra.mxu0 %v3928
        %4098 = vmatpush.msra.mxu0 %v3922
        %4099 = vmatpush.msra.mxu0 %v3916
        %4100 = vmatpush.msra.mxu0 %v3910
        %4101 = vmatpush.msra.mxu0 %v3904
        %4102 = vmatpush.msra.mxu0 %v3898
        %4103 = vmatpush.msra.mxu0 %v3892
        %4104 = vmatpush.msra.mxu0 %v3886
        %4105 = vmatpush.msra.mxu0 %v3880
        %4106 = vmatmul.f32.gmra.mxu0 %v3972
        %v4107 = vpop.f32.mrf.mxu0
        %v4108 = vadd.f32 0.0, %v4107
        %4109 = vmatmul.f32.gmra.mxu0 %v3971
        %v4110 = vpop.f32.mrf.mxu0
        %v4111 = vadd.f32 0.0, %v4110
        %4112 = vdwg.mxu0
        %v4113 = vadd.f32 %v3862, %v3993
        %v4114 = vadd.f32 %v3863, %v4016
        %v4115 = vadd.f32 %v3864, %v4039
        %v4116 = vadd.f32 %v3865, %v4062
        %v4117 = vadd.f32 %v3866, %v4085
        %v4118 = vadd.f32 %v3867, %v4108
        %v4119 = vadd.f32 %v3868, %v3996
        %v4120 = vadd.f32 %v3869, %v4019
        %v4121 = vadd.f32 %v3870, %v4042
        %v4122 = vadd.f32 %v3871, %v4065
        %v4123 = vadd.f32 %v3872, %v4088
        %v4124 = vadd.f32 %v3873, %v4111
        %4125 = vst [vmem:[%s291] sm:$0xff] %v4113
        %4126 = vst [vmem:[%s291 + $0x8] sm:$0xff] %v4114
        %4127 = vst [vmem:[%s291 + $0x10] sm:$0xff] %v4115
        %4128 = vst [vmem:[%s291 + $0x18] sm:$0xff] %v4116
        %4129 = vst [vmem:[%s291 + $0x20] sm:$0xff] %v4117
        %4130 = vst [vmem:[%s291 + $0x28] sm:$0xff] %v4118
        %4131 = vst [vmem:[%s291 + $0x30] sm:$0x7] %v4119
        %4132 = vst [vmem:[%s291 + $0x38] sm:$0x7] %v4120
        %4133 = vst [vmem:[%s291 + $0x40] sm:$0x7] %v4121
        %4134 = vst [vmem:[%s291 + $0x48] sm:$0x7] %v4122
        %4135 = vst [vmem:[%s291 + $0x50] sm:$0x7] %v4123
        %4136 = vst [vmem:[%s291 + $0x58] sm:$0x7] %v4124
        %v4137 = vld [vmem:[%s291] sm:$0xff]
        %v4138 = vld [vmem:[%s291 + $0x8] sm:$0xff]
        %v4139 = vld [vmem:[%s291 + $0x10] sm:$0xff]
        %v4140 = vld [vmem:[%s291 + $0x18] sm:$0xff]
        %v4141 = vld [vmem:[%s291 + $0x20] sm:$0xff]
        %v4142 = vld [vmem:[%s291 + $0x28] sm:$0xff]
        %v4143 = vld [vmem:[%s291 + $0x30] sm:$0x7]
        %v4144 = vld [vmem:[%s291 + $0x38] sm:$0x7]
        %v4145 = vld [vmem:[%s291 + $0x40] sm:$0x7]
        %v4146 = vld [vmem:[%s291 + $0x48] sm:$0x7]
        %v4147 = vld [vmem:[%s291 + $0x50] sm:$0x7]
        %v4148 = vld [vmem:[%s291 + $0x58] sm:$0x7]
        %s4149 = scalar_lea.vmem [#allocation7], 7680
        %v4150 = vld [vmem:[%s4149] sm:$0xff]
        %v4151 = vld [vmem:[%s4149 + $0x8] sm:$0xff]
        %v4152 = vld [vmem:[%s4149 + $0x10] sm:$0xff]
        %v4153 = vld [vmem:[%s4149 + $0x18] sm:$0xff]
        %v4154 = vld [vmem:[%s4149 + $0x20] sm:$0xff]
        %v4155 = vld [vmem:[%s4149 + $0x28] sm:$0xff]
        %v4156 = vld [vmem:[%s4149 + $0x30] sm:$0xff]
        %v4157 = vld [vmem:[%s4149 + $0x38] sm:$0xff]
        %v4158 = vld [vmem:[%s4149 + $0x40] sm:$0xff]
        %v4159 = vld [vmem:[%s4149 + $0x48] sm:$0xff]
        %v4160 = vld [vmem:[%s4149 + $0x50] sm:$0xff]
        %v4161 = vld [vmem:[%s4149 + $0x58] sm:$0xff]
        %v4162 = vld [vmem:[%s4149 + $0x60] sm:$0xff]
        %v4163 = vld [vmem:[%s4149 + $0x68] sm:$0xff]
        %v4164 = vld [vmem:[%s4149 + $0x70] sm:$0xff]
        %v4165 = vld [vmem:[%s4149 + $0x78] sm:$0xff]
        %v4166 = vld [vmem:[%s4149 + $0x80] sm:$0xff]
        %v4167 = vld [vmem:[%s4149 + $0x88] sm:$0xff]
        %v4168 = vld [vmem:[%s4149 + $0x90] sm:$0xff]
        %v4169 = vld [vmem:[%s4149 + $0x98] sm:$0xff]
        %v4170 = vld [vmem:[%s4149 + $0xa0] sm:$0xff]
        %v4171 = vld [vmem:[%s4149 + $0xa8] sm:$0xff]
        %v4172 = vld [vmem:[%s4149 + $0xb0] sm:$0xff]
        %v4173 = vld [vmem:[%s4149 + $0xb8] sm:$0xff]
        %v4174 = vld [vmem:[%s4149 + $0xc0] sm:$0xff]
        %v4175 = vld [vmem:[%s4149 + $0xc8] sm:$0xff]
        %v4176 = vld [vmem:[%s4149 + $0xd0] sm:$0xff]
        %v4177 = vld [vmem:[%s4149 + $0xd8] sm:$0xff]
        %v4178 = vld [vmem:[%s4149 + $0xe0] sm:$0xff]
        %v4179 = vld [vmem:[%s4149 + $0xe8] sm:$0xff]
        %v4180 = vld [vmem:[%s4149 + $0xf0] sm:$0xff]
        %v4181 = vld [vmem:[%s4149 + $0xf8] sm:$0xff]
        %v4182 = vld [vmem:[%s4149 + $0x100] sm:$0xff]
        %v4183 = vld [vmem:[%s4149 + $0x108] sm:$0xff]
        %v4184 = vld [vmem:[%s4149 + $0x110] sm:$0xff]
        %v4185 = vld [vmem:[%s4149 + $0x118] sm:$0xff]
        %v4186 = vld [vmem:[%s4149 + $0x120] sm:$0xff]
        %v4187 = vld [vmem:[%s4149 + $0x128] sm:$0xff]
        %v4188 = vld [vmem:[%s4149 + $0x130] sm:$0xff]
        %v4189 = vld [vmem:[%s4149 + $0x138] sm:$0xff]
        %v4190 = vld [vmem:[%s4149 + $0x140] sm:$0xff]
        %v4191 = vld [vmem:[%s4149 + $0x148] sm:$0xff]
        %v4192 = vld [vmem:[%s4149 + $0x150] sm:$0xff]
        %v4193 = vld [vmem:[%s4149 + $0x158] sm:$0xff]
        %v4194 = vld [vmem:[%s4149 + $0x160] sm:$0xff]
        %v4195 = vld [vmem:[%s4149 + $0x168] sm:$0xff]
        %v4196 = vld [vmem:[%s4149 + $0x170] sm:$0xff]
        %v4197 = vld [vmem:[%s4149 + $0x178] sm:$0xff]
        %v4198 = vld [vmem:[%s4149 + $0x180] sm:$0xff]
        %v4199 = vld [vmem:[%s4149 + $0x188] sm:$0xff]
        %v4200 = vld [vmem:[%s4149 + $0x190] sm:$0xff]
        %v4201 = vld [vmem:[%s4149 + $0x198] sm:$0xff]
        %v4202 = vld [vmem:[%s4149 + $0x1a0] sm:$0xff]
        %v4203 = vld [vmem:[%s4149 + $0x1a8] sm:$0xff]
        %v4204 = vld [vmem:[%s4149 + $0x1b0] sm:$0xff]
        %v4205 = vld [vmem:[%s4149 + $0x1b8] sm:$0xff]
        %v4206 = vld [vmem:[%s4149 + $0x1c0] sm:$0xff]
        %v4207 = vld [vmem:[%s4149 + $0x1c8] sm:$0xff]
        %v4208 = vld [vmem:[%s4149 + $0x1d0] sm:$0xff]
        %v4209 = vld [vmem:[%s4149 + $0x1d8] sm:$0xff]
        %v4210 = vld [vmem:[%s4149 + $0x1e0] sm:$0xff]
        %v4211 = vld [vmem:[%s4149 + $0x1e8] sm:$0xff]
        %v4212 = vld [vmem:[%s4149 + $0x1f0] sm:$0xff]
        %v4213 = vld [vmem:[%s4149 + $0x1f8] sm:$0xff]
        %v4214 = vld [vmem:[%s4149 + $0x200] sm:$0xff]
        %v4215 = vld [vmem:[%s4149 + $0x208] sm:$0xff]
        %v4216 = vld [vmem:[%s4149 + $0x210] sm:$0xff]
        %v4217 = vld [vmem:[%s4149 + $0x218] sm:$0xff]
        %v4218 = vld [vmem:[%s4149 + $0x220] sm:$0xff]
        %v4219 = vld [vmem:[%s4149 + $0x228] sm:$0xff]
        %v4220 = vld [vmem:[%s4149 + $0x230] sm:$0xff]
        %v4221 = vld [vmem:[%s4149 + $0x238] sm:$0xff]
        %v4222 = vld [vmem:[%s4149 + $0x240] sm:$0xff]
        %v4223 = vld [vmem:[%s4149 + $0x248] sm:$0xff]
        %v4224 = vld [vmem:[%s4149 + $0x250] sm:$0xff]
        %v4225 = vld [vmem:[%s4149 + $0x258] sm:$0xff]
        %v4226 = vld [vmem:[%s4149 + $0x260] sm:$0xff]
        %v4227 = vld [vmem:[%s4149 + $0x268] sm:$0xff]
        %v4228 = vld [vmem:[%s4149 + $0x270] sm:$0xff]
        %v4229 = vld [vmem:[%s4149 + $0x278] sm:$0xff]
        %v4230 = vld [vmem:[%s4149 + $0x280] sm:$0xff]
        %v4231 = vld [vmem:[%s4149 + $0x288] sm:$0xff]
        %v4232 = vld [vmem:[%s4149 + $0x290] sm:$0xff]
        %v4233 = vld [vmem:[%s4149 + $0x298] sm:$0xff]
        %v4234 = vld [vmem:[%s4149 + $0x2a0] sm:$0xff]
        %v4235 = vld [vmem:[%s4149 + $0x2a8] sm:$0xff]
        %v4236 = vld [vmem:[%s4149 + $0x2b0] sm:$0xff]
        %v4237 = vld [vmem:[%s4149 + $0x2b8] sm:$0xff]
        %v4238 = vld [vmem:[%s4149 + $0x2c0] sm:$0xff]
        %v4239 = vld [vmem:[%s4149 + $0x2c8] sm:$0xff]
        %v4240 = vld [vmem:[%s4149 + $0x2d0] sm:$0xff]
        %v4241 = vld [vmem:[%s4149 + $0x2d8] sm:$0xff]
        %v4242 = vld [vmem:[%s4149 + $0x2e0] sm:$0xff]
        %v4243 = vld [vmem:[%s4149 + $0x2e8] sm:$0xff]
        %v4244 = vld [vmem:[%s4149 + $0x2f0] sm:$0xff]
        %v4245 = vld [vmem:[%s4149 + $0x2f8] sm:$0xff]
        %v4246 = vrot.slane 0.0, 2
        %v4247 = vsel %vm928, %v2040, %v4246
        %4250 = vmatpush.msra.mxu0 %v4240
        %4251 = vmatpush.msra.mxu0 %v4234
        %4252 = vmatpush.msra.mxu0 %v4228
        %4253 = vmatpush.msra.mxu0 %v4222
        %4254 = vmatpush.msra.mxu0 %v4216
        %4255 = vmatpush.msra.mxu0 %v4210
        %4256 = vmatpush.msra.mxu0 %v4204
        %4257 = vmatpush.msra.mxu0 %v4198
        %4258 = vmatpush.msra.mxu0 %v4192
        %4259 = vmatpush.msra.mxu0 %v4186
        %4260 = vmatpush.msra.mxu0 %v4180
        %4261 = vmatpush.msra.mxu0 %v4174
        %4262 = vmatpush.msra.mxu0 %v4168
        %4263 = vmatpush.msra.mxu0 %v4162
        %4264 = vmatpush.msra.mxu0 %v4156
        %4265 = vmatpush.msra.mxu0 %v4150
        %4266 = vmatmul.f32.gmra.mxu0 %v4247
        %v4267 = vpop.f32.mrf.mxu0
        %v4268 = vadd.f32 0.0, %v4267
        %4269 = vmatmul.f32.gmra.mxu0 %v4246
        %v4270 = vpop.f32.mrf.mxu0
        %v4271 = vadd.f32 0.0, %v4270
        %4272 = vdwg.mxu0
        %4273 = vmatpush.msra.mxu0 %v4241
        %4274 = vmatpush.msra.mxu0 %v4235
        %4275 = vmatpush.msra.mxu0 %v4229
        %4276 = vmatpush.msra.mxu0 %v4223
        %4277 = vmatpush.msra.mxu0 %v4217
        %4278 = vmatpush.msra.mxu0 %v4211
        %4279 = vmatpush.msra.mxu0 %v4205
        %4280 = vmatpush.msra.mxu0 %v4199
        %4281 = vmatpush.msra.mxu0 %v4193
        %4282 = vmatpush.msra.mxu0 %v4187
        %4283 = vmatpush.msra.mxu0 %v4181
        %4284 = vmatpush.msra.mxu0 %v4175
        %4285 = vmatpush.msra.mxu0 %v4169
        %4286 = vmatpush.msra.mxu0 %v4163
        %4287 = vmatpush.msra.mxu0 %v4157
        %4288 = vmatpush.msra.mxu0 %v4151
        %4289 = vmatmul.f32.gmra.mxu0 %v4247
        %v4290 = vpop.f32.mrf.mxu0
        %v4291 = vadd.f32 0.0, %v4290
        %4292 = vmatmul.f32.gmra.mxu0 %v4246
        %v4293 = vpop.f32.mrf.mxu0
        %v4294 = vadd.f32 0.0, %v4293
        %4295 = vdwg.mxu0
        %4296 = vmatpush.msra.mxu0 %v4242
        %4297 = vmatpush.msra.mxu0 %v4236
        %4298 = vmatpush.msra.mxu0 %v4230
        %4299 = vmatpush.msra.mxu0 %v4224
        %4300 = vmatpush.msra.mxu0 %v4218
        %4301 = vmatpush.msra.mxu0 %v4212
        %4302 = vmatpush.msra.mxu0 %v4206
        %4303 = vmatpush.msra.mxu0 %v4200
        %4304 = vmatpush.msra.mxu0 %v4194
        %4305 = vmatpush.msra.mxu0 %v4188
        %4306 = vmatpush.msra.mxu0 %v4182
        %4307 = vmatpush.msra.mxu0 %v4176
        %4308 = vmatpush.msra.mxu0 %v4170
        %4309 = vmatpush.msra.mxu0 %v4164
        %4310 = vmatpush.msra.mxu0 %v4158
        %4311 = vmatpush.msra.mxu0 %v4152
        %4312 = vmatmul.f32.gmra.mxu0 %v4247
        %v4313 = vpop.f32.mrf.mxu0
        %v4314 = vadd.f32 0.0, %v4313
        %4315 = vmatmul.f32.gmra.mxu0 %v4246
        %v4316 = vpop.f32.mrf.mxu0
        %v4317 = vadd.f32 0.0, %v4316
        %4318 = vdwg.mxu0
        %4319 = vmatpush.msra.mxu0 %v4243
        %4320 = vmatpush.msra.mxu0 %v4237
        %4321 = vmatpush.msra.mxu0 %v4231
        %4322 = vmatpush.msra.mxu0 %v4225
        %4323 = vmatpush.msra.mxu0 %v4219
        %4324 = vmatpush.msra.mxu0 %v4213
        %4325 = vmatpush.msra.mxu0 %v4207
        %4326 = vmatpush.msra.mxu0 %v4201
        %4327 = vmatpush.msra.mxu0 %v4195
        %4328 = vmatpush.msra.mxu0 %v4189
        %4329 = vmatpush.msra.mxu0 %v4183
        %4330 = vmatpush.msra.mxu0 %v4177
        %4331 = vmatpush.msra.mxu0 %v4171
        %4332 = vmatpush.msra.mxu0 %v4165
        %4333 = vmatpush.msra.mxu0 %v4159
        %4334 = vmatpush.msra.mxu0 %v4153
        %4335 = vmatmul.f32.gmra.mxu0 %v4247
        %v4336 = vpop.f32.mrf.mxu0
        %v4337 = vadd.f32 0.0, %v4336
        %4338 = vmatmul.f32.gmra.mxu0 %v4246
        %v4339 = vpop.f32.mrf.mxu0
        %v4340 = vadd.f32 0.0, %v4339
        %4341 = vdwg.mxu0
        %4342 = vmatpush.msra.mxu0 %v4244
        %4343 = vmatpush.msra.mxu0 %v4238
        %4344 = vmatpush.msra.mxu0 %v4232
        %4345 = vmatpush.msra.mxu0 %v4226
        %4346 = vmatpush.msra.mxu0 %v4220
        %4347 = vmatpush.msra.mxu0 %v4214
        %4348 = vmatpush.msra.mxu0 %v4208
        %4349 = vmatpush.msra.mxu0 %v4202
        %4350 = vmatpush.msra.mxu0 %v4196
        %4351 = vmatpush.msra.mxu0 %v4190
        %4352 = vmatpush.msra.mxu0 %v4184
        %4353 = vmatpush.msra.mxu0 %v4178
        %4354 = vmatpush.msra.mxu0 %v4172
        %4355 = vmatpush.msra.mxu0 %v4166
        %4356 = vmatpush.msra.mxu0 %v4160
        %4357 = vmatpush.msra.mxu0 %v4154
        %4358 = vmatmul.f32.gmra.mxu0 %v4247
        %v4359 = vpop.f32.mrf.mxu0
        %v4360 = vadd.f32 0.0, %v4359
        %4361 = vmatmul.f32.gmra.mxu0 %v4246
        %v4362 = vpop.f32.mrf.mxu0
        %v4363 = vadd.f32 0.0, %v4362
        %4364 = vdwg.mxu0
        %4365 = vmatpush.msra.mxu0 %v4245
        %4366 = vmatpush.msra.mxu0 %v4239
        %4367 = vmatpush.msra.mxu0 %v4233
        %4368 = vmatpush.msra.mxu0 %v4227
        %4369 = vmatpush.msra.mxu0 %v4221
        %4370 = vmatpush.msra.mxu0 %v4215
        %4371 = vmatpush.msra.mxu0 %v4209
        %4372 = vmatpush.msra.mxu0 %v4203
        %4373 = vmatpush.msra.mxu0 %v4197
        %4374 = vmatpush.msra.mxu0 %v4191
        %4375 = vmatpush.msra.mxu0 %v4185
        %4376 = vmatpush.msra.mxu0 %v4179
        %4377 = vmatpush.msra.mxu0 %v4173
        %4378 = vmatpush.msra.mxu0 %v4167
        %4379 = vmatpush.msra.mxu0 %v4161
        %4380 = vmatpush.msra.mxu0 %v4155
        %4381 = vmatmul.f32.gmra.mxu0 %v4247
        %v4382 = vpop.f32.mrf.mxu0
        %v4383 = vadd.f32 0.0, %v4382
        %4384 = vmatmul.f32.gmra.mxu0 %v4246
        %v4385 = vpop.f32.mrf.mxu0
        %v4386 = vadd.f32 0.0, %v4385
        %4387 = vdwg.mxu0
        %v4388 = vadd.f32 %v4137, %v4268
        %v4389 = vadd.f32 %v4138, %v4291
        %v4390 = vadd.f32 %v4139, %v4314
        %v4391 = vadd.f32 %v4140, %v4337
        %v4392 = vadd.f32 %v4141, %v4360
        %v4393 = vadd.f32 %v4142, %v4383
        %v4394 = vadd.f32 %v4143, %v4271
        %v4395 = vadd.f32 %v4144, %v4294
        %v4396 = vadd.f32 %v4145, %v4317
        %v4397 = vadd.f32 %v4146, %v4340
        %v4398 = vadd.f32 %v4147, %v4363
        %v4399 = vadd.f32 %v4148, %v4386
        %4400 = vst [vmem:[%s291] sm:$0xff] %v4388
        %4401 = vst [vmem:[%s291 + $0x8] sm:$0xff] %v4389
        %4402 = vst [vmem:[%s291 + $0x10] sm:$0xff] %v4390
        %4403 = vst [vmem:[%s291 + $0x18] sm:$0xff] %v4391
        %4404 = vst [vmem:[%s291 + $0x20] sm:$0xff] %v4392
        %4405 = vst [vmem:[%s291 + $0x28] sm:$0xff] %v4393
        %4406 = vst [vmem:[%s291 + $0x30] sm:$0x7] %v4394
        %4407 = vst [vmem:[%s291 + $0x38] sm:$0x7] %v4395
        %4408 = vst [vmem:[%s291 + $0x40] sm:$0x7] %v4396
        %4409 = vst [vmem:[%s291 + $0x48] sm:$0x7] %v4397
        %4410 = vst [vmem:[%s291 + $0x50] sm:$0x7] %v4398
        %4411 = vst [vmem:[%s291 + $0x58] sm:$0x7] %v4399
        %p4412 = scmp.lt.s32.totalorder %s19, 1
        %s4413 = scalar_select %p4412, %s19, 1
        %s4414 = smul.addr %s4413, 12
        %s4415 = smul.addr %s4414, 8
        %s4416 = scalar_lea.vmem %s5, %s4415
        // Predicated region
        $region57: #{tpu_custom_call.1} parent=39 // pred_check
          %p4417 = pneg %p147
        $region58: #{tpu_custom_call.1} parent=39 // pred_check_branch
          %4419 = sbr.rel (%p4417) target = $region60
        $region59: #{tpu_custom_call.1} parent=39 // pred_region
          _
        $region60: #{tpu_custom_call.1} parent=39 // pred_fallthru
          _
      $region40: #{tpu_custom_call.1} parent=5 // pred_fallthru
        _
      %p4420 = scmp.le.s32.totalorder 2, %s14
      // Predicated region
      $region61: #{tpu_custom_call.1} parent=5 // pred_check
        %p4421 = pneg %p4420
      $region62: #{tpu_custom_call.1} parent=5 // pred_check_branch
        %4423 = sbr.rel (%p4421) target = $region64
      $region63: #{tpu_custom_call.1} parent=5 // pred_region
        %s4424 = ssub.s32 %s14, 2
        // Predicated region
        $region65: #{tpu_custom_call.1} parent=63 // pred_check
          %p4425 = pneg %p153
        $region66: #{tpu_custom_call.1} parent=63 // pred_check_branch
          %4427 = sbr.rel (%p4425) target = $region68
        $region67: #{tpu_custom_call.1} parent=63 // pred_region
          %p4428 = scmp.lt.s32.totalorder %s20, 1
          %s4429 = scalar_select %p4428, %s20, 1
          %s4430 = smul.addr %s4429, 12
          %s4431 = smul.addr %s4430, 8
          %s4432 = scalar_lea.vmem %s5, %s4431
        $region68: #{tpu_custom_call.1} parent=63 // pred_fallthru
          _
      $region64: #{tpu_custom_call.1} parent=5 // pred_fallthru
        _
    $region6: #{tpu_custom_call.1} parent=1 // loop_footer
      %s18 = sadd.s32 1, %s14
    $region7: #{tpu_custom_call.1} parent=1 // loop_footer_branch
      %13 = sbr.rel target = $region3
    $region8: #{tpu_custom_call.1} parent=1 // loop_exit
      _
    %4433 = vsyncpa [#allocation3], 1
    %s4434 = scalar_lea.sflag [#allocation3], 1
    %4435 = vsyncpa %s4434, 1
    %4436 = vsyncpa [#allocation5], 1
    %4437 = vsyncpa [#allocation8], 1

</llo_original>
